<compile_context>
chip_gen: v7x
topology: tpu7x:2x2x1
jax: 0.10.0
libtpu: 0.0.40
codegen_flags: <defaults>
</compile_context>

<pallas_src>
import functools
import math

import jax
import jax.numpy as jnp
from jax.experimental import pallas as pl
from jax.experimental.pallas import tpu as pltpu


def _round_up(x, m):
    return ((x + m - 1) // m) * m


# ---------------------------------------------------------------------------
# Tiled linear kernel:  y = act(x @ w + b)
#   x: (N, Cin) bf16,  w: (Cin, Cout) bf16 (pre-transposed),  b: (1, Cout) f32
# ---------------------------------------------------------------------------
def _linear_kernel(x_ref, w_ref, b_ref, o_ref, acc_ref, *, activation):
    @pl.when(pl.program_id(2) == 0)
    def _init():
        acc_ref[...] = jnp.zeros_like(acc_ref)

    acc_ref[...] += jnp.dot(x_ref[...], w_ref[...],
                            preferred_element_type=jnp.float32)

    @pl.when(pl.program_id(2) == pl.num_programs(2) - 1)
    def _finalize():
        y = acc_ref[...] + b_ref[...]
        if activation == "relu":
            y = jnp.maximum(y, 0.0)
        o_ref[...] = y.astype(o_ref.dtype)


def pallas_linear(x2d, w_t, b, *, activation=None, out_dtype=jnp.float32,
                  tm=256, tn=256, tk=512):
    """x2d: (N, Cin) any float dtype; w_t: (Cin, Cout); b: (Cout,)."""
    N, Cin = x2d.shape
    Cout = w_t.shape[1]

    # Tile sizes: multiples of (8, 128); clamp to (padded) full dims for small shapes.
    tm = min(tm, _round_up(N, 8))
    tn = min(tn, _round_up(Cout, 128))
    tk = min(tk, _round_up(Cin, 128))
    Np, Kp, Mp = _round_up(N, tm), _round_up(Cin, tk), _round_up(Cout, tn)

    x = x2d.astype(jnp.bfloat16)
    if (Np, Kp) != (N, Cin):
        x = jnp.pad(x, ((0, Np - N), (0, Kp - Cin)))
    w = w_t.astype(jnp.bfloat16)
    if (Kp, Mp) != (Cin, Cout):
        w = jnp.pad(w, ((0, Kp - Cin), (0, Mp - Cout)))
    bb = b.reshape(1, Cout).astype(jnp.float32)
    if Mp != Cout:
        bb = jnp.pad(bb, ((0, 0), (0, Mp - Cout)))

    grid = (Np // tm, Mp // tn, Kp // tk)
    kernel = functools.partial(_linear_kernel, activation=activation)

    out = pl.pallas_call(
        kernel,
        out_shape=jax.ShapeDtypeStruct((Np, Mp), out_dtype),
        grid=grid,
        in_specs=[
            pl.BlockSpec((tm, tk), lambda i, j, k: (i, k)),
            pl.BlockSpec((tk, tn), lambda i, j, k: (k, j)),
            pl.BlockSpec((1, tn), lambda i, j, k: (0, j)),
        ],
        out_specs=pl.BlockSpec((tm, tn), lambda i, j, k: (i, j)),
        scratch_shapes=[pltpu.VMEM((tm, tn), jnp.float32)],
        compiler_params=pltpu.CompilerParams(
            dimension_semantics=("parallel", "parallel", "arbitrary"),
            vmem_limit_bytes=32 * 1024 * 1024),
        cost_estimate=pl.CostEstimate(
            flops=2 * N * Cin * Cout,
            transcendentals=0,
            bytes_accessed=Np * Kp * 2 + Kp * Mp * 2 + Np * Mp * 4 + Mp * 4),
    )(x, w, bb)

    if (Np, Mp) != (N, Cout):
        out = out[:N, :Cout]
    return out


# ---------------------------------------------------------------------------
# Fused residual-add + LayerNorm kernel (row tiled).
# ---------------------------------------------------------------------------
def _add_ln_kernel(x_ref, r_ref, g_ref, b_ref, o_ref, *, eps):
    s = x_ref[...].astype(jnp.float32) + r_ref[...].astype(jnp.float32)
    mu = jnp.mean(s, axis=-1, keepdims=True)
    c = s - mu
    var = jnp.mean(c * c, axis=-1, keepdims=True)
    inv = jax.lax.rsqrt(var + eps)
    o_ref[...] = (c * inv * g_ref[...] + b_ref[...]).astype(o_ref.dtype)


def pallas_add_layernorm(x2d, res2d, gamma, beta, *, eps=1e-5,
                         out_dtype=jnp.float32, tm=256):
    N, C = x2d.shape
    tm = min(tm, _round_up(N, 8))
    Np = _round_up(N, tm)
    x, r = x2d, res2d
    if Np != N:
        x = jnp.pad(x, ((0, Np - N), (0, 0)))
        r = jnp.pad(r, ((0, Np - N), (0, 0)))
    g = gamma.reshape(1, C).astype(jnp.float32)
    b = beta.reshape(1, C).astype(jnp.float32)

    out = pl.pallas_call(
        functools.partial(_add_ln_kernel, eps=eps),
        out_shape=jax.ShapeDtypeStruct((Np, C), out_dtype),
        grid=(Np // tm,),
        in_specs=[
            pl.BlockSpec((tm, C), lambda i: (i, 0)),
            pl.BlockSpec((tm, C), lambda i: (i, 0)),
            pl.BlockSpec((1, C), lambda i: (0, 0)),
            pl.BlockSpec((1, C), lambda i: (0, 0)),
        ],
        out_specs=pl.BlockSpec((tm, C), lambda i: (i, 0)),
        compiler_params=pltpu.CompilerParams(
            dimension_semantics=("parallel",),
            vmem_limit_bytes=32 * 1024 * 1024),
    )(x, r, g, b)
    return out[:N] if Np != N else out


# ---------------------------------------------------------------------------
# Scaled dot-product attention: one grid step per batch, all heads per block.
#   q: (B, Lq, H*Dh) bf16;  k, v: (B, Lk, H*Dh) bf16;  bias: (B, Lq, Lk) f32.
#   Output: (B, Lq, H*Dh) lane-dense block.
# ---------------------------------------------------------------------------
def _sdpa_body(q_ref, k_ref, v_ref, bias_ref, o_ref, head_num, inv_temp):
    hd = q_ref.shape[2] // head_num
    q = q_ref[0]                                   # (Lq, H*Dh) bf16
    k = k_ref[0]                                   # (Lk, H*Dh) bf16
    v = v_ref[0]
    bias = bias_ref[0] if bias_ref is not None else None   # (Lq, Lk) f32

    outs = []
    for h in range(head_num):                      # static unroll over heads
        lo, hi = h * hd, (h + 1) * hd
        # Fold 1/temperature into q (Lq*Dh muls instead of Lq*Lk).
        qh = (q[:, lo:hi].astype(jnp.float32) * inv_temp).astype(jnp.bfloat16)
        kh = k[:, lo:hi]
        s = jnp.dot(qh, kh.T, preferred_element_type=jnp.float32)   # (Lq, Lk)
        if bias is not None:
            s = s + bias                            # finite -1e30 fill: no NaN path
        s = s - jnp.max(s, axis=-1, keepdims=True)
        p = jnp.exp(s)
        p = p * pl.reciprocal(jnp.sum(p, axis=-1, keepdims=True), approx=True)
        outs.append(jnp.dot(p.astype(jnp.bfloat16), v[:, lo:hi],
                            preferred_element_type=jnp.float32))
    o_ref[0] = jnp.concatenate(outs, axis=-1).astype(o_ref.dtype)


def _sdpa_kernel_bias(q_ref, k_ref, v_ref, bias_ref, o_ref, *, head_num, inv_temp):
    _sdpa_body(q_ref, k_ref, v_ref, bias_ref, o_ref, head_num, inv_temp)


def _sdpa_kernel_nobias(q_ref, k_ref, v_ref, o_ref, *, head_num, inv_temp):
    _sdpa_body(q_ref, k_ref, v_ref, None, o_ref, head_num, inv_temp)


def pallas_sdpa(q, k, v, bias, *, head_num, inv_temp, out_dtype=jnp.bfloat16):
    B, Lq, HD = q.shape
    Lk = k.shape[1]
    in_specs = [
        pl.BlockSpec((1, Lq, HD), lambda b: (b, 0, 0)),
        pl.BlockSpec((1, Lk, HD), lambda b: (b, 0, 0)),
        pl.BlockSpec((1, Lk, HD), lambda b: (b, 0, 0)),
    ]
    args = [q.astype(jnp.bfloat16), k.astype(jnp.bfloat16), v.astype(jnp.bfloat16)]
    if bias is not None:
        in_specs.append(pl.BlockSpec((1, Lq, Lk), lambda b: (b, 0, 0)))
        args.append(bias.astype(jnp.float32))
        kernel = functools.partial(_sdpa_kernel_bias, head_num=head_num,
                                   inv_temp=inv_temp)
    else:
        kernel = functools.partial(_sdpa_kernel_nobias, head_num=head_num,
                                   inv_temp=inv_temp)

    return pl.pallas_call(
        kernel,
        out_shape=jax.ShapeDtypeStruct((B, Lq, HD), out_dtype),
        grid=(B,),
        in_specs=in_specs,
        out_specs=pl.BlockSpec((1, Lq, HD), lambda b: (b, 0, 0)),
        compiler_params=pltpu.CompilerParams(
            dimension_semantics=("parallel",),
            vmem_limit_bytes=32 * 1024 * 1024),
    )(*args)


# ---------------------------------------------------------------------------
# Parameter construction (PyTorch layout) and kernel-friendly preparation.
# ---------------------------------------------------------------------------
def position_encoding_table(in_channels, max_len=500):
    pos = jnp.arange(max_len, dtype=jnp.float32)[:, None]
    i = jnp.arange(in_channels, dtype=jnp.float32)[None, :]
    angle = pos / jnp.power(10000.0, 2.0 * jnp.floor(i / 2.0) / in_channels)
    even = (jnp.arange(in_channels) % 2 == 0)[None, :]
    return jnp.where(even, jnp.sin(angle), jnp.cos(angle))


def init_decoder_params(key, *, num_classes, src_dim, hidden_dim, filter_dim,
                        head_num, layer_num):
    head_dim = hidden_dim // head_num
    inner = head_num * head_dim
    keys = iter(jax.random.split(key, 8 + layer_num * 32))
    scale = 0.02

    def lin(cout, cin):
        return {"w": jax.random.normal(next(keys), (cout, cin), jnp.float32) * scale,
                "b": jax.random.normal(next(keys), (cout,), jnp.float32) * scale}

    def norm():
        return {"g": jnp.ones((hidden_dim,), jnp.float32),
                "b": jnp.zeros((hidden_dim,), jnp.float32)}

    layers = []
    for _ in range(layer_num):
        layers.append({
            "self": {"q": lin(inner, hidden_dim), "k": lin(inner, hidden_dim),
                     "v": lin(inner, hidden_dim), "o": lin(hidden_dim, inner)},
            "self_norm": norm(),
            "cross": {"q": lin(inner, hidden_dim), "k": lin(inner, src_dim),
                      "v": lin(inner, src_dim), "o": lin(hidden_dim, inner)},
            "cross_norm": norm(),
            "ff": {"l1": lin(filter_dim, hidden_dim), "l2": lin(hidden_dim, filter_dim)},
            "ff_norm": norm(),
        })
    return {
        "embedding": jax.random.normal(next(keys), (num_classes + 1, hidden_dim),
                                       jnp.float32) * scale,
        "layers": layers,
        "generator": lin(num_classes, hidden_dim),
    }


def prepare_kernel_params(params):
    """Pre-transpose weights to (Cin, Cout), cast to bf16, fuse QKV / KV."""
    bf = jnp.bfloat16

    def t(l):
        return l["w"].T.astype(bf)

    layers = []
    for layer in params["layers"]:
        sa, ca, ff = layer["self"], layer["cross"], layer["ff"]
        layers.append({
            "w_qkv": jnp.concatenate([sa["q"]["w"], sa["k"]["w"], sa["v"]["w"]],
                                     axis=0).T.astype(bf),
            "b_qkv": jnp.concatenate([sa["q"]["b"], sa["k"]["b"], sa["v"]["b"]]),
            "wo_s": t(sa["o"]), "bo_s": sa["o"]["b"],
            "ln1_g": layer["self_norm"]["g"], "ln1_b": layer["self_norm"]["b"],
            "wq_c": t(ca["q"]), "bq_c": ca["q"]["b"],
            "w_kv": jnp.concatenate([ca["k"]["w"], ca["v"]["w"]],
                                    axis=0).T.astype(bf),
            "b_kv": jnp.concatenate([ca["k"]["b"], ca["v"]["b"]]),
            "wo_c": t(ca["o"]), "bo_c": ca["o"]["b"],
            "ln2_g": layer["cross_norm"]["g"], "ln2_b": layer["cross_norm"]["b"],
            "w1": t(ff["l1"]), "b1": ff["l1"]["b"],
            "w2": t(ff["l2"]), "b2": ff["l2"]["b"],
            "ln3_g": layer["ff_norm"]["g"], "ln3_b": layer["ff_norm"]["b"],
        })
    return {"embedding": params["embedding"],
            "wg": params["generator"]["w"].T.astype(bf),
            "bg": params["generator"]["b"],
            "layers": layers}


# ---------------------------------------------------------------------------
# Full forward (teacher-forcing branch of TransformerDecoder.forward).
# ---------------------------------------------------------------------------
def transformer_decoder_forward(kparams, src, text, pos_table, *,
                                head_num, hidden_dim, pad_id):
    B, T = text.shape
    S = src.shape[1]
    head_dim = hidden_dim // head_num
    inner = head_num * head_dim
    inv_temp = 1.0 / math.sqrt(inner)

    # Embedding gather + sqrt scale + 1D positional encoding: glue left to XLA.
    # TODO(synk): embedding gather is not expressed as a Pallas kernel.
    tgt = jnp.take(kparams["embedding"], text, axis=0) * math.sqrt(hidden_dim)
    tgt = (tgt + pos_table[None, :T, :]).astype(jnp.float32)

    # pad_mask | order_mask  ->  additive f32 bias (nonzero == masked out).
    pad_m = (text == pad_id)
    pad_m = pad_m.at[:, 0].set(False)
    order_m = jnp.triu(jnp.ones((T, T), dtype=bool), k=1)
    mask = pad_m[:, None, :] | order_m[None, :, :]
    self_bias = jnp.where(mask, jnp.float32(-1e30), jnp.float32(0.0))

    x = tgt.reshape(B * T, hidden_dim)
    src2d = src.reshape(B * S, src.shape[2]).astype(jnp.bfloat16)

    for lp in kparams["layers"]:
        layer_in = x

        # --- self attention (fused QKV projection) -------------------------
        qkv = pallas_linear(layer_in, lp["w_qkv"], lp["b_qkv"],
                            out_dtype=jnp.bfloat16)
        q = qkv[:, :inner].reshape(B, T, inner)
        k = qkv[:, inner:2 * inner].reshape(B, T, inner)
        v = qkv[:, 2 * inner:].reshape(B, T, inner)
        att = pallas_sdpa(q, k, v, self_bias, head_num=head_num, inv_temp=inv_temp)
        att = pallas_linear(att.reshape(B * T, inner), lp["wo_s"], lp["bo_s"])
        out1 = pallas_add_layernorm(att, layer_in, lp["ln1_g"], lp["ln1_b"])

        # --- cross attention (query from the layer INPUT, like the module) --
        qc = pallas_linear(layer_in, lp["wq_c"], lp["bq_c"],
                           out_dtype=jnp.bfloat16).reshape(B, T, inner)
        kv = pallas_linear(src2d, lp["w_kv"], lp["b_kv"], out_dtype=jnp.bfloat16)
        kc = kv[:, :inner].reshape(B, S, inner)
        vc = kv[:, inner:].reshape(B, S, inner)
        att = pallas_sdpa(qc, kc, vc, None, head_num=head_num, inv_temp=inv_temp)
        att = pallas_linear(att.reshape(B * T, inner), lp["wo_c"], lp["bo_c"])
        out2 = pallas_add_layernorm(att, out1, lp["ln2_g"], lp["ln2_b"])

        # --- feedforward (ReLU fused into linear epilogues) -----------------
        h = pallas_linear(out2, lp["w1"], lp["b1"], activation="relu")
        h = pallas_linear(h, lp["w2"], lp["b2"], activation="relu")
        x = pallas_add_layernorm(h, out2, lp["ln3_g"], lp["ln3_b"])

    logits = pallas_linear(x, kparams["wg"], kparams["bg"])
    return logits.reshape(B, T, -1)


# ---------------------------------------------------------------------------
# Pure-JAX f32 reference (silent correctness check).
# ---------------------------------------------------------------------------
def _reference_forward(params, src, text, pos_table, *, head_num, hidden_dim, pad_id):
    B, T = text.shape
    head_dim = hidden_dim // head_num
    inner = head_num * head_dim
    temp = math.sqrt(inner)

    tgt = params["embedding"][text] * math.sqrt(hidden_dim)
    tgt = tgt + pos_table[None, :T, :]
    pad_m = (text == pad_id)
    pad_m = pad_m.at[:, 0].set(False)
    order_m = jnp.triu(jnp.ones((T, T), dtype=bool), k=1)
    mask = pad_m[:, None, :] | order_m[None, :, :]

    def mha(lin, q_in, k_in, v_in, msk):
        b, lq, lk = q_in.shape[0], q_in.shape[1], k_in.shape[1]
        qp = q_in @ lin["q"]["w"].T + lin["q"]["b"]
        kp = k_in @ lin["k"]["w"].T + lin["k"]["b"]
        vp = v_in @ lin["v"]["w"].T + lin["v"]["b"]
        qh = qp.reshape(b, lq, head_num, head_dim).transpose(0, 2, 1, 3)
        kh = kp.reshape(b, lk, head_num, head_dim).transpose(0, 2, 1, 3)
        vh = vp.reshape(b, lk, head_num, head_dim).transpose(0, 2, 1, 3)
        a = jnp.einsum("bhqd,bhkd->bhqk", qh, kh) / temp
        if msk is not None:
            a = jnp.where(msk[:, None], -jnp.inf, a)
        a = jax.nn.softmax(a, axis=-1)
        o = jnp.einsum("bhqk,bhkd->bhqd", a, vh)
        o = o.transpose(0, 2, 1, 3).reshape(b, lq, inner)
        return o @ lin["o"]["w"].T + lin["o"]["b"]

    def ln(x, n):
        mu = x.mean(-1, keepdims=True)
        var = ((x - mu) ** 2).mean(-1, keepdims=True)
        return (x - mu) / jnp.sqrt(var + 1e-5) * n["g"] + n["b"]

    x = tgt
    for layer in params["layers"]:
        a = mha(layer["self"], x, x, x, mask)
        out = ln(a + x, layer["self_norm"])
        a = mha(layer["cross"], x, src, src, None)   # query = layer input (as in module)
        out = ln(a + out, layer["cross_norm"])
        h = jnp.maximum(out @ layer["ff"]["l1"]["w"].T + layer["ff"]["l1"]["b"], 0.0)
        h = jnp.maximum(h @ layer["ff"]["l2"]["w"].T + layer["ff"]["l2"]["b"], 0.0)
        x = ln(h + out, layer["ff_norm"])
    return x @ params["generator"]["w"].T + params["generator"]["b"]


if __name__ == "__main__":
    # Small shapes consistent with the module's forward.
    B, T, S = 2, 8, 12
    num_classes, src_dim, hidden_dim, filter_dim = 10, 16, 32, 64
    head_num, layer_num = 4, 2
    pad_id, st_id = 0, 1

    key = jax.random.PRNGKey(0)
    kparam, ksrc, ktext = jax.random.split(key, 3)
    params = init_decoder_params(kparam, num_classes=num_classes, src_dim=src_dim,
                                 hidden_dim=hidden_dim, filter_dim=filter_dim,
                                 head_num=head_num, layer_num=layer_num)
    src = jax.random.normal(ksrc, (B, S, src_dim), jnp.float32)
    text = jax.random.randint(ktext, (B, T), 0, num_classes + 1)
    text = text.at[:, 0].set(st_id)

    pos_table = position_encoding_table(hidden_dim, max_len=500)
    kparams = prepare_kernel_params(params)

    fwd = jax.jit(functools.partial(transformer_decoder_forward,
                                    head_num=head_num, hidden_dim=hidden_dim,
                                    pad_id=pad_id))
    out = fwd(kparams, src, text, pos_table)
    out = jax.block_until_ready(out)
    assert out.shape == (B, T, num_classes)

    ref = _reference_forward(params, src, text, pos_table, head_num=head_num,
                             hidden_dim=hidden_dim, pad_id=pad_id)
    err = float(jnp.max(jnp.abs(out - ref)))
    assert err < 5e-2, f"max abs err {err}"

    print("KERNEL_OK")
</pallas_src>

<mosaic_0001>
module attributes {stable_mosaic.version = 11 : i64} {
  func.func @_linear_kernel(%arg0: i32, %arg1: i32, %arg2: i32, %arg3: memref<16x128xbf16, #tpu.memory_space<vmem>>, %arg4: memref<128x128xbf16, #tpu.memory_space<vmem>>, %arg5: memref<1x128xf32, #tpu.memory_space<vmem>>, %arg6: memref<16x128xbf16, #tpu.memory_space<vmem>>, %arg7: memref<16x128xf32, #tpu.memory_space<vmem>>) attributes {dimension_semantics = [#tpu.dimension_semantics<parallel>, #tpu.dimension_semantics<parallel>, #tpu.dimension_semantics<arbitrary>], iteration_bounds = array<i64: 1, 1, 1>, scalar_prefetch = 0 : i64, scratch_operands = 1 : i64, tpu.core_type = #tpu.core_type<tc>, window_params = [{transform_indices = @transform_0, window_bounds = array<i64: 16, 128>}, {transform_indices = @transform_1, window_bounds = array<i64: 128, 128>}, {transform_indices = @transform_2, window_bounds = array<i64: 1, 128>}, {transform_indices = @transform_3, window_bounds = array<i64: 16, 128>}]} {
    %c0_i32 = arith.constant 0 : i32
    %0 = arith.cmpi eq, %arg2, %c0_i32 : i32
    %1 = arith.extui %0 : i1 to i32
    %c0_i32_0 = arith.constant 0 : i32
    %2 = arith.cmpi ne, %1, %c0_i32_0 : i32
    scf.if %2 {
      %cst_10 = arith.constant 0.000000e+00 : f32
      %12 = vector.broadcast %cst_10 : f32 to vector<16x128xf32>
      %c0_11 = arith.constant 0 : index
      %c0_12 = arith.constant 0 : index
      %13 = vector.load %arg7[%c0_11, %c0_12] : memref<16x128xf32, #tpu.memory_space<vmem>>, vector<16x128xf32>
      tpu.vector_store %arg7[%c0_11, %c0_12], %12 {strides = array<i32>} : memref<16x128xf32, #tpu.memory_space<vmem>>, vector<16x128xf32>,
    } else {
    }
    %c0 = arith.constant 0 : index
    %c0_1 = arith.constant 0 : index
    %3 = vector.load %arg7[%c0, %c0_1] : memref<16x128xf32, #tpu.memory_space<vmem>>, vector<16x128xf32>
    %c0_2 = arith.constant 0 : index
    %c0_3 = arith.constant 0 : index
    %4 = vector.load %arg3[%c0_2, %c0_3] : memref<16x128xbf16, #tpu.memory_space<vmem>>, vector<16x128xbf16>
    %c0_4 = arith.constant 0 : index
    %c0_5 = arith.constant 0 : index
    %5 = vector.load %arg4[%c0_4, %c0_5] : memref<128x128xbf16, #tpu.memory_space<vmem>>, vector<128x128xbf16>
    %cst = arith.constant dense<0.000000e+00> : vector<16x128xf32>
    %6 = tpu.matmul %4, %5, %cst {dimension_numbers = #tpu.dot_dimension_numbers<[1], [0], [0], [1], [0, 0, 1, 1], [], []>} : vector<16x128xbf16>, vector<128x128xbf16>, vector<16x128xf32> -> vector<16x128xf32>
    %7 = arith.addf %3, %6 : vector<16x128xf32>
    %c0_6 = arith.constant 0 : index
    %c0_7 = arith.constant 0 : index
    %8 = vector.load %arg7[%c0_6, %c0_7] : memref<16x128xf32, #tpu.memory_space<vmem>>, vector<16x128xf32>
    tpu.vector_store %arg7[%c0_6, %c0_7], %7 {strides = array<i32>} : memref<16x128xf32, #tpu.memory_space<vmem>>, vector<16x128xf32>,
    %c0_i32_8 = arith.constant 0 : i32
    %9 = arith.cmpi eq, %arg2, %c0_i32_8 : i32
    %10 = arith.extui %9 : i1 to i32
    %c0_i32_9 = arith.constant 0 : i32
    %11 = arith.cmpi ne, %10, %c0_i32_9 : i32
    scf.if %11 {
      %c0_10 = arith.constant 0 : index
      %c0_11 = arith.constant 0 : index
      %12 = vector.load %arg7[%c0_10, %c0_11] : memref<16x128xf32, #tpu.memory_space<vmem>>, vector<16x128xf32>
      %c0_12 = arith.constant 0 : index
      %c0_13 = arith.constant 0 : index
      %13 = vector.load %arg5[%c0_12, %c0_13] : memref<1x128xf32, #tpu.memory_space<vmem>>, vector<1x128xf32>
      %14 = vector.broadcast %13 : vector<1x128xf32> to vector<16x128xf32>
      %15 = arith.addf %12, %14 : vector<16x128xf32>
      %16 = arith.truncf %15 : vector<16x128xf32> to vector<16x128xbf16>
      %c0_14 = arith.constant 0 : index
      %c0_15 = arith.constant 0 : index
      %17 = vector.load %arg6[%c0_14, %c0_15] : memref<16x128xbf16, #tpu.memory_space<vmem>>, vector<16x128xbf16>
      tpu.vector_store %arg6[%c0_14, %c0_15], %16 {strides = array<i32>} : memref<16x128xbf16, #tpu.memory_space<vmem>>, vector<16x128xbf16>,
    } else {
    }
    return
  }
  func.func @transform_0(%arg0: i32, %arg1: i32, %arg2: i32) -> (i32, i32) {
    %c0_i32 = arith.constant 0 : i32
    return %arg0, %arg2 : i32, i32
  }
  func.func @transform_1(%arg0: i32, %arg1: i32, %arg2: i32) -> (i32, i32) {
    %c0_i32 = arith.constant 0 : i32
    return %arg2, %arg1 : i32, i32
  }
  func.func @transform_2(%arg0: i32, %arg1: i32, %arg2: i32) -> (i32, i32) {
    %c0_i32 = arith.constant 0 : i32
    %c0_i32_0 = arith.constant 0 : i32
    return %c0_i32, %arg1 : i32, i32
  }
  func.func @transform_3(%arg0: i32, %arg1: i32, %arg2: i32) -> (i32, i32) {
    %c0_i32 = arith.constant 0 : i32
    return %arg0, %arg1 : i32, i32
  }
}

module attributes {stable_mosaic.version = 11 : i64} {
  func.func @_sdpa_kernel_bias(%arg0: i32, %arg1: memref<1x8x32xbf16, #tpu.memory_space<vmem>>, %arg2: memref<1x8x32xbf16, #tpu.memory_space<vmem>>, %arg3: memref<1x8x32xbf16, #tpu.memory_space<vmem>>, %arg4: memref<1x8x8xf32, #tpu.memory_space<vmem>>, %arg5: memref<1x8x32xbf16, #tpu.memory_space<vmem>>) attributes {dimension_semantics = [#tpu.dimension_semantics<parallel>], iteration_bounds = array<i64: 2>, scalar_prefetch = 0 : i64, scratch_operands = 0 : i64, tpu.core_type = #tpu.core_type<tc>, window_params = [{transform_indices = @transform_0, window_bounds = array<i64: 1, 8, 32>}, {transform_indices = @transform_1, window_bounds = array<i64: 1, 8, 32>}, {transform_indices = @transform_2, window_bounds = array<i64: 1, 8, 32>}, {transform_indices = @transform_3, window_bounds = array<i64: 1, 8, 8>}, {transform_indices = @transform_4, window_bounds = array<i64: 1, 8, 32>}]} {
    %c0 = arith.constant 0 : index
    %c0_0 = arith.constant 0 : index
    %c0_1 = arith.constant 0 : index
    %0 = vector.load %arg1[%c0, %c0_0, %c0_1] : memref<1x8x32xbf16, #tpu.memory_space<vmem>>, vector<1x8x32xbf16>
    %1 = vector.shape_cast %0 : vector<1x8x32xbf16> to vector<8x32xbf16>
    %c0_2 = arith.constant 0 : index
    %c0_3 = arith.constant 0 : index
    %c0_4 = arith.constant 0 : index
    %2 = vector.load %arg2[%c0_2, %c0_3, %c0_4] : memref<1x8x32xbf16, #tpu.memory_space<vmem>>, vector<1x8x32xbf16>
    %3 = vector.shape_cast %2 : vector<1x8x32xbf16> to vector<8x32xbf16>
    %c0_5 = arith.constant 0 : index
    %c0_6 = arith.constant 0 : index
    %c0_7 = arith.constant 0 : index
    %4 = vector.load %arg3[%c0_5, %c0_6, %c0_7] : memref<1x8x32xbf16, #tpu.memory_space<vmem>>, vector<1x8x32xbf16>
    %5 = vector.shape_cast %4 : vector<1x8x32xbf16> to vector<8x32xbf16>
    %c0_8 = arith.constant 0 : index
    %c0_9 = arith.constant 0 : index
    %c0_10 = arith.constant 0 : index
    %6 = vector.load %arg4[%c0_8, %c0_9, %c0_10] : memref<1x8x8xf32, #tpu.memory_space<vmem>>, vector<1x8x8xf32>
    %7 = vector.shape_cast %6 : vector<1x8x8xf32> to vector<8x8xf32>
    %8 = vector.extract_strided_slice %1 {offsets = [0, 0], sizes = [8, 8], strides = [1, 1]} : vector<8x32xbf16> to vector<8x8xbf16>
    %9 = arith.extf %8 : vector<8x8xbf16> to vector<8x8xf32>
    %cst = arith.constant 0.176776692 : f32
    %10 = vector.broadcast %cst : f32 to vector<8x8xf32>
    %11 = arith.mulf %9, %10 : vector<8x8xf32>
    %12 = arith.truncf %11 : vector<8x8xf32> to vector<8x8xbf16>
    %13 = vector.extract_strided_slice %3 {offsets = [0, 0], sizes = [8, 8], strides = [1, 1]} : vector<8x32xbf16> to vector<8x8xbf16>
    %14 = tpu.transpose %13, [1, 0] : vector<8x8xbf16> -> vector<8x8xbf16>
    %cst_11 = arith.constant dense<0.000000e+00> : vector<8x8xf32>
    %15 = tpu.matmul %12, %14, %cst_11 {dimension_numbers = #tpu.dot_dimension_numbers<[1], [0], [0], [1], [0, 0, 1, 1], [], []>} : vector<8x8xbf16>, vector<8x8xbf16>, vector<8x8xf32> -> vector<8x8xf32>
    %16 = arith.addf %15, %7 : vector<8x8xf32>
    %cst_12 = arith.constant dense<0xFF800000> : vector<8xf32>
    %17 = vector.multi_reduction <maximumf>, %16, %cst_12 [1] : vector<8x8xf32> to vector<8xf32>
    %18 = vector.shape_cast %17 : vector<8xf32> to vector<8x1xf32>
    %19 = vector.broadcast %18 : vector<8x1xf32> to vector<8x8xf32>
    %20 = arith.subf %16, %19 : vector<8x8xf32>
    %21 = math.exp %20 : vector<8x8xf32>
    %cst_13 = arith.constant dense<0.000000e+00> : vector<8xf32>
    %22 = vector.multi_reduction <add>, %21, %cst_13 [1] : vector<8x8xf32> to vector<8xf32>
    %23 = vector.shape_cast %22 : vector<8xf32> to vector<8x1xf32>
    %24 = tpu.reciprocal %23 {approx = true} : vector<8x1xf32> -> vector<8x1xf32>
    %25 = vector.broadcast %24 : vector<8x1xf32> to vector<8x8xf32>
    %26 = arith.mulf %21, %25 : vector<8x8xf32>
    %27 = arith.truncf %26 : vector<8x8xf32> to vector<8x8xbf16>
    %28 = vector.extract_strided_slice %5 {offsets = [0, 0], sizes = [8, 8], strides = [1, 1]} : vector<8x32xbf16> to vector<8x8xbf16>
    %cst_14 = arith.constant dense<0.000000e+00> : vector<8x8xf32>
    %29 = tpu.matmul %27, %28, %cst_14 {dimension_numbers = #tpu.dot_dimension_numbers<[1], [0], [0], [1], [0, 0, 1, 1], [], []>} : vector<8x8xbf16>, vector<8x8xbf16>, vector<8x8xf32> -> vector<8x8xf32>
    %30 = vector.extract_strided_slice %1 {offsets = [0, 8], sizes = [8, 8], strides = [1, 1]} : vector<8x32xbf16> to vector<8x8xbf16>
    %31 = arith.extf %30 : vector<8x8xbf16> to vector<8x8xf32>
    %cst_15 = arith.constant 0.176776692 : f32
    %32 = vector.broadcast %cst_15 : f32 to vector<8x8xf32>
    %33 = arith.mulf %31, %32 : vector<8x8xf32>
    %34 = arith.truncf %33 : vector<8x8xf32> to vector<8x8xbf16>
    %35 = vector.extract_strided_slice %3 {offsets = [0, 8], sizes = [8, 8], strides = [1, 1]} : vector<8x32xbf16> to vector<8x8xbf16>
    %36 = tpu.transpose %35, [1, 0] : vector<8x8xbf16> -> vector<8x8xbf16>
    %cst_16 = arith.constant dense<0.000000e+00> : vector<8x8xf32>
    %37 = tpu.matmul %34, %36, %cst_16 {dimension_numbers = #tpu.dot_dimension_numbers<[1], [0], [0], [1], [0, 0, 1, 1], [], []>} : vector<8x8xbf16>, vector<8x8xbf16>, vector<8x8xf32> -> vector<8x8xf32>
    %38 = arith.addf %37, %7 : vector<8x8xf32>
    %cst_17 = arith.constant dense<0xFF800000> : vector<8xf32>
    %39 = vector.multi_reduction <maximumf>, %38, %cst_17 [1] : vector<8x8xf32> to vector<8xf32>
    %40 = vector.shape_cast %39 : vector<8xf32> to vector<8x1xf32>
    %41 = vector.broadcast %40 : vector<8x1xf32> to vector<8x8xf32>
    %42 = arith.subf %38, %41 : vector<8x8xf32>
    %43 = math.exp %42 : vector<8x8xf32>
    %cst_18 = arith.constant dense<0.000000e+00> : vector<8xf32>
    %44 = vector.multi_reduction <add>, %43, %cst_18 [1] : vector<8x8xf32> to vector<8xf32>
    %45 = vector.shape_cast %44 : vector<8xf32> to vector<8x1xf32>
    %46 = tpu.reciprocal %45 {approx = true} : vector<8x1xf32> -> vector<8x1xf32>
    %47 = vector.broadcast %46 : vector<8x1xf32> to vector<8x8xf32>
    %48 = arith.mulf %43, %47 : vector<8x8xf32>
    %49 = arith.truncf %48 : vector<8x8xf32> to vector<8x8xbf16>
    %50 = vector.extract_strided_slice %5 {offsets = [0, 8], sizes = [8, 8], strides = [1, 1]} : vector<8x32xbf16> to vector<8x8xbf16>
    %cst_19 = arith.constant dense<0.000000e+00> : vector<8x8xf32>
    %51 = tpu.matmul %49, %50, %cst_19 {dimension_numbers = #tpu.dot_dimension_numbers<[1], [0], [0], [1], [0, 0, 1, 1], [], []>} : vector<8x8xbf16>, vector<8x8xbf16>, vector<8x8xf32> -> vector<8x8xf32>
    %52 = vector.extract_strided_slice %1 {offsets = [0, 16], sizes = [8, 8], strides = [1, 1]} : vector<8x32xbf16> to vector<8x8xbf16>
    %53 = arith.extf %52 : vector<8x8xbf16> to vector<8x8xf32>
    %cst_20 = arith.constant 0.176776692 : f32
    %54 = vector.broadcast %cst_20 : f32 to vector<8x8xf32>
    %55 = arith.mulf %53, %54 : vector<8x8xf32>
    %56 = arith.truncf %55 : vector<8x8xf32> to vector<8x8xbf16>
    %57 = vector.extract_strided_slice %3 {offsets = [0, 16], sizes = [8, 8], strides = [1, 1]} : vector<8x32xbf16> to vector<8x8xbf16>
    %58 = tpu.transpose %57, [1, 0] : vector<8x8xbf16> -> vector<8x8xbf16>
    %cst_21 = arith.constant dense<0.000000e+00> : vector<8x8xf32>
    %59 = tpu.matmul %56, %58, %cst_21 {dimension_numbers = #tpu.dot_dimension_numbers<[1], [0], [0], [1], [0, 0, 1, 1], [], []>} : vector<8x8xbf16>, vector<8x8xbf16>, vector<8x8xf32> -> vector<8x8xf32>
    %60 = arith.addf %59, %7 : vector<8x8xf32>
    %cst_22 = arith.constant dense<0xFF800000> : vector<8xf32>
    %61 = vector.multi_reduction <maximumf>, %60, %cst_22 [1] : vector<8x8xf32> to vector<8xf32>
    %62 = vector.shape_cast %61 : vector<8xf32> to vector<8x1xf32>
    %63 = vector.broadcast %62 : vector<8x1xf32> to vector<8x8xf32>
    %64 = arith.subf %60, %63 : vector<8x8xf32>
    %65 = math.exp %64 : vector<8x8xf32>
    %cst_23 = arith.constant dense<0.000000e+00> : vector<8xf32>
    %66 = vector.multi_reduction <add>, %65, %cst_23 [1] : vector<8x8xf32> to vector<8xf32>
    %67 = vector.shape_cast %66 : vector<8xf32> to vector<8x1xf32>
    %68 = tpu.reciprocal %67 {approx = true} : vector<8x1xf32> -> vector<8x1xf32>
    %69 = vector.broadcast %68 : vector<8x1xf32> to vector<8x8xf32>
    %70 = arith.mulf %65, %69 : vector<8x8xf32>
    %71 = arith.truncf %70 : vector<8x8xf32> to vector<8x8xbf16>
    %72 = vector.extract_strided_slice %5 {offsets = [0, 16], sizes = [8, 8], strides = [1, 1]} : vector<8x32xbf16> to vector<8x8xbf16>
    %cst_24 = arith.constant dense<0.000000e+00> : vector<8x8xf32>
    %73 = tpu.matmul %71, %72, %cst_24 {dimension_numbers = #tpu.dot_dimension_numbers<[1], [0], [0], [1], [0, 0, 1, 1], [], []>} : vector<8x8xbf16>, vector<8x8xbf16>, vector<8x8xf32> -> vector<8x8xf32>
    %74 = vector.extract_strided_slice %1 {offsets = [0, 24], sizes = [8, 8], strides = [1, 1]} : vector<8x32xbf16> to vector<8x8xbf16>
    %75 = arith.extf %74 : vector<8x8xbf16> to vector<8x8xf32>
    %cst_25 = arith.constant 0.176776692 : f32
    %76 = vector.broadcast %cst_25 : f32 to vector<8x8xf32>
    %77 = arith.mulf %75, %76 : vector<8x8xf32>
    %78 = arith.truncf %77 : vector<8x8xf32> to vector<8x8xbf16>
    %79 = vector.extract_strided_slice %3 {offsets = [0, 24], sizes = [8, 8], strides = [1, 1]} : vector<8x32xbf16> to vector<8x8xbf16>
    %80 = tpu.transpose %79, [1, 0] : vector<8x8xbf16> -> vector<8x8xbf16>
    %cst_26 = arith.constant dense<0.000000e+00> : vector<8x8xf32>
    %81 = tpu.matmul %78, %80, %cst_26 {dimension_numbers = #tpu.dot_dimension_numbers<[1], [0], [0], [1], [0, 0, 1, 1], [], []>} : vector<8x8xbf16>, vector<8x8xbf16>, vector<8x8xf32> -> vector<8x8xf32>
    %82 = arith.addf %81, %7 : vector<8x8xf32>
    %cst_27 = arith.constant dense<0xFF800000> : vector<8xf32>
    %83 = vector.multi_reduction <maximumf>, %82, %cst_27 [1] : vector<8x8xf32> to vector<8xf32>
    %84 = vector.shape_cast %83 : vector<8xf32> to vector<8x1xf32>
    %85 = vector.broadcast %84 : vector<8x1xf32> to vector<8x8xf32>
    %86 = arith.subf %82, %85 : vector<8x8xf32>
    %87 = math.exp %86 : vector<8x8xf32>
    %cst_28 = arith.constant dense<0.000000e+00> : vector<8xf32>
    %88 = vector.multi_reduction <add>, %87, %cst_28 [1] : vector<8x8xf32> to vector<8xf32>
    %89 = vector.shape_cast %88 : vector<8xf32> to vector<8x1xf32>
    %90 = tpu.reciprocal %89 {approx = true} : vector<8x1xf32> -> vector<8x1xf32>
    %91 = vector.broadcast %90 : vector<8x1xf32> to vector<8x8xf32>
    %92 = arith.mulf %87, %91 : vector<8x8xf32>
    %93 = arith.truncf %92 : vector<8x8xf32> to vector<8x8xbf16>
    %94 = vector.extract_strided_slice %5 {offsets = [0, 24], sizes = [8, 8], strides = [1, 1]} : vector<8x32xbf16> to vector<8x8xbf16>
    %cst_29 = arith.constant dense<0.000000e+00> : vector<8x8xf32>
    %95 = tpu.matmul %93, %94, %cst_29 {dimension_numbers = #tpu.dot_dimension_numbers<[1], [0], [0], [1], [0, 0, 1, 1], [], []>} : vector<8x8xbf16>, vector<8x8xbf16>, vector<8x8xf32> -> vector<8x8xf32>
    %96 = tpu.concatenate %29, %51, %73, %95 in 1 : vector<8x8xf32>, vector<8x8xf32>, vector<8x8xf32>, vector<8x8xf32> -> vector<8x32xf32>
    %97 = arith.truncf %96 : vector<8x32xf32> to vector<8x32xbf16>
    %c0_30 = arith.constant 0 : index
    %c0_31 = arith.constant 0 : index
    %c0_32 = arith.constant 0 : index
    %98 = vector.load %arg5[%c0_30, %c0_31, %c0_32] : memref<1x8x32xbf16, #tpu.memory_space<vmem>>, vector<1x8x32xbf16>
    %99 = vector.shape_cast %98 : vector<1x8x32xbf16> to vector<8x32xbf16>
    %100 = vector.shape_cast %97 : vector<8x32xbf16> to vector<1x8x32xbf16>
    tpu.vector_store %arg5[%c0_30, %c0_31, %c0_32], %100 {strides = array<i32>} : memref<1x8x32xbf16, #tpu.memory_space<vmem>>, vector<1x8x32xbf16>,
    return
  }
  func.func @transform_0(%arg0: i32) -> (i32, i32, i32) {
    %c0_i32 = arith.constant 0 : i32
    %c0_i32_0 = arith.constant 0 : i32
    %c0_i32_1 = arith.constant 0 : i32
    return %arg0, %c0_i32, %c0_i32_0 : i32, i32, i32
  }
  func.func @transform_1(%arg0: i32) -> (i32, i32, i32) {
    %c0_i32 = arith.constant 0 : i32
    %c0_i32_0 = arith.constant 0 : i32
    %c0_i32_1 = arith.constant 0 : i32
    return %arg0, %c0_i32, %c0_i32_0 : i32, i32, i32
  }
  func.func @transform_2(%arg0: i32) -> (i32, i32, i32) {
    %c0_i32 = arith.constant 0 : i32
    %c0_i32_0 = arith.constant 0 : i32
    %c0_i32_1 = arith.constant 0 : i32
    return %arg0, %c0_i32, %c0_i32_0 : i32, i32, i32
  }
  func.func @transform_3(%arg0: i32) -> (i32, i32, i32) {
    %c0_i32 = arith.constant 0 : i32
    %c0_i32_0 = arith.constant 0 : i32
    %c0_i32_1 = arith.constant 0 : i32
    return %arg0, %c0_i32, %c0_i32_0 : i32, i32, i32
  }
  func.func @transform_4(%arg0: i32) -> (i32, i32, i32) {
    %c0_i32 = arith.constant 0 : i32
    %c0_i32_0 = arith.constant 0 : i32
    %c0_i32_1 = arith.constant 0 : i32
    return %arg0, %c0_i32, %c0_i32_0 : i32, i32, i32
  }
}

module attributes {stable_mosaic.version = 11 : i64} {
  func.func @_add_ln_kernel(%arg0: i32, %arg1: memref<16x32xf32, #tpu.memory_space<vmem>>, %arg2: memref<16x32xf32, #tpu.memory_space<vmem>>, %arg3: memref<1x32xf32, #tpu.memory_space<vmem>>, %arg4: memref<1x32xf32, #tpu.memory_space<vmem>>, %arg5: memref<16x32xf32, #tpu.memory_space<vmem>>) attributes {dimension_semantics = [#tpu.dimension_semantics<parallel>], iteration_bounds = array<i64: 1>, scalar_prefetch = 0 : i64, scratch_operands = 0 : i64, tpu.core_type = #tpu.core_type<tc>, window_params = [{transform_indices = @transform_0, window_bounds = array<i64: 16, 32>}, {transform_indices = @transform_1, window_bounds = array<i64: 16, 32>}, {pipeline_mode = #tpu.pipeline_mode<synchronous>, transform_indices = @transform_2, window_bounds = array<i64: 1, 32>}, {pipeline_mode = #tpu.pipeline_mode<synchronous>, transform_indices = @transform_3, window_bounds = array<i64: 1, 32>}, {transform_indices = @transform_4, window_bounds = array<i64: 16, 32>}]} {
    %c0 = arith.constant 0 : index
    %c0_0 = arith.constant 0 : index
    %0 = vector.load %arg1[%c0, %c0_0] : memref<16x32xf32, #tpu.memory_space<vmem>>, vector<16x32xf32>
    %c0_1 = arith.constant 0 : index
    %c0_2 = arith.constant 0 : index
    %1 = vector.load %arg2[%c0_1, %c0_2] : memref<16x32xf32, #tpu.memory_space<vmem>>, vector<16x32xf32>
    %2 = arith.addf %0, %1 : vector<16x32xf32>
    %cst = arith.constant dense<0.000000e+00> : vector<16xf32>
    %3 = vector.multi_reduction <add>, %2, %cst [1] : vector<16x32xf32> to vector<16xf32>
    %4 = vector.shape_cast %3 : vector<16xf32> to vector<16x1xf32>
    %cst_3 = arith.constant 3.200000e+01 : f32
    %5 = vector.broadcast %cst_3 : f32 to vector<16x1xf32>
    %6 = arith.divf %4, %5 : vector<16x1xf32>
    %7 = vector.broadcast %6 : vector<16x1xf32> to vector<16x32xf32>
    %8 = arith.subf %2, %7 : vector<16x32xf32>
    %9 = arith.mulf %8, %8 : vector<16x32xf32>
    %cst_4 = arith.constant dense<0.000000e+00> : vector<16xf32>
    %10 = vector.multi_reduction <add>, %9, %cst_4 [1] : vector<16x32xf32> to vector<16xf32>
    %11 = vector.shape_cast %10 : vector<16xf32> to vector<16x1xf32>
    %cst_5 = arith.constant 3.200000e+01 : f32
    %12 = vector.broadcast %cst_5 : f32 to vector<16x1xf32>
    %13 = arith.divf %11, %12 : vector<16x1xf32>
    %cst_6 = arith.constant 9.99999974E-6 : f32
    %14 = vector.broadcast %cst_6 : f32 to vector<16x1xf32>
    %15 = arith.addf %13, %14 : vector<16x1xf32>
    %16 = math.rsqrt %15 : vector<16x1xf32>
    %17 = vector.broadcast %16 : vector<16x1xf32> to vector<16x32xf32>
    %18 = arith.mulf %8, %17 : vector<16x32xf32>
    %c0_7 = arith.constant 0 : index
    %c0_8 = arith.constant 0 : index
    %19 = vector.load %arg3[%c0_7, %c0_8] : memref<1x32xf32, #tpu.memory_space<vmem>>, vector<1x32xf32>
    %20 = vector.broadcast %19 : vector<1x32xf32> to vector<16x32xf32>
    %21 = arith.mulf %18, %20 : vector<16x32xf32>
    %c0_9 = arith.constant 0 : index
    %c0_10 = arith.constant 0 : index
    %22 = vector.load %arg4[%c0_9, %c0_10] : memref<1x32xf32, #tpu.memory_space<vmem>>, vector<1x32xf32>
    %23 = vector.broadcast %22 : vector<1x32xf32> to vector<16x32xf32>
    %24 = arith.addf %21, %23 : vector<16x32xf32>
    %c0_11 = arith.constant 0 : index
    %c0_12 = arith.constant 0 : index
    %25 = vector.load %arg5[%c0_11, %c0_12] : memref<16x32xf32, #tpu.memory_space<vmem>>, vector<16x32xf32>
    tpu.vector_store %arg5[%c0_11, %c0_12], %24 {strides = array<i32>} : memref<16x32xf32, #tpu.memory_space<vmem>>, vector<16x32xf32>,
    return
  }
  func.func @transform_0(%arg0: i32) -> (i32, i32) {
    %c0_i32 = arith.constant 0 : i32
    %c0_i32_0 = arith.constant 0 : i32
    return %arg0, %c0_i32 : i32, i32
  }
  func.func @transform_1(%arg0: i32) -> (i32, i32) {
    %c0_i32 = arith.constant 0 : i32
    %c0_i32_0 = arith.constant 0 : i32
    return %arg0, %c0_i32 : i32, i32
  }
  func.func @transform_2(%arg0: i32) -> (i32, i32) {
    %c0_i32 = arith.constant 0 : i32
    %c0_i32_0 = arith.constant 0 : i32
    %c0_i32_1 = arith.constant 0 : i32
    return %c0_i32, %c0_i32_0 : i32, i32
  }
  func.func @transform_3(%arg0: i32) -> (i32, i32) {
    %c0_i32 = arith.constant 0 : i32
    %c0_i32_0 = arith.constant 0 : i32
    %c0_i32_1 = arith.constant 0 : i32
    return %c0_i32, %c0_i32_0 : i32, i32
  }
  func.func @transform_4(%arg0: i32) -> (i32, i32) {
    %c0_i32 = arith.constant 0 : i32
    %c0_i32_0 = arith.constant 0 : i32
    return %arg0, %c0_i32 : i32, i32
  }
}

module attributes {stable_mosaic.version = 11 : i64} {
  func.func @_linear_kernel(%arg0: i32, %arg1: i32, %arg2: i32, %arg3: memref<16x128xbf16, #tpu.memory_space<vmem>>, %arg4: memref<128x128xbf16, #tpu.memory_space<vmem>>, %arg5: memref<1x128xf32, #tpu.memory_space<vmem>>, %arg6: memref<16x128xf32, #tpu.memory_space<vmem>>, %arg7: memref<16x128xf32, #tpu.memory_space<vmem>>) attributes {dimension_semantics = [#tpu.dimension_semantics<parallel>, #tpu.dimension_semantics<parallel>, #tpu.dimension_semantics<arbitrary>], iteration_bounds = array<i64: 1, 1, 1>, scalar_prefetch = 0 : i64, scratch_operands = 1 : i64, tpu.core_type = #tpu.core_type<tc>, window_params = [{transform_indices = @transform_0, window_bounds = array<i64: 16, 128>}, {transform_indices = @transform_1, window_bounds = array<i64: 128, 128>}, {transform_indices = @transform_2, window_bounds = array<i64: 1, 128>}, {transform_indices = @transform_3, window_bounds = array<i64: 16, 128>}]} {
    %c0_i32 = arith.constant 0 : i32
    %0 = arith.cmpi eq, %arg2, %c0_i32 : i32
    %1 = arith.extui %0 : i1 to i32
    %c0_i32_0 = arith.constant 0 : i32
    %2 = arith.cmpi ne, %1, %c0_i32_0 : i32
    scf.if %2 {
      %cst_10 = arith.constant 0.000000e+00 : f32
      %12 = vector.broadcast %cst_10 : f32 to vector<16x128xf32>
      %c0_11 = arith.constant 0 : index
      %c0_12 = arith.constant 0 : index
      %13 = vector.load %arg7[%c0_11, %c0_12] : memref<16x128xf32, #tpu.memory_space<vmem>>, vector<16x128xf32>
      tpu.vector_store %arg7[%c0_11, %c0_12], %12 {strides = array<i32>} : memref<16x128xf32, #tpu.memory_space<vmem>>, vector<16x128xf32>,
    } else {
    }
    %c0 = arith.constant 0 : index
    %c0_1 = arith.constant 0 : index
    %3 = vector.load %arg7[%c0, %c0_1] : memref<16x128xf32, #tpu.memory_space<vmem>>, vector<16x128xf32>
    %c0_2 = arith.constant 0 : index
    %c0_3 = arith.constant 0 : index
    %4 = vector.load %arg3[%c0_2, %c0_3] : memref<16x128xbf16, #tpu.memory_space<vmem>>, vector<16x128xbf16>
    %c0_4 = arith.constant 0 : index
    %c0_5 = arith.constant 0 : index
    %5 = vector.load %arg4[%c0_4, %c0_5] : memref<128x128xbf16, #tpu.memory_space<vmem>>, vector<128x128xbf16>
    %cst = arith.constant dense<0.000000e+00> : vector<16x128xf32>
    %6 = tpu.matmul %4, %5, %cst {dimension_numbers = #tpu.dot_dimension_numbers<[1], [0], [0], [1], [0, 0, 1, 1], [], []>} : vector<16x128xbf16>, vector<128x128xbf16>, vector<16x128xf32> -> vector<16x128xf32>
    %7 = arith.addf %3, %6 : vector<16x128xf32>
    %c0_6 = arith.constant 0 : index
    %c0_7 = arith.constant 0 : index
    %8 = vector.load %arg7[%c0_6, %c0_7] : memref<16x128xf32, #tpu.memory_space<vmem>>, vector<16x128xf32>
    tpu.vector_store %arg7[%c0_6, %c0_7], %7 {strides = array<i32>} : memref<16x128xf32, #tpu.memory_space<vmem>>, vector<16x128xf32>,
    %c0_i32_8 = arith.constant 0 : i32
    %9 = arith.cmpi eq, %arg2, %c0_i32_8 : i32
    %10 = arith.extui %9 : i1 to i32
    %c0_i32_9 = arith.constant 0 : i32
    %11 = arith.cmpi ne, %10, %c0_i32_9 : i32
    scf.if %11 {
      %c0_10 = arith.constant 0 : index
      %c0_11 = arith.constant 0 : index
      %12 = vector.load %arg7[%c0_10, %c0_11] : memref<16x128xf32, #tpu.memory_space<vmem>>, vector<16x128xf32>
      %c0_12 = arith.constant 0 : index
      %c0_13 = arith.constant 0 : index
      %13 = vector.load %arg5[%c0_12, %c0_13] : memref<1x128xf32, #tpu.memory_space<vmem>>, vector<1x128xf32>
      %14 = vector.broadcast %13 : vector<1x128xf32> to vector<16x128xf32>
      %15 = arith.addf %12, %14 : vector<16x128xf32>
      %c0_14 = arith.constant 0 : index
      %c0_15 = arith.constant 0 : index
      %16 = vector.load %arg6[%c0_14, %c0_15] : memref<16x128xf32, #tpu.memory_space<vmem>>, vector<16x128xf32>
      tpu.vector_store %arg6[%c0_14, %c0_15], %15 {strides = array<i32>} : memref<16x128xf32, #tpu.memory_space<vmem>>, vector<16x128xf32>,
    } else {
    }
    return
  }
  func.func @transform_0(%arg0: i32, %arg1: i32, %arg2: i32) -> (i32, i32) {
    %c0_i32 = arith.constant 0 : i32
    return %arg0, %arg2 : i32, i32
  }
  func.func @transform_1(%arg0: i32, %arg1: i32, %arg2: i32) -> (i32, i32) {
    %c0_i32 = arith.constant 0 : i32
    return %arg2, %arg1 : i32, i32
  }
  func.func @transform_2(%arg0: i32, %arg1: i32, %arg2: i32) -> (i32, i32) {
    %c0_i32 = arith.constant 0 : i32
    %c0_i32_0 = arith.constant 0 : i32
    return %c0_i32, %arg1 : i32, i32
  }
  func.func @transform_3(%arg0: i32, %arg1: i32, %arg2: i32) -> (i32, i32) {
    %c0_i32 = arith.constant 0 : i32
    return %arg0, %arg1 : i32, i32
  }
}

module attributes {stable_mosaic.version = 11 : i64} {
  func.func @_linear_kernel(%arg0: i32, %arg1: i32, %arg2: i32, %arg3: memref<16x128xbf16, #tpu.memory_space<vmem>>, %arg4: memref<128x128xbf16, #tpu.memory_space<vmem>>, %arg5: memref<1x128xf32, #tpu.memory_space<vmem>>, %arg6: memref<16x128xbf16, #tpu.memory_space<vmem>>, %arg7: memref<16x128xf32, #tpu.memory_space<vmem>>) attributes {dimension_semantics = [#tpu.dimension_semantics<parallel>, #tpu.dimension_semantics<parallel>, #tpu.dimension_semantics<arbitrary>], iteration_bounds = array<i64: 1, 1, 1>, scalar_prefetch = 0 : i64, scratch_operands = 1 : i64, tpu.core_type = #tpu.core_type<tc>, window_params = [{transform_indices = @transform_0, window_bounds = array<i64: 16, 128>}, {transform_indices = @transform_1, window_bounds = array<i64: 128, 128>}, {transform_indices = @transform_2, window_bounds = array<i64: 1, 128>}, {transform_indices = @transform_3, window_bounds = array<i64: 16, 128>}]} {
    %c0_i32 = arith.constant 0 : i32
    %0 = arith.cmpi eq, %arg2, %c0_i32 : i32
    %1 = arith.extui %0 : i1 to i32
    %c0_i32_0 = arith.constant 0 : i32
    %2 = arith.cmpi ne, %1, %c0_i32_0 : i32
    scf.if %2 {
      %cst_10 = arith.constant 0.000000e+00 : f32
      %12 = vector.broadcast %cst_10 : f32 to vector<16x128xf32>
      %c0_11 = arith.constant 0 : index
      %c0_12 = arith.constant 0 : index
      %13 = vector.load %arg7[%c0_11, %c0_12] : memref<16x128xf32, #tpu.memory_space<vmem>>, vector<16x128xf32>
      tpu.vector_store %arg7[%c0_11, %c0_12], %12 {strides = array<i32>} : memref<16x128xf32, #tpu.memory_space<vmem>>, vector<16x128xf32>,
    } else {
    }
    %c0 = arith.constant 0 : index
    %c0_1 = arith.constant 0 : index
    %3 = vector.load %arg7[%c0, %c0_1] : memref<16x128xf32, #tpu.memory_space<vmem>>, vector<16x128xf32>
    %c0_2 = arith.constant 0 : index
    %c0_3 = arith.constant 0 : index
    %4 = vector.load %arg3[%c0_2, %c0_3] : memref<16x128xbf16, #tpu.memory_space<vmem>>, vector<16x128xbf16>
    %c0_4 = arith.constant 0 : index
    %c0_5 = arith.constant 0 : index
    %5 = vector.load %arg4[%c0_4, %c0_5] : memref<128x128xbf16, #tpu.memory_space<vmem>>, vector<128x128xbf16>
    %cst = arith.constant dense<0.000000e+00> : vector<16x128xf32>
    %6 = tpu.matmul %4, %5, %cst {dimension_numbers = #tpu.dot_dimension_numbers<[1], [0], [0], [1], [0, 0, 1, 1], [], []>} : vector<16x128xbf16>, vector<128x128xbf16>, vector<16x128xf32> -> vector<16x128xf32>
    %7 = arith.addf %3, %6 : vector<16x128xf32>
    %c0_6 = arith.constant 0 : index
    %c0_7 = arith.constant 0 : index
    %8 = vector.load %arg7[%c0_6, %c0_7] : memref<16x128xf32, #tpu.memory_space<vmem>>, vector<16x128xf32>
    tpu.vector_store %arg7[%c0_6, %c0_7], %7 {strides = array<i32>} : memref<16x128xf32, #tpu.memory_space<vmem>>, vector<16x128xf32>,
    %c0_i32_8 = arith.constant 0 : i32
    %9 = arith.cmpi eq, %arg2, %c0_i32_8 : i32
    %10 = arith.extui %9 : i1 to i32
    %c0_i32_9 = arith.constant 0 : i32
    %11 = arith.cmpi ne, %10, %c0_i32_9 : i32
    scf.if %11 {
      %c0_10 = arith.constant 0 : index
      %c0_11 = arith.constant 0 : index
      %12 = vector.load %arg7[%c0_10, %c0_11] : memref<16x128xf32, #tpu.memory_space<vmem>>, vector<16x128xf32>
      %c0_12 = arith.constant 0 : index
      %c0_13 = arith.constant 0 : index
      %13 = vector.load %arg5[%c0_12, %c0_13] : memref<1x128xf32, #tpu.memory_space<vmem>>, vector<1x128xf32>
      %14 = vector.broadcast %13 : vector<1x128xf32> to vector<16x128xf32>
      %15 = arith.addf %12, %14 : vector<16x128xf32>
      %16 = arith.truncf %15 : vector<16x128xf32> to vector<16x128xbf16>
      %c0_14 = arith.constant 0 : index
      %c0_15 = arith.constant 0 : index
      %17 = vector.load %arg6[%c0_14, %c0_15] : memref<16x128xbf16, #tpu.memory_space<vmem>>, vector<16x128xbf16>
      tpu.vector_store %arg6[%c0_14, %c0_15], %16 {strides = array<i32>} : memref<16x128xbf16, #tpu.memory_space<vmem>>, vector<16x128xbf16>,
    } else {
    }
    return
  }
  func.func @transform_0(%arg0: i32, %arg1: i32, %arg2: i32) -> (i32, i32) {
    %c0_i32 = arith.constant 0 : i32
    return %arg0, %arg2 : i32, i32
  }
  func.func @transform_1(%arg0: i32, %arg1: i32, %arg2: i32) -> (i32, i32) {
    %c0_i32 = arith.constant 0 : i32
    return %arg2, %arg1 : i32, i32
  }
  func.func @transform_2(%arg0: i32, %arg1: i32, %arg2: i32) -> (i32, i32) {
    %c0_i32 = arith.constant 0 : i32
    %c0_i32_0 = arith.constant 0 : i32
    return %c0_i32, %arg1 : i32, i32
  }
  func.func @transform_3(%arg0: i32, %arg1: i32, %arg2: i32) -> (i32, i32) {
    %c0_i32 = arith.constant 0 : i32
    return %arg0, %arg1 : i32, i32
  }
}

module attributes {stable_mosaic.version = 11 : i64} {
  func.func @_linear_kernel(%arg0: i32, %arg1: i32, %arg2: i32, %arg3: memref<24x128xbf16, #tpu.memory_space<vmem>>, %arg4: memref<128x128xbf16, #tpu.memory_space<vmem>>, %arg5: memref<1x128xf32, #tpu.memory_space<vmem>>, %arg6: memref<24x128xbf16, #tpu.memory_space<vmem>>, %arg7: memref<24x128xf32, #tpu.memory_space<vmem>>) attributes {dimension_semantics = [#tpu.dimension_semantics<parallel>, #tpu.dimension_semantics<parallel>, #tpu.dimension_semantics<arbitrary>], iteration_bounds = array<i64: 1, 1, 1>, scalar_prefetch = 0 : i64, scratch_operands = 1 : i64, tpu.core_type = #tpu.core_type<tc>, window_params = [{transform_indices = @transform_0, window_bounds = array<i64: 24, 128>}, {transform_indices = @transform_1, window_bounds = array<i64: 128, 128>}, {transform_indices = @transform_2, window_bounds = array<i64: 1, 128>}, {transform_indices = @transform_3, window_bounds = array<i64: 24, 128>}]} {
    %c0_i32 = arith.constant 0 : i32
    %0 = arith.cmpi eq, %arg2, %c0_i32 : i32
    %1 = arith.extui %0 : i1 to i32
    %c0_i32_0 = arith.constant 0 : i32
    %2 = arith.cmpi ne, %1, %c0_i32_0 : i32
    scf.if %2 {
      %cst_10 = arith.constant 0.000000e+00 : f32
      %12 = vector.broadcast %cst_10 : f32 to vector<24x128xf32>
      %c0_11 = arith.constant 0 : index
      %c0_12 = arith.constant 0 : index
      %13 = vector.load %arg7[%c0_11, %c0_12] : memref<24x128xf32, #tpu.memory_space<vmem>>, vector<24x128xf32>
      tpu.vector_store %arg7[%c0_11, %c0_12], %12 {strides = array<i32>} : memref<24x128xf32, #tpu.memory_space<vmem>>, vector<24x128xf32>,
    } else {
    }
    %c0 = arith.constant 0 : index
    %c0_1 = arith.constant 0 : index
    %3 = vector.load %arg7[%c0, %c0_1] : memref<24x128xf32, #tpu.memory_space<vmem>>, vector<24x128xf32>
    %c0_2 = arith.constant 0 : index
    %c0_3 = arith.constant 0 : index
    %4 = vector.load %arg3[%c0_2, %c0_3] : memref<24x128xbf16, #tpu.memory_space<vmem>>, vector<24x128xbf16>
    %c0_4 = arith.constant 0 : index
    %c0_5 = arith.constant 0 : index
    %5 = vector.load %arg4[%c0_4, %c0_5] : memref<128x128xbf16, #tpu.memory_space<vmem>>, vector<128x128xbf16>
    %cst = arith.constant dense<0.000000e+00> : vector<24x128xf32>
    %6 = tpu.matmul %4, %5, %cst {dimension_numbers = #tpu.dot_dimension_numbers<[1], [0], [0], [1], [0, 0, 1, 1], [], []>} : vector<24x128xbf16>, vector<128x128xbf16>, vector<24x128xf32> -> vector<24x128xf32>
    %7 = arith.addf %3, %6 : vector<24x128xf32>
    %c0_6 = arith.constant 0 : index
    %c0_7 = arith.constant 0 : index
    %8 = vector.load %arg7[%c0_6, %c0_7] : memref<24x128xf32, #tpu.memory_space<vmem>>, vector<24x128xf32>
    tpu.vector_store %arg7[%c0_6, %c0_7], %7 {strides = array<i32>} : memref<24x128xf32, #tpu.memory_space<vmem>>, vector<24x128xf32>,
    %c0_i32_8 = arith.constant 0 : i32
    %9 = arith.cmpi eq, %arg2, %c0_i32_8 : i32
    %10 = arith.extui %9 : i1 to i32
    %c0_i32_9 = arith.constant 0 : i32
    %11 = arith.cmpi ne, %10, %c0_i32_9 : i32
    scf.if %11 {
      %c0_10 = arith.constant 0 : index
      %c0_11 = arith.constant 0 : index
      %12 = vector.load %arg7[%c0_10, %c0_11] : memref<24x128xf32, #tpu.memory_space<vmem>>, vector<24x128xf32>
      %c0_12 = arith.constant 0 : index
      %c0_13 = arith.constant 0 : index
      %13 = vector.load %arg5[%c0_12, %c0_13] : memref<1x128xf32, #tpu.memory_space<vmem>>, vector<1x128xf32>
      %14 = vector.broadcast %13 : vector<1x128xf32> to vector<24x128xf32>
      %15 = arith.addf %12, %14 : vector<24x128xf32>
      %16 = arith.truncf %15 : vector<24x128xf32> to vector<24x128xbf16>
      %c0_14 = arith.constant 0 : index
      %c0_15 = arith.constant 0 : index
      %17 = vector.load %arg6[%c0_14, %c0_15] : memref<24x128xbf16, #tpu.memory_space<vmem>>, vector<24x128xbf16>
      tpu.vector_store %arg6[%c0_14, %c0_15], %16 {strides = array<i32>} : memref<24x128xbf16, #tpu.memory_space<vmem>>, vector<24x128xbf16>,
    } else {
    }
    return
  }
  func.func @transform_0(%arg0: i32, %arg1: i32, %arg2: i32) -> (i32, i32) {
    %c0_i32 = arith.constant 0 : i32
    return %arg0, %arg2 : i32, i32
  }
  func.func @transform_1(%arg0: i32, %arg1: i32, %arg2: i32) -> (i32, i32) {
    %c0_i32 = arith.constant 0 : i32
    return %arg2, %arg1 : i32, i32
  }
  func.func @transform_2(%arg0: i32, %arg1: i32, %arg2: i32) -> (i32, i32) {
    %c0_i32 = arith.constant 0 : i32
    %c0_i32_0 = arith.constant 0 : i32
    return %c0_i32, %arg1 : i32, i32
  }
  func.func @transform_3(%arg0: i32, %arg1: i32, %arg2: i32) -> (i32, i32) {
    %c0_i32 = arith.constant 0 : i32
    return %arg0, %arg1 : i32, i32
  }
}

module attributes {stable_mosaic.version = 11 : i64} {
  func.func @_sdpa_kernel_nobias(%arg0: i32, %arg1: memref<1x8x32xbf16, #tpu.memory_space<vmem>>, %arg2: memref<1x12x32xbf16, #tpu.memory_space<vmem>>, %arg3: memref<1x12x32xbf16, #tpu.memory_space<vmem>>, %arg4: memref<1x8x32xbf16, #tpu.memory_space<vmem>>) attributes {dimension_semantics = [#tpu.dimension_semantics<parallel>], iteration_bounds = array<i64: 2>, scalar_prefetch = 0 : i64, scratch_operands = 0 : i64, tpu.core_type = #tpu.core_type<tc>, window_params = [{transform_indices = @transform_0, window_bounds = array<i64: 1, 8, 32>}, {transform_indices = @transform_1, window_bounds = array<i64: 1, 12, 32>}, {transform_indices = @transform_2, window_bounds = array<i64: 1, 12, 32>}, {transform_indices = @transform_3, window_bounds = array<i64: 1, 8, 32>}]} {
    %c0 = arith.constant 0 : index
    %c0_0 = arith.constant 0 : index
    %c0_1 = arith.constant 0 : index
    %0 = vector.load %arg1[%c0, %c0_0, %c0_1] : memref<1x8x32xbf16, #tpu.memory_space<vmem>>, vector<1x8x32xbf16>
    %1 = vector.shape_cast %0 : vector<1x8x32xbf16> to vector<8x32xbf16>
    %c0_2 = arith.constant 0 : index
    %c0_3 = arith.constant 0 : index
    %c0_4 = arith.constant 0 : index
    %2 = vector.load %arg2[%c0_2, %c0_3, %c0_4] : memref<1x12x32xbf16, #tpu.memory_space<vmem>>, vector<1x12x32xbf16>
    %3 = vector.shape_cast %2 : vector<1x12x32xbf16> to vector<12x32xbf16>
    %c0_5 = arith.constant 0 : index
    %c0_6 = arith.constant 0 : index
    %c0_7 = arith.constant 0 : index
    %4 = vector.load %arg3[%c0_5, %c0_6, %c0_7] : memref<1x12x32xbf16, #tpu.memory_space<vmem>>, vector<1x12x32xbf16>
    %5 = vector.shape_cast %4 : vector<1x12x32xbf16> to vector<12x32xbf16>
    %6 = vector.extract_strided_slice %1 {offsets = [0, 0], sizes = [8, 8], strides = [1, 1]} : vector<8x32xbf16> to vector<8x8xbf16>
    %7 = arith.extf %6 : vector<8x8xbf16> to vector<8x8xf32>
    %cst = arith.constant 0.176776692 : f32
    %8 = vector.broadcast %cst : f32 to vector<8x8xf32>
    %9 = arith.mulf %7, %8 : vector<8x8xf32>
    %10 = arith.truncf %9 : vector<8x8xf32> to vector<8x8xbf16>
    %11 = vector.extract_strided_slice %3 {offsets = [0, 0], sizes = [12, 8], strides = [1, 1]} : vector<12x32xbf16> to vector<12x8xbf16>
    %12 = tpu.transpose %11, [1, 0] : vector<12x8xbf16> -> vector<8x12xbf16>
    %cst_8 = arith.constant dense<0.000000e+00> : vector<8x12xf32>
    %13 = tpu.matmul %10, %12, %cst_8 {dimension_numbers = #tpu.dot_dimension_numbers<[1], [0], [0], [1], [0, 0, 1, 1], [], []>} : vector<8x8xbf16>, vector<8x12xbf16>, vector<8x12xf32> -> vector<8x12xf32>
    %cst_9 = arith.constant dense<0xFF800000> : vector<8xf32>
    %14 = vector.multi_reduction <maximumf>, %13, %cst_9 [1] : vector<8x12xf32> to vector<8xf32>
    %15 = vector.shape_cast %14 : vector<8xf32> to vector<8x1xf32>
    %16 = vector.broadcast %15 : vector<8x1xf32> to vector<8x12xf32>
    %17 = arith.subf %13, %16 : vector<8x12xf32>
    %18 = math.exp %17 : vector<8x12xf32>
    %cst_10 = arith.constant dense<0.000000e+00> : vector<8xf32>
    %19 = vector.multi_reduction <add>, %18, %cst_10 [1] : vector<8x12xf32> to vector<8xf32>
    %20 = vector.shape_cast %19 : vector<8xf32> to vector<8x1xf32>
    %21 = tpu.reciprocal %20 {approx = true} : vector<8x1xf32> -> vector<8x1xf32>
    %22 = vector.broadcast %21 : vector<8x1xf32> to vector<8x12xf32>
    %23 = arith.mulf %18, %22 : vector<8x12xf32>
    %24 = arith.truncf %23 : vector<8x12xf32> to vector<8x12xbf16>
    %25 = vector.extract_strided_slice %5 {offsets = [0, 0], sizes = [12, 8], strides = [1, 1]} : vector<12x32xbf16> to vector<12x8xbf16>
    %cst_11 = arith.constant dense<0.000000e+00> : vector<8x8xf32>
    %26 = tpu.matmul %24, %25, %cst_11 {dimension_numbers = #tpu.dot_dimension_numbers<[1], [0], [0], [1], [0, 0, 1, 1], [], []>} : vector<8x12xbf16>, vector<12x8xbf16>, vector<8x8xf32> -> vector<8x8xf32>
    %27 = vector.extract_strided_slice %1 {offsets = [0, 8], sizes = [8, 8], strides = [1, 1]} : vector<8x32xbf16> to vector<8x8xbf16>
    %28 = arith.extf %27 : vector<8x8xbf16> to vector<8x8xf32>
    %cst_12 = arith.constant 0.176776692 : f32
    %29 = vector.broadcast %cst_12 : f32 to vector<8x8xf32>
    %30 = arith.mulf %28, %29 : vector<8x8xf32>
    %31 = arith.truncf %30 : vector<8x8xf32> to vector<8x8xbf16>
    %32 = vector.extract_strided_slice %3 {offsets = [0, 8], sizes = [12, 8], strides = [1, 1]} : vector<12x32xbf16> to vector<12x8xbf16>
    %33 = tpu.transpose %32, [1, 0] : vector<12x8xbf16> -> vector<8x12xbf16>
    %cst_13 = arith.constant dense<0.000000e+00> : vector<8x12xf32>
    %34 = tpu.matmul %31, %33, %cst_13 {dimension_numbers = #tpu.dot_dimension_numbers<[1], [0], [0], [1], [0, 0, 1, 1], [], []>} : vector<8x8xbf16>, vector<8x12xbf16>, vector<8x12xf32> -> vector<8x12xf32>
    %cst_14 = arith.constant dense<0xFF800000> : vector<8xf32>
    %35 = vector.multi_reduction <maximumf>, %34, %cst_14 [1] : vector<8x12xf32> to vector<8xf32>
    %36 = vector.shape_cast %35 : vector<8xf32> to vector<8x1xf32>
    %37 = vector.broadcast %36 : vector<8x1xf32> to vector<8x12xf32>
    %38 = arith.subf %34, %37 : vector<8x12xf32>
    %39 = math.exp %38 : vector<8x12xf32>
    %cst_15 = arith.constant dense<0.000000e+00> : vector<8xf32>
    %40 = vector.multi_reduction <add>, %39, %cst_15 [1] : vector<8x12xf32> to vector<8xf32>
    %41 = vector.shape_cast %40 : vector<8xf32> to vector<8x1xf32>
    %42 = tpu.reciprocal %41 {approx = true} : vector<8x1xf32> -> vector<8x1xf32>
    %43 = vector.broadcast %42 : vector<8x1xf32> to vector<8x12xf32>
    %44 = arith.mulf %39, %43 : vector<8x12xf32>
    %45 = arith.truncf %44 : vector<8x12xf32> to vector<8x12xbf16>
    %46 = vector.extract_strided_slice %5 {offsets = [0, 8], sizes = [12, 8], strides = [1, 1]} : vector<12x32xbf16> to vector<12x8xbf16>
    %cst_16 = arith.constant dense<0.000000e+00> : vector<8x8xf32>
    %47 = tpu.matmul %45, %46, %cst_16 {dimension_numbers = #tpu.dot_dimension_numbers<[1], [0], [0], [1], [0, 0, 1, 1], [], []>} : vector<8x12xbf16>, vector<12x8xbf16>, vector<8x8xf32> -> vector<8x8xf32>
    %48 = vector.extract_strided_slice %1 {offsets = [0, 16], sizes = [8, 8], strides = [1, 1]} : vector<8x32xbf16> to vector<8x8xbf16>
    %49 = arith.extf %48 : vector<8x8xbf16> to vector<8x8xf32>
    %cst_17 = arith.constant 0.176776692 : f32
    %50 = vector.broadcast %cst_17 : f32 to vector<8x8xf32>
    %51 = arith.mulf %49, %50 : vector<8x8xf32>
    %52 = arith.truncf %51 : vector<8x8xf32> to vector<8x8xbf16>
    %53 = vector.extract_strided_slice %3 {offsets = [0, 16], sizes = [12, 8], strides = [1, 1]} : vector<12x32xbf16> to vector<12x8xbf16>
    %54 = tpu.transpose %53, [1, 0] : vector<12x8xbf16> -> vector<8x12xbf16>
    %cst_18 = arith.constant dense<0.000000e+00> : vector<8x12xf32>
    %55 = tpu.matmul %52, %54, %cst_18 {dimension_numbers = #tpu.dot_dimension_numbers<[1], [0], [0], [1], [0, 0, 1, 1], [], []>} : vector<8x8xbf16>, vector<8x12xbf16>, vector<8x12xf32> -> vector<8x12xf32>
    %cst_19 = arith.constant dense<0xFF800000> : vector<8xf32>
    %56 = vector.multi_reduction <maximumf>, %55, %cst_19 [1] : vector<8x12xf32> to vector<8xf32>
    %57 = vector.shape_cast %56 : vector<8xf32> to vector<8x1xf32>
    %58 = vector.broadcast %57 : vector<8x1xf32> to vector<8x12xf32>
    %59 = arith.subf %55, %58 : vector<8x12xf32>
    %60 = math.exp %59 : vector<8x12xf32>
    %cst_20 = arith.constant dense<0.000000e+00> : vector<8xf32>
    %61 = vector.multi_reduction <add>, %60, %cst_20 [1] : vector<8x12xf32> to vector<8xf32>
    %62 = vector.shape_cast %61 : vector<8xf32> to vector<8x1xf32>
    %63 = tpu.reciprocal %62 {approx = true} : vector<8x1xf32> -> vector<8x1xf32>
    %64 = vector.broadcast %63 : vector<8x1xf32> to vector<8x12xf32>
    %65 = arith.mulf %60, %64 : vector<8x12xf32>
    %66 = arith.truncf %65 : vector<8x12xf32> to vector<8x12xbf16>
    %67 = vector.extract_strided_slice %5 {offsets = [0, 16], sizes = [12, 8], strides = [1, 1]} : vector<12x32xbf16> to vector<12x8xbf16>
    %cst_21 = arith.constant dense<0.000000e+00> : vector<8x8xf32>
    %68 = tpu.matmul %66, %67, %cst_21 {dimension_numbers = #tpu.dot_dimension_numbers<[1], [0], [0], [1], [0, 0, 1, 1], [], []>} : vector<8x12xbf16>, vector<12x8xbf16>, vector<8x8xf32> -> vector<8x8xf32>
    %69 = vector.extract_strided_slice %1 {offsets = [0, 24], sizes = [8, 8], strides = [1, 1]} : vector<8x32xbf16> to vector<8x8xbf16>
    %70 = arith.extf %69 : vector<8x8xbf16> to vector<8x8xf32>
    %cst_22 = arith.constant 0.176776692 : f32
    %71 = vector.broadcast %cst_22 : f32 to vector<8x8xf32>
    %72 = arith.mulf %70, %71 : vector<8x8xf32>
    %73 = arith.truncf %72 : vector<8x8xf32> to vector<8x8xbf16>
    %74 = vector.extract_strided_slice %3 {offsets = [0, 24], sizes = [12, 8], strides = [1, 1]} : vector<12x32xbf16> to vector<12x8xbf16>
    %75 = tpu.transpose %74, [1, 0] : vector<12x8xbf16> -> vector<8x12xbf16>
    %cst_23 = arith.constant dense<0.000000e+00> : vector<8x12xf32>
    %76 = tpu.matmul %73, %75, %cst_23 {dimension_numbers = #tpu.dot_dimension_numbers<[1], [0], [0], [1], [0, 0, 1, 1], [], []>} : vector<8x8xbf16>, vector<8x12xbf16>, vector<8x12xf32> -> vector<8x12xf32>
    %cst_24 = arith.constant dense<0xFF800000> : vector<8xf32>
    %77 = vector.multi_reduction <maximumf>, %76, %cst_24 [1] : vector<8x12xf32> to vector<8xf32>
    %78 = vector.shape_cast %77 : vector<8xf32> to vector<8x1xf32>
    %79 = vector.broadcast %78 : vector<8x1xf32> to vector<8x12xf32>
    %80 = arith.subf %76, %79 : vector<8x12xf32>
    %81 = math.exp %80 : vector<8x12xf32>
    %cst_25 = arith.constant dense<0.000000e+00> : vector<8xf32>
    %82 = vector.multi_reduction <add>, %81, %cst_25 [1] : vector<8x12xf32> to vector<8xf32>
    %83 = vector.shape_cast %82 : vector<8xf32> to vector<8x1xf32>
    %84 = tpu.reciprocal %83 {approx = true} : vector<8x1xf32> -> vector<8x1xf32>
    %85 = vector.broadcast %84 : vector<8x1xf32> to vector<8x12xf32>
    %86 = arith.mulf %81, %85 : vector<8x12xf32>
    %87 = arith.truncf %86 : vector<8x12xf32> to vector<8x12xbf16>
    %88 = vector.extract_strided_slice %5 {offsets = [0, 24], sizes = [12, 8], strides = [1, 1]} : vector<12x32xbf16> to vector<12x8xbf16>
    %cst_26 = arith.constant dense<0.000000e+00> : vector<8x8xf32>
    %89 = tpu.matmul %87, %88, %cst_26 {dimension_numbers = #tpu.dot_dimension_numbers<[1], [0], [0], [1], [0, 0, 1, 1], [], []>} : vector<8x12xbf16>, vector<12x8xbf16>, vector<8x8xf32> -> vector<8x8xf32>
    %90 = tpu.concatenate %26, %47, %68, %89 in 1 : vector<8x8xf32>, vector<8x8xf32>, vector<8x8xf32>, vector<8x8xf32> -> vector<8x32xf32>
    %91 = arith.truncf %90 : vector<8x32xf32> to vector<8x32xbf16>
    %c0_27 = arith.constant 0 : index
    %c0_28 = arith.constant 0 : index
    %c0_29 = arith.constant 0 : index
    %92 = vector.load %arg4[%c0_27, %c0_28, %c0_29] : memref<1x8x32xbf16, #tpu.memory_space<vmem>>, vector<1x8x32xbf16>
    %93 = vector.shape_cast %92 : vector<1x8x32xbf16> to vector<8x32xbf16>
    %94 = vector.shape_cast %91 : vector<8x32xbf16> to vector<1x8x32xbf16>
    tpu.vector_store %arg4[%c0_27, %c0_28, %c0_29], %94 {strides = array<i32>} : memref<1x8x32xbf16, #tpu.memory_space<vmem>>, vector<1x8x32xbf16>,
    return
  }
  func.func @transform_0(%arg0: i32) -> (i32, i32, i32) {
    %c0_i32 = arith.constant 0 : i32
    %c0_i32_0 = arith.constant 0 : i32
    %c0_i32_1 = arith.constant 0 : i32
    return %arg0, %c0_i32, %c0_i32_0 : i32, i32, i32
  }
  func.func @transform_1(%arg0: i32) -> (i32, i32, i32) {
    %c0_i32 = arith.constant 0 : i32
    %c0_i32_0 = arith.constant 0 : i32
    %c0_i32_1 = arith.constant 0 : i32
    return %arg0, %c0_i32, %c0_i32_0 : i32, i32, i32
  }
  func.func @transform_2(%arg0: i32) -> (i32, i32, i32) {
    %c0_i32 = arith.constant 0 : i32
    %c0_i32_0 = arith.constant 0 : i32
    %c0_i32_1 = arith.constant 0 : i32
    return %arg0, %c0_i32, %c0_i32_0 : i32, i32, i32
  }
  func.func @transform_3(%arg0: i32) -> (i32, i32, i32) {
    %c0_i32 = arith.constant 0 : i32
    %c0_i32_0 = arith.constant 0 : i32
    %c0_i32_1 = arith.constant 0 : i32
    return %arg0, %c0_i32, %c0_i32_0 : i32, i32, i32
  }
}

module attributes {stable_mosaic.version = 11 : i64} {
  func.func @_linear_kernel(%arg0: i32, %arg1: i32, %arg2: i32, %arg3: memref<16x128xbf16, #tpu.memory_space<vmem>>, %arg4: memref<128x128xbf16, #tpu.memory_space<vmem>>, %arg5: memref<1x128xf32, #tpu.memory_space<vmem>>, %arg6: memref<16x128xf32, #tpu.memory_space<vmem>>, %arg7: memref<16x128xf32, #tpu.memory_space<vmem>>) attributes {dimension_semantics = [#tpu.dimension_semantics<parallel>, #tpu.dimension_semantics<parallel>, #tpu.dimension_semantics<arbitrary>], iteration_bounds = array<i64: 1, 1, 1>, scalar_prefetch = 0 : i64, scratch_operands = 1 : i64, tpu.core_type = #tpu.core_type<tc>, window_params = [{transform_indices = @transform_0, window_bounds = array<i64: 16, 128>}, {transform_indices = @transform_1, window_bounds = array<i64: 128, 128>}, {transform_indices = @transform_2, window_bounds = array<i64: 1, 128>}, {transform_indices = @transform_3, window_bounds = array<i64: 16, 128>}]} {
    %c0_i32 = arith.constant 0 : i32
    %0 = arith.cmpi eq, %arg2, %c0_i32 : i32
    %1 = arith.extui %0 : i1 to i32
    %c0_i32_0 = arith.constant 0 : i32
    %2 = arith.cmpi ne, %1, %c0_i32_0 : i32
    scf.if %2 {
      %cst_10 = arith.constant 0.000000e+00 : f32
      %12 = vector.broadcast %cst_10 : f32 to vector<16x128xf32>
      %c0_11 = arith.constant 0 : index
      %c0_12 = arith.constant 0 : index
      %13 = vector.load %arg7[%c0_11, %c0_12] : memref<16x128xf32, #tpu.memory_space<vmem>>, vector<16x128xf32>
      tpu.vector_store %arg7[%c0_11, %c0_12], %12 {strides = array<i32>} : memref<16x128xf32, #tpu.memory_space<vmem>>, vector<16x128xf32>,
    } else {
    }
    %c0 = arith.constant 0 : index
    %c0_1 = arith.constant 0 : index
    %3 = vector.load %arg7[%c0, %c0_1] : memref<16x128xf32, #tpu.memory_space<vmem>>, vector<16x128xf32>
    %c0_2 = arith.constant 0 : index
    %c0_3 = arith.constant 0 : index
    %4 = vector.load %arg3[%c0_2, %c0_3] : memref<16x128xbf16, #tpu.memory_space<vmem>>, vector<16x128xbf16>
    %c0_4 = arith.constant 0 : index
    %c0_5 = arith.constant 0 : index
    %5 = vector.load %arg4[%c0_4, %c0_5] : memref<128x128xbf16, #tpu.memory_space<vmem>>, vector<128x128xbf16>
    %cst = arith.constant dense<0.000000e+00> : vector<16x128xf32>
    %6 = tpu.matmul %4, %5, %cst {dimension_numbers = #tpu.dot_dimension_numbers<[1], [0], [0], [1], [0, 0, 1, 1], [], []>} : vector<16x128xbf16>, vector<128x128xbf16>, vector<16x128xf32> -> vector<16x128xf32>
    %7 = arith.addf %3, %6 : vector<16x128xf32>
    %c0_6 = arith.constant 0 : index
    %c0_7 = arith.constant 0 : index
    %8 = vector.load %arg7[%c0_6, %c0_7] : memref<16x128xf32, #tpu.memory_space<vmem>>, vector<16x128xf32>
    tpu.vector_store %arg7[%c0_6, %c0_7], %7 {strides = array<i32>} : memref<16x128xf32, #tpu.memory_space<vmem>>, vector<16x128xf32>,
    %c0_i32_8 = arith.constant 0 : i32
    %9 = arith.cmpi eq, %arg2, %c0_i32_8 : i32
    %10 = arith.extui %9 : i1 to i32
    %c0_i32_9 = arith.constant 0 : i32
    %11 = arith.cmpi ne, %10, %c0_i32_9 : i32
    scf.if %11 {
      %c0_10 = arith.constant 0 : index
      %c0_11 = arith.constant 0 : index
      %12 = vector.load %arg7[%c0_10, %c0_11] : memref<16x128xf32, #tpu.memory_space<vmem>>, vector<16x128xf32>
      %c0_12 = arith.constant 0 : index
      %c0_13 = arith.constant 0 : index
      %13 = vector.load %arg5[%c0_12, %c0_13] : memref<1x128xf32, #tpu.memory_space<vmem>>, vector<1x128xf32>
      %14 = vector.broadcast %13 : vector<1x128xf32> to vector<16x128xf32>
      %15 = arith.addf %12, %14 : vector<16x128xf32>
      %cst_14 = arith.constant 0.000000e+00 : f32
      %16 = vector.broadcast %cst_14 : f32 to vector<16x128xf32>
      %17 = arith.maximumf %15, %16 : vector<16x128xf32>
      %c0_15 = arith.constant 0 : index
      %c0_16 = arith.constant 0 : index
      %18 = vector.load %arg6[%c0_15, %c0_16] : memref<16x128xf32, #tpu.memory_space<vmem>>, vector<16x128xf32>
      tpu.vector_store %arg6[%c0_15, %c0_16], %17 {strides = array<i32>} : memref<16x128xf32, #tpu.memory_space<vmem>>, vector<16x128xf32>,
    } else {
    }
    return
  }
  func.func @transform_0(%arg0: i32, %arg1: i32, %arg2: i32) -> (i32, i32) {
    %c0_i32 = arith.constant 0 : i32
    return %arg0, %arg2 : i32, i32
  }
  func.func @transform_1(%arg0: i32, %arg1: i32, %arg2: i32) -> (i32, i32) {
    %c0_i32 = arith.constant 0 : i32
    return %arg2, %arg1 : i32, i32
  }
  func.func @transform_2(%arg0: i32, %arg1: i32, %arg2: i32) -> (i32, i32) {
    %c0_i32 = arith.constant 0 : i32
    %c0_i32_0 = arith.constant 0 : i32
    return %c0_i32, %arg1 : i32, i32
  }
  func.func @transform_3(%arg0: i32, %arg1: i32, %arg2: i32) -> (i32, i32) {
    %c0_i32 = arith.constant 0 : i32
    return %arg0, %arg1 : i32, i32
  }
}

module attributes {stable_mosaic.version = 11 : i64} {
  func.func @_linear_kernel(%arg0: i32, %arg1: i32, %arg2: i32, %arg3: memref<16x128xbf16, #tpu.memory_space<vmem>>, %arg4: memref<128x128xbf16, #tpu.memory_space<vmem>>, %arg5: memref<1x128xf32, #tpu.memory_space<vmem>>, %arg6: memref<16x128xf32, #tpu.memory_space<vmem>>, %arg7: memref<16x128xf32, #tpu.memory_space<vmem>>) attributes {dimension_semantics = [#tpu.dimension_semantics<parallel>, #tpu.dimension_semantics<parallel>, #tpu.dimension_semantics<arbitrary>], iteration_bounds = array<i64: 1, 1, 1>, scalar_prefetch = 0 : i64, scratch_operands = 1 : i64, tpu.core_type = #tpu.core_type<tc>, window_params = [{transform_indices = @transform_0, window_bounds = array<i64: 16, 128>}, {transform_indices = @transform_1, window_bounds = array<i64: 128, 128>}, {transform_indices = @transform_2, window_bounds = array<i64: 1, 128>}, {transform_indices = @transform_3, window_bounds = array<i64: 16, 128>}]} {
    %c0_i32 = arith.constant 0 : i32
    %0 = arith.cmpi eq, %arg2, %c0_i32 : i32
    %1 = arith.extui %0 : i1 to i32
    %c0_i32_0 = arith.constant 0 : i32
    %2 = arith.cmpi ne, %1, %c0_i32_0 : i32
    scf.if %2 {
      %cst_10 = arith.constant 0.000000e+00 : f32
      %12 = vector.broadcast %cst_10 : f32 to vector<16x128xf32>
      %c0_11 = arith.constant 0 : index
      %c0_12 = arith.constant 0 : index
      %13 = vector.load %arg7[%c0_11, %c0_12] : memref<16x128xf32, #tpu.memory_space<vmem>>, vector<16x128xf32>
      tpu.vector_store %arg7[%c0_11, %c0_12], %12 {strides = array<i32>} : memref<16x128xf32, #tpu.memory_space<vmem>>, vector<16x128xf32>,
    } else {
    }
    %c0 = arith.constant 0 : index
    %c0_1 = arith.constant 0 : index
    %3 = vector.load %arg7[%c0, %c0_1] : memref<16x128xf32, #tpu.memory_space<vmem>>, vector<16x128xf32>
    %c0_2 = arith.constant 0 : index
    %c0_3 = arith.constant 0 : index
    %4 = vector.load %arg3[%c0_2, %c0_3] : memref<16x128xbf16, #tpu.memory_space<vmem>>, vector<16x128xbf16>
    %c0_4 = arith.constant 0 : index
    %c0_5 = arith.constant 0 : index
    %5 = vector.load %arg4[%c0_4, %c0_5] : memref<128x128xbf16, #tpu.memory_space<vmem>>, vector<128x128xbf16>
    %cst = arith.constant dense<0.000000e+00> : vector<16x128xf32>
    %6 = tpu.matmul %4, %5, %cst {dimension_numbers = #tpu.dot_dimension_numbers<[1], [0], [0], [1], [0, 0, 1, 1], [], []>} : vector<16x128xbf16>, vector<128x128xbf16>, vector<16x128xf32> -> vector<16x128xf32>
    %7 = arith.addf %3, %6 : vector<16x128xf32>
    %c0_6 = arith.constant 0 : index
    %c0_7 = arith.constant 0 : index
    %8 = vector.load %arg7[%c0_6, %c0_7] : memref<16x128xf32, #tpu.memory_space<vmem>>, vector<16x128xf32>
    tpu.vector_store %arg7[%c0_6, %c0_7], %7 {strides = array<i32>} : memref<16x128xf32, #tpu.memory_space<vmem>>, vector<16x128xf32>,
    %c0_i32_8 = arith.constant 0 : i32
    %9 = arith.cmpi eq, %arg2, %c0_i32_8 : i32
    %10 = arith.extui %9 : i1 to i32
    %c0_i32_9 = arith.constant 0 : i32
    %11 = arith.cmpi ne, %10, %c0_i32_9 : i32
    scf.if %11 {
      %c0_10 = arith.constant 0 : index
      %c0_11 = arith.constant 0 : index
      %12 = vector.load %arg7[%c0_10, %c0_11] : memref<16x128xf32, #tpu.memory_space<vmem>>, vector<16x128xf32>
      %c0_12 = arith.constant 0 : index
      %c0_13 = arith.constant 0 : index
      %13 = vector.load %arg5[%c0_12, %c0_13] : memref<1x128xf32, #tpu.memory_space<vmem>>, vector<1x128xf32>
      %14 = vector.broadcast %13 : vector<1x128xf32> to vector<16x128xf32>
      %15 = arith.addf %12, %14 : vector<16x128xf32>
      %c0_14 = arith.constant 0 : index
      %c0_15 = arith.constant 0 : index
      %16 = vector.load %arg6[%c0_14, %c0_15] : memref<16x128xf32, #tpu.memory_space<vmem>>, vector<16x128xf32>
      tpu.vector_store %arg6[%c0_14, %c0_15], %15 {strides = array<i32>} : memref<16x128xf32, #tpu.memory_space<vmem>>, vector<16x128xf32>,
    } else {
    }
    return
  }
  func.func @transform_0(%arg0: i32, %arg1: i32, %arg2: i32) -> (i32, i32) {
    %c0_i32 = arith.constant 0 : i32
    return %arg0, %arg2 : i32, i32
  }
  func.func @transform_1(%arg0: i32, %arg1: i32, %arg2: i32) -> (i32, i32) {
    %c0_i32 = arith.constant 0 : i32
    return %arg2, %arg1 : i32, i32
  }
  func.func @transform_2(%arg0: i32, %arg1: i32, %arg2: i32) -> (i32, i32) {
    %c0_i32 = arith.constant 0 : i32
    %c0_i32_0 = arith.constant 0 : i32
    return %c0_i32, %arg1 : i32, i32
  }
  func.func @transform_3(%arg0: i32, %arg1: i32, %arg2: i32) -> (i32, i32) {
    %c0_i32 = arith.constant 0 : i32
    return %arg0, %arg1 : i32, i32
  }
}

</mosaic_0001>

<llo_original>
// kernel: transformer_decoder_forward.25
$region0: #{transformer_decoder_forward.25}
  #allocation0 [shape = 'u32[]', space=smem, size = 0x4, offset = 0x4, fixed_abs, tag = 'smem constant byte address 0x4 - core index']
  #allocation1 [shape = 'u32[144,128]{1,0:T(1,128)}', space=vmem, size = 0x12000, scoped, tag = 'internal scratch']
  #allocation2 [shape = 'f32[16,128]{1,0:T(8,128)}', space=vmem, size = 0x2000, scoped, tag = 'scratch operand']
  %s0 = inlined_call_operand.vmem [shape: bf16[16,128], index: 0, kind: input, shape index: {}]
  %s1 = inlined_call_operand.vmem [shape: bf16[128,128], index: 1, kind: input, shape index: {}]
  %s2 = inlined_call_operand.vmem [shape: f32[1,128], index: 2, kind: input, shape index: {}]
  %s3 = inlined_call_operand.vmem [shape: bf16[16,128], index: 3, kind: output, shape index: {}]
  %s4 = sld [smem:[#allocation0]]
  $region30: #{transformer_decoder_forward.25} parent=0
    _
  %s6 = ssub.s32 1, %s4
  %s7 = scalar_select 0, %s6, %s4
  // Predicated region
  $region2: #{transformer_decoder_forward.25} parent=0 // pred_check
    _
  $region3: #{transformer_decoder_forward.25} parent=0 // pred_check_branch
    %9 = sbr.rel (0) target = $region5
  $region4: #{transformer_decoder_forward.25} parent=0 // pred_region
    _
  $region5: #{transformer_decoder_forward.25} parent=0 // pred_fallthru
    _
  // Predicated region
  $region6: #{transformer_decoder_forward.25} parent=0 // pred_check
    _
  $region7: #{transformer_decoder_forward.25} parent=0 // pred_check_branch
    %11 = sbr.rel (0) target = $region9
  $region8: #{transformer_decoder_forward.25} parent=0 // pred_region
    _
  $region9: #{transformer_decoder_forward.25} parent=0 // pred_fallthru
    _
  // Predicated region
  $region10: #{transformer_decoder_forward.25} parent=0 // pred_check
    _
  $region11: #{transformer_decoder_forward.25} parent=0 // pred_check_branch
    %13 = sbr.rel (0) target = $region13
  $region12: #{transformer_decoder_forward.25} parent=0 // pred_region
    _
  $region13: #{transformer_decoder_forward.25} parent=0 // pred_fallthru
    _
  %p15 = scmp.eq.s32.totalorder 0, 0
  // Predicated region
  $region14: #{transformer_decoder_forward.25} parent=0 // pred_check
    %p16 = pneg %p15
  $region15: #{transformer_decoder_forward.25} parent=0 // pred_check_branch
    %18 = sbr.rel (%p16) target = $region17
  $region16: #{transformer_decoder_forward.25} parent=0 // pred_region
    %19 = vst [vmem:[#allocation2] sm:$0xff] 0.0
    %20 = vst [vmem:[#allocation2 + $0x8] sm:$0xff] 0.0
  $region17: #{transformer_decoder_forward.25} parent=0 // pred_fallthru
    _
  %v21 = vld [vmem:[#allocation2] sm:$0xff]
  %v22 = vld [vmem:[#allocation2 + $0x8] sm:$0xff]
  %v23 = vld [vmem:[%s0] sm:$0xf]
  %v24 = vld [vmem:[%s0 + $0x4] sm:$0xf]
  %v25 = vld [vmem:[%s1] sm:$0xf]
  %v26 = vld [vmem:[%s1 + $0x4] sm:$0xf]
  %v27 = vld [vmem:[%s1 + $0x8] sm:$0xf]
  %v28 = vld [vmem:[%s1 + $0xc] sm:$0xf]
  %v29 = vld [vmem:[%s1 + $0x10] sm:$0xf]
  %v30 = vld [vmem:[%s1 + $0x14] sm:$0xf]
  %v31 = vld [vmem:[%s1 + $0x18] sm:$0xf]
  %v32 = vld [vmem:[%s1 + $0x1c] sm:$0xf]
  %v33 = vld [vmem:[%s1 + $0x20] sm:$0xf]
  %v34 = vld [vmem:[%s1 + $0x24] sm:$0xf]
  %v35 = vld [vmem:[%s1 + $0x28] sm:$0xf]
  %v36 = vld [vmem:[%s1 + $0x2c] sm:$0xf]
  %v37 = vld [vmem:[%s1 + $0x30] sm:$0xf]
  %v38 = vld [vmem:[%s1 + $0x34] sm:$0xf]
  %v39 = vld [vmem:[%s1 + $0x38] sm:$0xf]
  %v40 = vld [vmem:[%s1 + $0x3c] sm:$0xf]
  %v43 = vunpack.c.l.b16 %v23
  %v44 = vunpack.c.l.b16 %v24
  %v45 = vpack.c.b16 %v44, %v43
  %v63 = vunpack.c.l.b16 %v25
  %v64 = vunpack.c.l.b16 %v26
  %v65 = vunpack.c.l.b16 %v27
  %v66 = vunpack.c.l.b16 %v28
  %v67 = vunpack.c.l.b16 %v29
  %v68 = vunpack.c.l.b16 %v30
  %v69 = vunpack.c.l.b16 %v31
  %v70 = vunpack.c.l.b16 %v32
  %v71 = vunpack.c.l.b16 %v33
  %v72 = vunpack.c.l.b16 %v34
  %v73 = vunpack.c.l.b16 %v35
  %v74 = vunpack.c.l.b16 %v36
  %v75 = vunpack.c.l.b16 %v37
  %v76 = vunpack.c.l.b16 %v38
  %v77 = vunpack.c.l.b16 %v39
  %v78 = vunpack.c.l.b16 %v40
  %v79 = vpack.c.b16 %v64, %v63
  %v80 = vpack.c.b16 %v66, %v65
  %v81 = vpack.c.b16 %v68, %v67
  %v82 = vpack.c.b16 %v70, %v69
  %v83 = vpack.c.b16 %v72, %v71
  %v84 = vpack.c.b16 %v74, %v73
  %v85 = vpack.c.b16 %v76, %v75
  %v86 = vpack.c.b16 %v78, %v77
  %95 = vmatprep.subr.bf16.mxu0 0
  %96 = vmatpush1.bf16.msra.mxu0 %v79
  %97 = vmatprep.subr.bf16.mxu0 0
  %98 = vmatpush1.bf16.msra.mxu0 %v80
  %99 = vmatprep.subr.bf16.mxu0 0
  %100 = vmatpush1.bf16.msra.mxu0 %v81
  %101 = vmatprep.subr.bf16.mxu0 0
  %102 = vmatpush1.bf16.msra.mxu0 %v82
  %103 = vmatprep.subr.bf16.mxu0 0
  %104 = vmatpush1.bf16.msra.mxu0 %v83
  %105 = vmatprep.subr.bf16.mxu0 0
  %106 = vmatpush1.bf16.msra.mxu0 %v84
  %107 = vmatprep.subr.bf16.mxu0 0
  %108 = vmatpush1.bf16.msra.mxu0 %v85
  %109 = vmatprep.subr.bf16.mxu0 0
  %110 = vmatpush1.bf16.msra.mxu0 %v86
  %111 = vmatprep.subr.bf16.mxu0 0
  %112 = vmatpush1.bf16.msra.mxu0 0
  %113 = vmatprep.subr.bf16.mxu0 0
  %114 = vmatpush1.bf16.msra.mxu0 0
  %115 = vmatprep.subr.bf16.mxu0 0
  %116 = vmatpush1.bf16.msra.mxu0 0
  %117 = vmatprep.subr.bf16.mxu0 0
  %118 = vmatpush1.bf16.msra.mxu0 0
  %119 = vmatprep.subr.bf16.mxu0 0
  %120 = vmatpush1.bf16.msra.mxu0 0
  %121 = vmatprep.subr.bf16.mxu0 0
  %122 = vmatpush1.bf16.msra.mxu0 0
  %123 = vmatprep.subr.bf16.mxu0 0
  %124 = vmatpush1.bf16.msra.mxu0 0
  %125 = vmatprep.subr.bf16.mxu0 0
  %126 = vmatpush1.bf16.msra.mxu0 0
  %127 = vmatprep.mubr.bf16.mxu0 0
  %128 = vmatmul.mubr.bf16.gmra.mrb[0].mxu0 %v45
  %v129 = vpop.f32.mrb[0].mxu0
  %v130 = vadd.f32 0.0, %v129
  %v131 = vpop.f32.mrb[0].mxu0
  %v132 = vpop.f32.mrb[0].mxu0
  %v133 = vadd.f32 0.0, %v132
  %v134 = vpop.f32.mrb[0].mxu0
  %135 = vdwg.mxu0
  %v136 = vadd.f32 %v21, %v130
  %v137 = vadd.f32 %v22, %v133
  %138 = vst [vmem:[#allocation2] sm:$0xff] %v136
  %139 = vst [vmem:[#allocation2 + $0x8] sm:$0xff] %v137
  // Predicated region
  $region18: #{transformer_decoder_forward.25} parent=0 // pred_check
    %p140 = pneg %p15
  $region19: #{transformer_decoder_forward.25} parent=0 // pred_check_branch
    %142 = sbr.rel (%p140) target = $region21
  $region20: #{transformer_decoder_forward.25} parent=0 // pred_region
    %v143 = vld [vmem:[#allocation2] sm:$0xff]
    %v144 = vld [vmem:[#allocation2 + $0x8] sm:$0xff]
    %v145 = vld [vmem:[%s2] sm:$0x1]
    %v147 = vlaneseq
    %v148 = vshrl.u32 %v147, 7
    %v149 = vsub.s32 0, %v148
    %v150 = vrot.slane %v145, %v149
    %v152 = vadd.f32 %v143, %v150
    %v153 = vadd.f32 %v144, %v150
    %v154 = vpack.c.bf16 %v153, %v152
    %v156 = vunpack.c.l.b16 %v154
    %v157 = vunpack.c.h.b16 %v154
    %v158 = vpack.c.b16 %v156, %v156
    %v159 = vpack.c.b16 %v157, %v157
    %162 = vst [vmem:[%s3] sm:$0xf] %v158
    %163 = vst [vmem:[%s3 + $0x4] sm:$0xf] %v159
  $region21: #{transformer_decoder_forward.25} parent=0 // pred_fallthru
    _
  // Predicated region
  $region22: #{transformer_decoder_forward.25} parent=0 // pred_check
    _
  $region23: #{transformer_decoder_forward.25} parent=0 // pred_check_branch
    %165 = sbr.rel (0) target = $region25
  $region24: #{transformer_decoder_forward.25} parent=0 // pred_region
    _
  $region25: #{transformer_decoder_forward.25} parent=0 // pred_fallthru
    _
  // Predicated region
  $region26: #{transformer_decoder_forward.25} parent=0 // pred_check
    _
  $region27: #{transformer_decoder_forward.25} parent=0 // pred_check_branch
    %167 = sbr.rel (0) target = $region29
  $region28: #{transformer_decoder_forward.25} parent=0 // pred_region
    _
  $region29: #{transformer_decoder_forward.25} parent=0 // pred_fallthru
    _

// kernel: transformer_decoder_forward.28
$region0: #{transformer_decoder_forward.28}
  #allocation0 [shape = 'u32[]', space=smem, size = 0x4, offset = 0x4, fixed_abs, tag = 'smem constant byte address 0x4 - core index']
  #allocation1 [shape = 'u32[144,128]{1,0:T(1,128)}', space=vmem, size = 0x12000, scoped, tag = 'internal scratch']
  %s0 = inlined_call_operand.vmem [shape: f32[16,32], index: 0, kind: input, shape index: {}]
  %s1 = inlined_call_operand.vmem [shape: f32[16,32], index: 1, kind: input, shape index: {}]
  %s2 = inlined_call_operand.vmem [shape: f32[1,32], index: 2, kind: input, shape index: {}]
  %s3 = inlined_call_operand.vmem [shape: f32[1,32], index: 3, kind: input, shape index: {}]
  %s4 = inlined_call_operand.vmem [shape: f32[16,32], index: 4, kind: output, shape index: {}]
  %s5 = sld [smem:[#allocation0]]
  $region26: #{transformer_decoder_forward.28} parent=0
    _
  %s7 = ssub.s32 1, %s5
  %s8 = scalar_select 0, %s7, %s5
  // Predicated region
  $region2: #{transformer_decoder_forward.28} parent=0 // pred_check
    _
  $region3: #{transformer_decoder_forward.28} parent=0 // pred_check_branch
    %10 = sbr.rel (0) target = $region5
  $region4: #{transformer_decoder_forward.28} parent=0 // pred_region
    _
  $region5: #{transformer_decoder_forward.28} parent=0 // pred_fallthru
    _
  // Predicated region
  $region6: #{transformer_decoder_forward.28} parent=0 // pred_check
    _
  $region7: #{transformer_decoder_forward.28} parent=0 // pred_check_branch
    %12 = sbr.rel (0) target = $region9
  $region8: #{transformer_decoder_forward.28} parent=0 // pred_region
    _
  $region9: #{transformer_decoder_forward.28} parent=0 // pred_fallthru
    _
  // Predicated region
  $region10: #{transformer_decoder_forward.28} parent=0 // pred_check
    _
  $region11: #{transformer_decoder_forward.28} parent=0 // pred_check_branch
    %14 = sbr.rel (0) target = $region13
  $region12: #{transformer_decoder_forward.28} parent=0 // pred_region
    _
  $region13: #{transformer_decoder_forward.28} parent=0 // pred_fallthru
    _
  // Predicated region
  $region14: #{transformer_decoder_forward.28} parent=0 // pred_check
    _
  $region15: #{transformer_decoder_forward.28} parent=0 // pred_check_branch
    %16 = sbr.rel (0) target = $region17
  $region16: #{transformer_decoder_forward.28} parent=0 // pred_region
    _
  $region17: #{transformer_decoder_forward.28} parent=0 // pred_fallthru
    _
  %v17 = vld [vmem:[%s0] sm:$0xff]
  %v18 = vld [vmem:[%s0 + $0x8] sm:$0xff]
  %v19 = vld [vmem:[%s1] sm:$0xff]
  %v20 = vld [vmem:[%s1 + $0x8] sm:$0xff]
  %v21 = vadd.f32 %v17, %v19
  %v22 = vadd.f32 %v18, %v20
  %vm23 = vcmask 261120
  %v24 = vsel %vm23, %v21, 0.0
  %25 = vadd.xlane.f32.xlu0 %v24
  %v26 = vpop.xlane.xlu0 %25
  %v27 = vsel %vm23, %v22, 0.0
  %28 = vadd.xlane.f32.xlu0 %v27
  %v29 = vpop.xlane.xlu0 %28
  %v30 = vrcp.pop 32.0
  %v31 = vmul.f32 %v26, %v30
  %v32 = vmul.f32 %v29, %v30
  %v33 = vsub.f32 %v21, %v31
  %v34 = vsub.f32 %v22, %v32
  %v35 = vmul.f32 %v33, %v33
  %v36 = vmul.f32 %v34, %v34
  %v37 = vsel %vm23, %v35, 0.0
  %38 = vadd.xlane.f32.xlu0 %v37
  %v39 = vpop.xlane.xlu0 %38
  %v40 = vsel %vm23, %v36, 0.0
  %41 = vadd.xlane.f32.xlu0 %v40
  %v42 = vpop.xlane.xlu0 %41
  %v43 = vmul.f32 %v39, %v30
  %v44 = vmul.f32 %v42, %v30
  %v45 = vadd.f32 %v43, 1e-05
  %v46 = vadd.f32 %v44, 1e-05
  %v47 = vrsqrt.pop %v45
  %v48 = vrsqrt.pop %v46
  %v49 = vmul.f32 %v33, %v47
  %v50 = vmul.f32 %v34, %v48
  %v51 = vld [vmem:[%s2] sm:$0x1]
  %v53 = vlaneseq
  %v54 = vshrl.u32 %v53, 7
  %v55 = vsub.s32 0, %v54
  %v56 = vrot.slane %v51, %v55
  %v58 = vmul.f32 %v49, %v56
  %v59 = vmul.f32 %v50, %v56
  %v60 = vld [vmem:[%s3] sm:$0x1]
  %v62 = vlaneseq
  %v63 = vshrl.u32 %v62, 7
  %v64 = vsub.s32 0, %v63
  %v65 = vrot.slane %v60, %v64
  %v67 = vadd.f32 %v58, %v65
  %v68 = vadd.f32 %v59, %v65
  %69 = vst.msk [vmem:[%s4] sm:$0xff] %vm23, %v67
  %70 = vst.msk [vmem:[%s4 + $0x8] sm:$0xff] %vm23, %v68
  // Predicated region
  $region18: #{transformer_decoder_forward.28} parent=0 // pred_check
    _
  $region19: #{transformer_decoder_forward.28} parent=0 // pred_check_branch
    %72 = sbr.rel (0) target = $region21
  $region20: #{transformer_decoder_forward.28} parent=0 // pred_region
    _
  $region21: #{transformer_decoder_forward.28} parent=0 // pred_fallthru
    _
  // Predicated region
  $region22: #{transformer_decoder_forward.28} parent=0 // pred_check
    _
  $region23: #{transformer_decoder_forward.28} parent=0 // pred_check_branch
    %74 = sbr.rel (0) target = $region25
  $region24: #{transformer_decoder_forward.28} parent=0 // pred_region
    _
  $region25: #{transformer_decoder_forward.28} parent=0 // pred_fallthru
    _

// kernel: transformer_decoder_forward.27
$region0: #{transformer_decoder_forward.27}
  #allocation0 [shape = 'u32[]', space=smem, size = 0x4, offset = 0x4, fixed_abs, tag = 'smem constant byte address 0x4 - core index']
  #allocation1 [shape = 'u32[144,128]{1,0:T(1,128)}', space=vmem, size = 0x12000, scoped, tag = 'internal scratch']
  #allocation2 [shape = 'f32[16,128]{1,0:T(8,128)}', space=vmem, size = 0x2000, scoped, tag = 'scratch operand']
  %s0 = inlined_call_operand.vmem [shape: bf16[16,128], index: 0, kind: input, shape index: {}]
  %s1 = inlined_call_operand.vmem [shape: bf16[128,128], index: 1, kind: input, shape index: {}]
  %s2 = inlined_call_operand.vmem [shape: f32[1,128], index: 2, kind: input, shape index: {}]
  %s3 = inlined_call_operand.vmem [shape: f32[16,128], index: 3, kind: output, shape index: {}]
  %s4 = sld [smem:[#allocation0]]
  $region30: #{transformer_decoder_forward.27} parent=0
    _
  %s6 = ssub.s32 1, %s4
  %s7 = scalar_select 0, %s6, %s4
  // Predicated region
  $region2: #{transformer_decoder_forward.27} parent=0 // pred_check
    _
  $region3: #{transformer_decoder_forward.27} parent=0 // pred_check_branch
    %9 = sbr.rel (0) target = $region5
  $region4: #{transformer_decoder_forward.27} parent=0 // pred_region
    _
  $region5: #{transformer_decoder_forward.27} parent=0 // pred_fallthru
    _
  // Predicated region
  $region6: #{transformer_decoder_forward.27} parent=0 // pred_check
    _
  $region7: #{transformer_decoder_forward.27} parent=0 // pred_check_branch
    %11 = sbr.rel (0) target = $region9
  $region8: #{transformer_decoder_forward.27} parent=0 // pred_region
    _
  $region9: #{transformer_decoder_forward.27} parent=0 // pred_fallthru
    _
  // Predicated region
  $region10: #{transformer_decoder_forward.27} parent=0 // pred_check
    _
  $region11: #{transformer_decoder_forward.27} parent=0 // pred_check_branch
    %13 = sbr.rel (0) target = $region13
  $region12: #{transformer_decoder_forward.27} parent=0 // pred_region
    _
  $region13: #{transformer_decoder_forward.27} parent=0 // pred_fallthru
    _
  %p15 = scmp.eq.s32.totalorder 0, 0
  // Predicated region
  $region14: #{transformer_decoder_forward.27} parent=0 // pred_check
    %p16 = pneg %p15
  $region15: #{transformer_decoder_forward.27} parent=0 // pred_check_branch
    %18 = sbr.rel (%p16) target = $region17
  $region16: #{transformer_decoder_forward.27} parent=0 // pred_region
    %19 = vst [vmem:[#allocation2] sm:$0xff] 0.0
    %20 = vst [vmem:[#allocation2 + $0x8] sm:$0xff] 0.0
  $region17: #{transformer_decoder_forward.27} parent=0 // pred_fallthru
    _
  %v21 = vld [vmem:[#allocation2] sm:$0xff]
  %v22 = vld [vmem:[#allocation2 + $0x8] sm:$0xff]
  %v23 = vld [vmem:[%s0] sm:$0xf]
  %v24 = vld [vmem:[%s0 + $0x4] sm:$0xf]
  %v25 = vld [vmem:[%s1] sm:$0xf]
  %v26 = vld [vmem:[%s1 + $0x4] sm:$0xf]
  %v27 = vld [vmem:[%s1 + $0x8] sm:$0xf]
  %v28 = vld [vmem:[%s1 + $0xc] sm:$0xf]
  %v29 = vld [vmem:[%s1 + $0x10] sm:$0xf]
  %v30 = vld [vmem:[%s1 + $0x14] sm:$0xf]
  %v31 = vld [vmem:[%s1 + $0x18] sm:$0xf]
  %v32 = vld [vmem:[%s1 + $0x1c] sm:$0xf]
  %v33 = vld [vmem:[%s1 + $0x20] sm:$0xf]
  %v34 = vld [vmem:[%s1 + $0x24] sm:$0xf]
  %v35 = vld [vmem:[%s1 + $0x28] sm:$0xf]
  %v36 = vld [vmem:[%s1 + $0x2c] sm:$0xf]
  %v37 = vld [vmem:[%s1 + $0x30] sm:$0xf]
  %v38 = vld [vmem:[%s1 + $0x34] sm:$0xf]
  %v39 = vld [vmem:[%s1 + $0x38] sm:$0xf]
  %v40 = vld [vmem:[%s1 + $0x3c] sm:$0xf]
  %v43 = vunpack.c.l.b16 %v23
  %v44 = vunpack.c.l.b16 %v24
  %v45 = vpack.c.b16 %v44, %v43
  %v63 = vunpack.c.l.b16 %v25
  %v64 = vunpack.c.l.b16 %v26
  %v65 = vunpack.c.l.b16 %v27
  %v66 = vunpack.c.l.b16 %v28
  %v67 = vunpack.c.l.b16 %v29
  %v68 = vunpack.c.l.b16 %v30
  %v69 = vunpack.c.l.b16 %v31
  %v70 = vunpack.c.l.b16 %v32
  %v71 = vunpack.c.l.b16 %v33
  %v72 = vunpack.c.l.b16 %v34
  %v73 = vunpack.c.l.b16 %v35
  %v74 = vunpack.c.l.b16 %v36
  %v75 = vunpack.c.l.b16 %v37
  %v76 = vunpack.c.l.b16 %v38
  %v77 = vunpack.c.l.b16 %v39
  %v78 = vunpack.c.l.b16 %v40
  %v79 = vpack.c.b16 %v64, %v63
  %v80 = vpack.c.b16 %v66, %v65
  %v81 = vpack.c.b16 %v68, %v67
  %v82 = vpack.c.b16 %v70, %v69
  %v83 = vpack.c.b16 %v72, %v71
  %v84 = vpack.c.b16 %v74, %v73
  %v85 = vpack.c.b16 %v76, %v75
  %v86 = vpack.c.b16 %v78, %v77
  %95 = vmatprep.subr.bf16.mxu0 0
  %96 = vmatpush1.bf16.msra.mxu0 %v79
  %97 = vmatprep.subr.bf16.mxu0 0
  %98 = vmatpush1.bf16.msra.mxu0 %v80
  %99 = vmatprep.subr.bf16.mxu0 0
  %100 = vmatpush1.bf16.msra.mxu0 %v81
  %101 = vmatprep.subr.bf16.mxu0 0
  %102 = vmatpush1.bf16.msra.mxu0 %v82
  %103 = vmatprep.subr.bf16.mxu0 0
  %104 = vmatpush1.bf16.msra.mxu0 %v83
  %105 = vmatprep.subr.bf16.mxu0 0
  %106 = vmatpush1.bf16.msra.mxu0 %v84
  %107 = vmatprep.subr.bf16.mxu0 0
  %108 = vmatpush1.bf16.msra.mxu0 %v85
  %109 = vmatprep.subr.bf16.mxu0 0
  %110 = vmatpush1.bf16.msra.mxu0 %v86
  %111 = vmatprep.subr.bf16.mxu0 0
  %112 = vmatpush1.bf16.msra.mxu0 0
  %113 = vmatprep.subr.bf16.mxu0 0
  %114 = vmatpush1.bf16.msra.mxu0 0
  %115 = vmatprep.subr.bf16.mxu0 0
  %116 = vmatpush1.bf16.msra.mxu0 0
  %117 = vmatprep.subr.bf16.mxu0 0
  %118 = vmatpush1.bf16.msra.mxu0 0
  %119 = vmatprep.subr.bf16.mxu0 0
  %120 = vmatpush1.bf16.msra.mxu0 0
  %121 = vmatprep.subr.bf16.mxu0 0
  %122 = vmatpush1.bf16.msra.mxu0 0
  %123 = vmatprep.subr.bf16.mxu0 0
  %124 = vmatpush1.bf16.msra.mxu0 0
  %125 = vmatprep.subr.bf16.mxu0 0
  %126 = vmatpush1.bf16.msra.mxu0 0
  %127 = vmatprep.mubr.bf16.mxu0 0
  %128 = vmatmul.mubr.bf16.gmra.mrb[0].mxu0 %v45
  %v129 = vpop.f32.mrb[0].mxu0
  %v130 = vadd.f32 0.0, %v129
  %v131 = vpop.f32.mrb[0].mxu0
  %v132 = vpop.f32.mrb[0].mxu0
  %v133 = vadd.f32 0.0, %v132
  %v134 = vpop.f32.mrb[0].mxu0
  %135 = vdwg.mxu0
  %v136 = vadd.f32 %v21, %v130
  %v137 = vadd.f32 %v22, %v133
  %138 = vst [vmem:[#allocation2] sm:$0xff] %v136
  %139 = vst [vmem:[#allocation2 + $0x8] sm:$0xff] %v137
  // Predicated region
  $region18: #{transformer_decoder_forward.27} parent=0 // pred_check
    %p140 = pneg %p15
  $region19: #{transformer_decoder_forward.27} parent=0 // pred_check_branch
    %142 = sbr.rel (%p140) target = $region21
  $region20: #{transformer_decoder_forward.27} parent=0 // pred_region
    %v143 = vld [vmem:[#allocation2] sm:$0xff]
    %v144 = vld [vmem:[#allocation2 + $0x8] sm:$0xff]
    %v145 = vld [vmem:[%s2] sm:$0x1]
    %v147 = vlaneseq
    %v148 = vshrl.u32 %v147, 7
    %v149 = vsub.s32 0, %v148
    %v150 = vrot.slane %v145, %v149
    %v152 = vadd.f32 %v143, %v150
    %v153 = vadd.f32 %v144, %v150
    %154 = vst [vmem:[%s3] sm:$0xff] %v152
    %155 = vst [vmem:[%s3 + $0x8] sm:$0xff] %v153
  $region21: #{transformer_decoder_forward.27} parent=0 // pred_fallthru
    _
  // Predicated region
  $region22: #{transformer_decoder_forward.27} parent=0 // pred_check
    _
  $region23: #{transformer_decoder_forward.27} parent=0 // pred_check_branch
    %157 = sbr.rel (0) target = $region25
  $region24: #{transformer_decoder_forward.27} parent=0 // pred_region
    _
  $region25: #{transformer_decoder_forward.27} parent=0 // pred_fallthru
    _
  // Predicated region
  $region26: #{transformer_decoder_forward.27} parent=0 // pred_check
    _
  $region27: #{transformer_decoder_forward.27} parent=0 // pred_check_branch
    %159 = sbr.rel (0) target = $region29
  $region28: #{transformer_decoder_forward.27} parent=0 // pred_region
    _
  $region29: #{transformer_decoder_forward.27} parent=0 // pred_fallthru
    _

// kernel: transformer_decoder_forward.26
$region0: #{transformer_decoder_forward.26}
  #allocation0 [shape = 'u32[]', space=smem, size = 0x4, offset = 0x4, fixed_abs, tag = 'smem constant byte address 0x4 - core index']
  #allocation1 [shape = 'u32[144,128]{1,0:T(1,128)}', space=vmem, size = 0x12000, scoped, tag = 'internal scratch']
  %s0 = inlined_call_operand.vmem [shape: bf16[2,8,32], index: 0, kind: input, shape index: {}]
  %s1 = inlined_call_operand.vmem [shape: bf16[2,8,32], index: 1, kind: input, shape index: {}]
  %s2 = inlined_call_operand.vmem [shape: bf16[2,8,32], index: 2, kind: input, shape index: {}]
  %s3 = inlined_call_operand.vmem [shape: f32[2,8,8], index: 3, kind: input, shape index: {}]
  %s4 = inlined_call_operand.vmem [shape: bf16[2,8,32], index: 4, kind: output, shape index: {}]
  %s5 = sld [smem:[#allocation0]]
  $region49: #{transformer_decoder_forward.26} parent=0
    _
  %s7 = ssub.s32 1, %s5
  %s8 = scalar_select 0, %s7, %s5
  loop: start=0, step=1, limit=4
  $region2: #{transformer_decoder_forward.26} parent=0 // loop_pre_header
    _
  $region3: #{transformer_decoder_forward.26} parent=0 // loop_header
    %s10 = sphi 0, %s14
    %p11 = scmp.ge.s32.totalorder %s10, 4
    %s20 = sphi 0, %s22
    %s23 = sphi 0, %s20
    %s24 = sphi 0, %s23
    %s40 = sphi 0, %s24
    %s46 = sphi 0, %s48
    %s49 = sphi 0, %s46
    %s50 = sphi 0, %s49
    %s66 = sphi 0, %s50
    %s72 = sphi 0, %s74
    %s75 = sphi 0, %s72
    %s76 = sphi 0, %s75
    %s92 = sphi 0, %s76
    %s98 = sphi 0, %s100
    %s101 = sphi 0, %s98
    %s102 = sphi 0, %s101
    %s118 = sphi 0, %s102
    %s124 = sphi 0, %s126
    %s127 = sphi 0, %s124
    %s128 = sphi 0, %s127
    %s144 = sphi 0, %s128
  $region4: #{transformer_decoder_forward.26} parent=0 // loop_header_branch
    %13 = sbr.rel (%p11) target = $region8
  $region5: #{transformer_decoder_forward.26} parent=0 // loop_body
    %s15 = ssub.s32 %s10, 1
    %s16 = ssub.s32 %s10, 2
    %s17 = sadd.s32 %s10, 1
    %s18 = ssub.s32 %s10, %s17
    %p19 = scmp.eq.s32.totalorder %s18, 0
    %s21 = sadd.s32 %s20, 1
    %s22 = scalar_select %p19, %s20, %s21
    %p25 = pneg %p19
    %p26 = scmp.eq.s32.totalorder %s10, 1
    %p27 = por %p25, %p26
    %p28 = scmp.ne.s32.totalorder %s20, %s23
    %p29 = scmp.eq.s32.totalorder %s10, 0
    %p30 = por %p28, %p29
    %p31 = scmp.ne.s32.totalorder %s20, %s23
    %p32 = scmp.eq.s32.totalorder %s15, 1
    %p33 = por %p31, %p32
    %p34 = scmp.ne.s32.totalorder %s23, %s24
    %p35 = scmp.eq.s32.totalorder %s15, 0
    %p36 = por %p34, %p35
    %p37 = scmp.ne.s32.totalorder %s23, %s24
    %p38 = scmp.eq.s32.totalorder %s16, 1
    %p39 = por %p37, %p38
    %p41 = scmp.ne.s32.totalorder %s24, %s40
    %p42 = scmp.eq.s32.totalorder %s16, 0
    %p43 = por %p41, %p42
    %s44 = ssub.s32 %s10, %s17
    %p45 = scmp.eq.s32.totalorder %s44, 0
    %s47 = sadd.s32 %s46, 1
    %s48 = scalar_select %p45, %s46, %s47
    %p51 = pneg %p45
    %p52 = scmp.eq.s32.totalorder %s10, 1
    %p53 = por %p51, %p52
    %p54 = scmp.ne.s32.totalorder %s46, %s49
    %p55 = scmp.eq.s32.totalorder %s10, 0
    %p56 = por %p54, %p55
    %p57 = scmp.ne.s32.totalorder %s46, %s49
    %p58 = scmp.eq.s32.totalorder %s15, 1
    %p59 = por %p57, %p58
    %p60 = scmp.ne.s32.totalorder %s49, %s50
    %p61 = scmp.eq.s32.totalorder %s15, 0
    %p62 = por %p60, %p61
    %p63 = scmp.ne.s32.totalorder %s49, %s50
    %p64 = scmp.eq.s32.totalorder %s16, 1
    %p65 = por %p63, %p64
    %p67 = scmp.ne.s32.totalorder %s50, %s66
    %p68 = scmp.eq.s32.totalorder %s16, 0
    %p69 = por %p67, %p68
    %s70 = ssub.s32 %s10, %s17
    %p71 = scmp.eq.s32.totalorder %s70, 0
    %s73 = sadd.s32 %s72, 1
    %s74 = scalar_select %p71, %s72, %s73
    %p77 = pneg %p71
    %p78 = scmp.eq.s32.totalorder %s10, 1
    %p79 = por %p77, %p78
    %p80 = scmp.ne.s32.totalorder %s72, %s75
    %p81 = scmp.eq.s32.totalorder %s10, 0
    %p82 = por %p80, %p81
    %p83 = scmp.ne.s32.totalorder %s72, %s75
    %p84 = scmp.eq.s32.totalorder %s15, 1
    %p85 = por %p83, %p84
    %p86 = scmp.ne.s32.totalorder %s75, %s76
    %p87 = scmp.eq.s32.totalorder %s15, 0
    %p88 = por %p86, %p87
    %p89 = scmp.ne.s32.totalorder %s75, %s76
    %p90 = scmp.eq.s32.totalorder %s16, 1
    %p91 = por %p89, %p90
    %p93 = scmp.ne.s32.totalorder %s76, %s92
    %p94 = scmp.eq.s32.totalorder %s16, 0
    %p95 = por %p93, %p94
    %s96 = ssub.s32 %s10, %s17
    %p97 = scmp.eq.s32.totalorder %s96, 0
    %s99 = sadd.s32 %s98, 1
    %s100 = scalar_select %p97, %s98, %s99
    %p103 = pneg %p97
    %p104 = scmp.eq.s32.totalorder %s10, 1
    %p105 = por %p103, %p104
    %p106 = scmp.ne.s32.totalorder %s98, %s101
    %p107 = scmp.eq.s32.totalorder %s10, 0
    %p108 = por %p106, %p107
    %p109 = scmp.ne.s32.totalorder %s98, %s101
    %p110 = scmp.eq.s32.totalorder %s15, 1
    %p111 = por %p109, %p110
    %p112 = scmp.ne.s32.totalorder %s101, %s102
    %p113 = scmp.eq.s32.totalorder %s15, 0
    %p114 = por %p112, %p113
    %p115 = scmp.ne.s32.totalorder %s101, %s102
    %p116 = scmp.eq.s32.totalorder %s16, 1
    %p117 = por %p115, %p116
    %p119 = scmp.ne.s32.totalorder %s102, %s118
    %p120 = scmp.eq.s32.totalorder %s16, 0
    %p121 = por %p119, %p120
    %s122 = ssub.s32 %s10, %s17
    %p123 = scmp.eq.s32.totalorder %s122, 0
    %s125 = sadd.s32 %s124, 1
    %s126 = scalar_select %p123, %s124, %s125
    %p129 = pneg %p123
    %p130 = scmp.eq.s32.totalorder %s10, 1
    %p131 = por %p129, %p130
    %p132 = scmp.ne.s32.totalorder %s124, %s127
    %p133 = scmp.eq.s32.totalorder %s10, 0
    %p134 = por %p132, %p133
    %p135 = scmp.ne.s32.totalorder %s124, %s127
    %p136 = scmp.eq.s32.totalorder %s15, 1
    %p137 = por %p135, %p136
    %p138 = scmp.ne.s32.totalorder %s127, %s128
    %p139 = scmp.eq.s32.totalorder %s15, 0
    %p140 = por %p138, %p139
    %p141 = scmp.ne.s32.totalorder %s127, %s128
    %p142 = scmp.eq.s32.totalorder %s16, 1
    %p143 = por %p141, %p142
    %p145 = scmp.ne.s32.totalorder %s128, %s144
    %p146 = scmp.eq.s32.totalorder %s16, 0
    %p147 = por %p145, %p146
    %p148 = scmp.le.s32.totalorder 1, %s10
    %p149 = scmp.lt.s32.totalorder %s10, 3
    %p150 = pnand %p148, %p149
    %p151 = pneg %p150
    // Predicated region
    $region9: #{transformer_decoder_forward.26} parent=5 // pred_check
      _
    $region10: #{transformer_decoder_forward.26} parent=5 // pred_check_branch
      %153 = sbr.rel (%p150) target = $region12
    $region11: #{transformer_decoder_forward.26} parent=5 // pred_region
      %s154 = ssub.s32 %s10, 1
    $region12: #{transformer_decoder_forward.26} parent=5 // pred_fallthru
      _
    %p155 = scmp.lt.s32.totalorder %s10, 2
    // Predicated region
    $region13: #{transformer_decoder_forward.26} parent=5 // pred_check
      %p156 = pneg %p155
    $region14: #{transformer_decoder_forward.26} parent=5 // pred_check_branch
      %158 = sbr.rel (%p156) target = $region16
    $region15: #{transformer_decoder_forward.26} parent=5 // pred_region
      // Predicated region
      $region17: #{transformer_decoder_forward.26} parent=15 // pred_check
        %p159 = pneg %p30
      $region18: #{transformer_decoder_forward.26} parent=15 // pred_check_branch
        %161 = sbr.rel (%p159) target = $region20
      $region19: #{transformer_decoder_forward.26} parent=15 // pred_region
        %p162 = scmp.lt.s32.totalorder %s10, 1
        %s163 = scalar_select %p162, %s10, 1
        %s164 = smul.addr %s163, 4
        %s165 = scalar_lea.vmem %s0, %s164
      $region20: #{transformer_decoder_forward.26} parent=15 // pred_fallthru
        _
      // Predicated region
      $region21: #{transformer_decoder_forward.26} parent=15 // pred_check
        %p166 = pneg %p56
      $region22: #{transformer_decoder_forward.26} parent=15 // pred_check_branch
        %168 = sbr.rel (%p166) target = $region24
      $region23: #{transformer_decoder_forward.26} parent=15 // pred_region
        %p169 = scmp.lt.s32.totalorder %s10, 1
        %s170 = scalar_select %p169, %s10, 1
        %s171 = smul.addr %s170, 4
        %s172 = scalar_lea.vmem %s1, %s171
      $region24: #{transformer_decoder_forward.26} parent=15 // pred_fallthru
        _
      // Predicated region
      $region25: #{transformer_decoder_forward.26} parent=15 // pred_check
        %p173 = pneg %p82
      $region26: #{transformer_decoder_forward.26} parent=15 // pred_check_branch
        %175 = sbr.rel (%p173) target = $region28
      $region27: #{transformer_decoder_forward.26} parent=15 // pred_region
        %p176 = scmp.lt.s32.totalorder %s10, 1
        %s177 = scalar_select %p176, %s10, 1
        %s178 = smul.addr %s177, 4
        %s179 = scalar_lea.vmem %s2, %s178
      $region28: #{transformer_decoder_forward.26} parent=15 // pred_fallthru
        _
      // Predicated region
      $region29: #{transformer_decoder_forward.26} parent=15 // pred_check
        %p180 = pneg %p108
      $region30: #{transformer_decoder_forward.26} parent=15 // pred_check_branch
        %182 = sbr.rel (%p180) target = $region32
      $region31: #{transformer_decoder_forward.26} parent=15 // pred_region
        %p183 = scmp.lt.s32.totalorder %s10, 1
        %s184 = scalar_select %p183, %s10, 1
        %s185 = smul.addr %s184, 8
        %s186 = scalar_lea.vmem %s3, %s185
      $region32: #{transformer_decoder_forward.26} parent=15 // pred_fallthru
        _
    $region16: #{transformer_decoder_forward.26} parent=5 // pred_fallthru
      _
    %p187 = scmp.le.s32.totalorder 1, %s10
    %p188 = scmp.lt.s32.totalorder %s10, 3
    %p189 = pnand %p187, %p188
    %p190 = pneg %p189
    // Predicated region
    $region33: #{transformer_decoder_forward.26} parent=5 // pred_check
      _
    $region34: #{transformer_decoder_forward.26} parent=5 // pred_check_branch
      %192 = sbr.rel (%p189) target = $region36
    $region35: #{transformer_decoder_forward.26} parent=5 // pred_region
      %s193 = ssub.s32 %s10, 1
      %p194 = scmp.lt.s32.totalorder %s15, 1
      %s195 = scalar_select %p194, %s15, 1
      %s196 = smul.addr %s195, 4
      %s197 = scalar_lea.vmem %s0, %s196
      %p198 = pneg %p36
      %p199 = pneg %p33
      %p200 = scmp.lt.s32.totalorder %s15, 1
      %s201 = scalar_select %p200, %s15, 1
      %s202 = smul.addr %s201, 4
      %s203 = scalar_lea.vmem %s1, %s202
      %p204 = pneg %p62
      %p205 = pneg %p59
      %p206 = scmp.lt.s32.totalorder %s15, 1
      %s207 = scalar_select %p206, %s15, 1
      %s208 = smul.addr %s207, 4
      %s209 = scalar_lea.vmem %s2, %s208
      %p210 = pneg %p88
      %p211 = pneg %p85
      %p212 = scmp.lt.s32.totalorder %s15, 1
      %s213 = scalar_select %p212, %s15, 1
      %s214 = smul.addr %s213, 8
      %s215 = scalar_lea.vmem %s3, %s214
      %p216 = pneg %p114
      %p217 = pneg %p111
      %p218 = pneg %p140
      %p219 = pneg %p137
      %p220 = scmp.lt.s32.totalorder %s15, 1
      %s221 = scalar_select %p220, %s15, 1
      %s222 = smul.addr %s221, 4
      %s223 = scalar_lea.vmem %s4, %s222
      %p224 = scmp.lt.s32.totalorder %s15, 1
      %s225 = scalar_select %p224, %s15, 1
      %s226 = smul.addr %s225, 4
      %s227 = scalar_lea.vmem %s0, %s226
      %p228 = scmp.lt.s32.totalorder %s15, 1
      %s229 = scalar_select %p228, %s15, 1
      %s230 = smul.addr %s229, 4
      %s231 = scalar_lea.vmem %s1, %s230
      %p232 = scmp.lt.s32.totalorder %s15, 1
      %s233 = scalar_select %p232, %s15, 1
      %s234 = smul.addr %s233, 4
      %s235 = scalar_lea.vmem %s2, %s234
      %p236 = scmp.lt.s32.totalorder %s15, 1
      %s237 = scalar_select %p236, %s15, 1
      %s238 = smul.addr %s237, 8
      %s239 = scalar_lea.vmem %s3, %s238
      %p240 = scmp.lt.s32.totalorder %s15, 1
      %s241 = scalar_select %p240, %s15, 1
      %s242 = smul.addr %s241, 4
      %s243 = scalar_lea.vmem %s4, %s242
      %v245 = vld [vmem:[%s227] sm:$0xf]
      %v246 = vld [vmem:[%s231] sm:$0xf]
      %v247 = vld [vmem:[%s235] sm:$0xf]
      %v248 = vld [vmem:[%s239] sm:$0xff]
      %v249 = vunpack.c.l.bf16 %v245
      %v250 = vmul.f32 %v249, 0.17677669
      %v251 = vpack.c.bf16 %v250, %v250
      %vm252 = vcmask 64512
      %v254 = vsel %vm252, %v251, 0
      %v257 = vsel %vm252, %v246, 0
      %259 = vmatprep.subr.bf16.mxu0 0
      %260 = vmatpush1.bf16.xpose.msra.mxu0 %v257
      %261 = vmatprep.subr.bf16.mxu0 0
      %262 = vmatpush1.bf16.xpose.msra.mxu0 0
      %263 = vmatprep.subr.bf16.mxu0 0
      %264 = vmatpush1.bf16.xpose.msra.mxu0 0
      %265 = vmatprep.subr.bf16.mxu0 0
      %266 = vmatpush1.bf16.xpose.msra.mxu0 0
      %267 = vmatprep.subr.bf16.mxu0 0
      %268 = vmatpush1.bf16.xpose.msra.mxu0 0
      %269 = vmatprep.subr.bf16.mxu0 0
      %270 = vmatpush1.bf16.xpose.msra.mxu0 0
      %271 = vmatprep.subr.bf16.mxu0 0
      %272 = vmatpush1.bf16.xpose.msra.mxu0 0
      %273 = vmatprep.subr.bf16.mxu0 0
      %274 = vmatpush1.bf16.xpose.msra.mxu0 0
      %275 = vmatprep.subr.bf16.mxu0 0
      %276 = vmatpush1.bf16.xpose.msra.mxu0 0
      %277 = vmatprep.subr.bf16.mxu0 0
      %278 = vmatpush1.bf16.xpose.msra.mxu0 0
      %279 = vmatprep.subr.bf16.mxu0 0
      %280 = vmatpush1.bf16.xpose.msra.mxu0 0
      %281 = vmatprep.subr.bf16.mxu0 0
      %282 = vmatpush1.bf16.xpose.msra.mxu0 0
      %283 = vmatprep.subr.bf16.mxu0 0
      %284 = vmatpush1.bf16.xpose.msra.mxu0 0
      %285 = vmatprep.subr.bf16.mxu0 0
      %286 = vmatpush1.bf16.xpose.msra.mxu0 0
      %287 = vmatprep.subr.bf16.mxu0 0
      %288 = vmatpush1.bf16.xpose.msra.mxu0 0
      %289 = vmatprep.subr.bf16.mxu0 0
      %290 = vmatpush1.bf16.xpose.msra.mxu0 0
      %291 = vmatprep.mubr.bf16.mxu0 0
      %292 = vmatmul.mubr.bf16.gmra.mrb[0].mxu0 %v254
      %v293 = vpop.f32.mrb[0].mxu0
      %v294 = vadd.f32 %v248, %v293
      %v295 = vpop.f32.mrb[0].mxu0
      %v296 = vpop.f32.mrb[0].mxu0
      %v297 = vpop.f32.mrb[0].mxu0
      %298 = vdwg.mxu0
      %v299 = vsel %vm252, %v294, -inf
      %300 = vmax.xlane.f32.xlu0 %v299
      %v301 = vpop.xlane.xlu0 %300
      %v302 = vsub.f32 %v294, %v301
      %v303 = vmul.f32 %v302, 1.442695
      %v304 = vpow.pop %v303
      %v305 = vsel %vm252, %v304, 0.0
      %306 = vadd.xlane.f32.xlu0 %v305
      %v307 = vpop.xlane.xlu0 %306
      %v308 = vrcp.pop %v307
      %v309 = vmul.f32 %v304, %v308
      %v310 = vpack.c.bf16 %v309, %v309
      %v312 = vsel %vm252, %v310, 0
      %vm314 = vcmask 1043456
      %v316 = vsel %vm314, %v247, 0
      %318 = vmatprep.subr.bf16.mxu0 0
      %319 = vmatpush1.bf16.msra.mxu0 %v316
      %320 = vmatprep.subr.bf16.mxu0 0
      %321 = vmatpush1.bf16.msra.mxu0 0
      %322 = vmatprep.subr.bf16.mxu0 0
      %323 = vmatpush1.bf16.msra.mxu0 0
      %324 = vmatprep.subr.bf16.mxu0 0
      %325 = vmatpush1.bf16.msra.mxu0 0
      %326 = vmatprep.subr.bf16.mxu0 0
      %327 = vmatpush1.bf16.msra.mxu0 0
      %328 = vmatprep.subr.bf16.mxu0 0
      %329 = vmatpush1.bf16.msra.mxu0 0
      %330 = vmatprep.subr.bf16.mxu0 0
      %331 = vmatpush1.bf16.msra.mxu0 0
      %332 = vmatprep.subr.bf16.mxu0 0
      %333 = vmatpush1.bf16.msra.mxu0 0
      %334 = vmatprep.subr.bf16.mxu0 0
      %335 = vmatpush1.bf16.msra.mxu0 0
      %336 = vmatprep.subr.bf16.mxu0 0
      %337 = vmatpush1.bf16.msra.mxu0 0
      %338 = vmatprep.subr.bf16.mxu0 0
      %339 = vmatpush1.bf16.msra.mxu0 0
      %340 = vmatprep.subr.bf16.mxu0 0
      %341 = vmatpush1.bf16.msra.mxu0 0
      %342 = vmatprep.subr.bf16.mxu0 0
      %343 = vmatpush1.bf16.msra.mxu0 0
      %344 = vmatprep.subr.bf16.mxu0 0
      %345 = vmatpush1.bf16.msra.mxu0 0
      %346 = vmatprep.subr.bf16.mxu0 0
      %347 = vmatpush1.bf16.msra.mxu0 0
      %348 = vmatprep.subr.bf16.mxu0 0
      %349 = vmatpush1.bf16.msra.mxu0 0
      %350 = vmatprep.mubr.bf16.mxu0 0
      %351 = vmatmul.mubr.bf16.gmra.mrb[0].mxu0 %v312
      %v352 = vpop.f32.mrb[0].mxu0
      %v353 = vadd.f32 0.0, %v352
      %v354 = vpop.f32.mrb[0].mxu0
      %v355 = vpop.f32.mrb[0].mxu0
      %v356 = vpop.f32.mrb[0].mxu0
      %357 = vdwg.mxu0
      %359 = vrot.lane.b32.xlu0 %v251, 120
      %v360 = vpop.permute.xlu0 %359
      %v362 = vunpack.c.l.b16 %v246
      %v363 = vpack.c.b16 %v362, %v362
      %364 = vrot.lane.b32.xlu0 %v363, 120
      %v365 = vpop.permute.xlu0 %364
      %v367 = vsel %vm252, %v360, 0
      %v370 = vsel %vm252, %v365, 0
      %372 = vmatprep.subr.bf16.mxu0 0
      %373 = vmatpush1.bf16.xpose.msra.mxu0 %v370
      %374 = vmatprep.subr.bf16.mxu0 0
      %375 = vmatpush1.bf16.xpose.msra.mxu0 0
      %376 = vmatprep.subr.bf16.mxu0 0
      %377 = vmatpush1.bf16.xpose.msra.mxu0 0
      %378 = vmatprep.subr.bf16.mxu0 0
      %379 = vmatpush1.bf16.xpose.msra.mxu0 0
      %380 = vmatprep.subr.bf16.mxu0 0
      %381 = vmatpush1.bf16.xpose.msra.mxu0 0
      %382 = vmatprep.subr.bf16.mxu0 0
      %383 = vmatpush1.bf16.xpose.msra.mxu0 0
      %384 = vmatprep.subr.bf16.mxu0 0
      %385 = vmatpush1.bf16.xpose.msra.mxu0 0
      %386 = vmatprep.subr.bf16.mxu0 0
      %387 = vmatpush1.bf16.xpose.msra.mxu0 0
      %388 = vmatprep.subr.bf16.mxu0 0
      %389 = vmatpush1.bf16.xpose.msra.mxu0 0
      %390 = vmatprep.subr.bf16.mxu0 0
      %391 = vmatpush1.bf16.xpose.msra.mxu0 0
      %392 = vmatprep.subr.bf16.mxu0 0
      %393 = vmatpush1.bf16.xpose.msra.mxu0 0
      %394 = vmatprep.subr.bf16.mxu0 0
      %395 = vmatpush1.bf16.xpose.msra.mxu0 0
      %396 = vmatprep.subr.bf16.mxu0 0
      %397 = vmatpush1.bf16.xpose.msra.mxu0 0
      %398 = vmatprep.subr.bf16.mxu0 0
      %399 = vmatpush1.bf16.xpose.msra.mxu0 0
      %400 = vmatprep.subr.bf16.mxu0 0
      %401 = vmatpush1.bf16.xpose.msra.mxu0 0
      %402 = vmatprep.subr.bf16.mxu0 0
      %403 = vmatpush1.bf16.xpose.msra.mxu0 0
      %404 = vmatprep.mubr.bf16.mxu0 0
      %405 = vmatmul.mubr.bf16.gmra.mrb[0].mxu0 %v367
      %v406 = vpop.f32.mrb[0].mxu0
      %v407 = vadd.f32 %v248, %v406
      %v408 = vpop.f32.mrb[0].mxu0
      %v409 = vpop.f32.mrb[0].mxu0
      %v410 = vpop.f32.mrb[0].mxu0
      %411 = vdwg.mxu0
      %v412 = vsel %vm252, %v407, -inf
      %413 = vmax.xlane.f32.xlu0 %v412
      %v414 = vpop.xlane.xlu0 %413
      %v415 = vsub.f32 %v407, %v414
      %v416 = vmul.f32 %v415, 1.442695
      %v417 = vpow.pop %v416
      %v418 = vsel %vm252, %v417, 0.0
      %419 = vadd.xlane.f32.xlu0 %v418
      %v420 = vpop.xlane.xlu0 %419
      %v421 = vrcp.pop %v420
      %v422 = vmul.f32 %v417, %v421
      %v423 = vpack.c.bf16 %v422, %v422
      %v425 = vunpack.c.l.b16 %v247
      %v426 = vpack.c.b16 %v425, %v425
      %427 = vrot.lane.b32.xlu0 %v426, 120
      %v428 = vpop.permute.xlu0 %427
      %v430 = vsel %vm252, %v423, 0
      %v433 = vsel %vm314, %v428, 0
      %435 = vmatprep.subr.bf16.mxu0 0
      %436 = vmatpush1.bf16.msra.mxu0 %v433
      %437 = vmatprep.subr.bf16.mxu0 0
      %438 = vmatpush1.bf16.msra.mxu0 0
      %439 = vmatprep.subr.bf16.mxu0 0
      %440 = vmatpush1.bf16.msra.mxu0 0
      %441 = vmatprep.subr.bf16.mxu0 0
      %442 = vmatpush1.bf16.msra.mxu0 0
      %443 = vmatprep.subr.bf16.mxu0 0
      %444 = vmatpush1.bf16.msra.mxu0 0
      %445 = vmatprep.subr.bf16.mxu0 0
      %446 = vmatpush1.bf16.msra.mxu0 0
      %447 = vmatprep.subr.bf16.mxu0 0
      %448 = vmatpush1.bf16.msra.mxu0 0
      %449 = vmatprep.subr.bf16.mxu0 0
      %450 = vmatpush1.bf16.msra.mxu0 0
      %451 = vmatprep.subr.bf16.mxu0 0
      %452 = vmatpush1.bf16.msra.mxu0 0
      %453 = vmatprep.subr.bf16.mxu0 0
      %454 = vmatpush1.bf16.msra.mxu0 0
      %455 = vmatprep.subr.bf16.mxu0 0
      %456 = vmatpush1.bf16.msra.mxu0 0
      %457 = vmatprep.subr.bf16.mxu0 0
      %458 = vmatpush1.bf16.msra.mxu0 0
      %459 = vmatprep.subr.bf16.mxu0 0
      %460 = vmatpush1.bf16.msra.mxu0 0
      %461 = vmatprep.subr.bf16.mxu0 0
      %462 = vmatpush1.bf16.msra.mxu0 0
      %463 = vmatprep.subr.bf16.mxu0 0
      %464 = vmatpush1.bf16.msra.mxu0 0
      %465 = vmatprep.subr.bf16.mxu0 0
      %466 = vmatpush1.bf16.msra.mxu0 0
      %467 = vmatprep.mubr.bf16.mxu0 0
      %468 = vmatmul.mubr.bf16.gmra.mrb[0].mxu0 %v430
      %v469 = vpop.f32.mrb[0].mxu0
      %v470 = vadd.f32 0.0, %v469
      %v471 = vpop.f32.mrb[0].mxu0
      %v472 = vpop.f32.mrb[0].mxu0
      %v473 = vpop.f32.mrb[0].mxu0
      %474 = vdwg.mxu0
      %475 = vrot.lane.b32.xlu0 %v251, 112
      %v476 = vpop.permute.xlu0 %475
      %477 = vrot.lane.b32.xlu0 %v363, 112
      %v478 = vpop.permute.xlu0 %477
      %v480 = vsel %vm252, %v476, 0
      %v483 = vsel %vm252, %v478, 0
      %485 = vmatprep.subr.bf16.mxu0 0
      %486 = vmatpush1.bf16.xpose.msra.mxu0 %v483
      %487 = vmatprep.subr.bf16.mxu0 0
      %488 = vmatpush1.bf16.xpose.msra.mxu0 0
      %489 = vmatprep.subr.bf16.mxu0 0
      %490 = vmatpush1.bf16.xpose.msra.mxu0 0
      %491 = vmatprep.subr.bf16.mxu0 0
      %492 = vmatpush1.bf16.xpose.msra.mxu0 0
      %493 = vmatprep.subr.bf16.mxu0 0
      %494 = vmatpush1.bf16.xpose.msra.mxu0 0
      %495 = vmatprep.subr.bf16.mxu0 0
      %496 = vmatpush1.bf16.xpose.msra.mxu0 0
      %497 = vmatprep.subr.bf16.mxu0 0
      %498 = vmatpush1.bf16.xpose.msra.mxu0 0
      %499 = vmatprep.subr.bf16.mxu0 0
      %500 = vmatpush1.bf16.xpose.msra.mxu0 0
      %501 = vmatprep.subr.bf16.mxu0 0
      %502 = vmatpush1.bf16.xpose.msra.mxu0 0
      %503 = vmatprep.subr.bf16.mxu0 0
      %504 = vmatpush1.bf16.xpose.msra.mxu0 0
      %505 = vmatprep.subr.bf16.mxu0 0
      %506 = vmatpush1.bf16.xpose.msra.mxu0 0
      %507 = vmatprep.subr.bf16.mxu0 0
      %508 = vmatpush1.bf16.xpose.msra.mxu0 0
      %509 = vmatprep.subr.bf16.mxu0 0
      %510 = vmatpush1.bf16.xpose.msra.mxu0 0
      %511 = vmatprep.subr.bf16.mxu0 0
      %512 = vmatpush1.bf16.xpose.msra.mxu0 0
      %513 = vmatprep.subr.bf16.mxu0 0
      %514 = vmatpush1.bf16.xpose.msra.mxu0 0
      %515 = vmatprep.subr.bf16.mxu0 0
      %516 = vmatpush1.bf16.xpose.msra.mxu0 0
      %517 = vmatprep.mubr.bf16.mxu0 0
      %518 = vmatmul.mubr.bf16.gmra.mrb[0].mxu0 %v480
      %v519 = vpop.f32.mrb[0].mxu0
      %v520 = vadd.f32 %v248, %v519
      %v521 = vpop.f32.mrb[0].mxu0
      %v522 = vpop.f32.mrb[0].mxu0
      %v523 = vpop.f32.mrb[0].mxu0
      %524 = vdwg.mxu0
      %v525 = vsel %vm252, %v520, -inf
      %526 = vmax.xlane.f32.xlu0 %v525
      %v527 = vpop.xlane.xlu0 %526
      %v528 = vsub.f32 %v520, %v527
      %v529 = vmul.f32 %v528, 1.442695
      %v530 = vpow.pop %v529
      %v531 = vsel %vm252, %v530, 0.0
      %532 = vadd.xlane.f32.xlu0 %v531
      %v533 = vpop.xlane.xlu0 %532
      %v534 = vrcp.pop %v533
      %v535 = vmul.f32 %v530, %v534
      %v536 = vpack.c.bf16 %v535, %v535
      %537 = vrot.lane.b32.xlu0 %v426, 112
      %v538 = vpop.permute.xlu0 %537
      %v540 = vsel %vm252, %v536, 0
      %v543 = vsel %vm314, %v538, 0
      %545 = vmatprep.subr.bf16.mxu0 0
      %546 = vmatpush1.bf16.msra.mxu0 %v543
      %547 = vmatprep.subr.bf16.mxu0 0
      %548 = vmatpush1.bf16.msra.mxu0 0
      %549 = vmatprep.subr.bf16.mxu0 0
      %550 = vmatpush1.bf16.msra.mxu0 0
      %551 = vmatprep.subr.bf16.mxu0 0
      %552 = vmatpush1.bf16.msra.mxu0 0
      %553 = vmatprep.subr.bf16.mxu0 0
      %554 = vmatpush1.bf16.msra.mxu0 0
      %555 = vmatprep.subr.bf16.mxu0 0
      %556 = vmatpush1.bf16.msra.mxu0 0
      %557 = vmatprep.subr.bf16.mxu0 0
      %558 = vmatpush1.bf16.msra.mxu0 0
      %559 = vmatprep.subr.bf16.mxu0 0
      %560 = vmatpush1.bf16.msra.mxu0 0
      %561 = vmatprep.subr.bf16.mxu0 0
      %562 = vmatpush1.bf16.msra.mxu0 0
      %563 = vmatprep.subr.bf16.mxu0 0
      %564 = vmatpush1.bf16.msra.mxu0 0
      %565 = vmatprep.subr.bf16.mxu0 0
      %566 = vmatpush1.bf16.msra.mxu0 0
      %567 = vmatprep.subr.bf16.mxu0 0
      %568 = vmatpush1.bf16.msra.mxu0 0
      %569 = vmatprep.subr.bf16.mxu0 0
      %570 = vmatpush1.bf16.msra.mxu0 0
      %571 = vmatprep.subr.bf16.mxu0 0
      %572 = vmatpush1.bf16.msra.mxu0 0
      %573 = vmatprep.subr.bf16.mxu0 0
      %574 = vmatpush1.bf16.msra.mxu0 0
      %575 = vmatprep.subr.bf16.mxu0 0
      %576 = vmatpush1.bf16.msra.mxu0 0
      %577 = vmatprep.mubr.bf16.mxu0 0
      %578 = vmatmul.mubr.bf16.gmra.mrb[0].mxu0 %v540
      %v579 = vpop.f32.mrb[0].mxu0
      %v580 = vadd.f32 0.0, %v579
      %v581 = vpop.f32.mrb[0].mxu0
      %v582 = vpop.f32.mrb[0].mxu0
      %v583 = vpop.f32.mrb[0].mxu0
      %584 = vdwg.mxu0
      %585 = vrot.lane.b32.xlu0 %v251, 104
      %v586 = vpop.permute.xlu0 %585
      %587 = vrot.lane.b32.xlu0 %v363, 104
      %v588 = vpop.permute.xlu0 %587
      %v590 = vsel %vm252, %v586, 0
      %v593 = vsel %vm252, %v588, 0
      %595 = vmatprep.subr.bf16.mxu0 0
      %596 = vmatpush1.bf16.xpose.msra.mxu0 %v593
      %597 = vmatprep.subr.bf16.mxu0 0
      %598 = vmatpush1.bf16.xpose.msra.mxu0 0
      %599 = vmatprep.subr.bf16.mxu0 0
      %600 = vmatpush1.bf16.xpose.msra.mxu0 0
      %601 = vmatprep.subr.bf16.mxu0 0
      %602 = vmatpush1.bf16.xpose.msra.mxu0 0
      %603 = vmatprep.subr.bf16.mxu0 0
      %604 = vmatpush1.bf16.xpose.msra.mxu0 0
      %605 = vmatprep.subr.bf16.mxu0 0
      %606 = vmatpush1.bf16.xpose.msra.mxu0 0
      %607 = vmatprep.subr.bf16.mxu0 0
      %608 = vmatpush1.bf16.xpose.msra.mxu0 0
      %609 = vmatprep.subr.bf16.mxu0 0
      %610 = vmatpush1.bf16.xpose.msra.mxu0 0
      %611 = vmatprep.subr.bf16.mxu0 0
      %612 = vmatpush1.bf16.xpose.msra.mxu0 0
      %613 = vmatprep.subr.bf16.mxu0 0
      %614 = vmatpush1.bf16.xpose.msra.mxu0 0
      %615 = vmatprep.subr.bf16.mxu0 0
      %616 = vmatpush1.bf16.xpose.msra.mxu0 0
      %617 = vmatprep.subr.bf16.mxu0 0
      %618 = vmatpush1.bf16.xpose.msra.mxu0 0
      %619 = vmatprep.subr.bf16.mxu0 0
      %620 = vmatpush1.bf16.xpose.msra.mxu0 0
      %621 = vmatprep.subr.bf16.mxu0 0
      %622 = vmatpush1.bf16.xpose.msra.mxu0 0
      %623 = vmatprep.subr.bf16.mxu0 0
      %624 = vmatpush1.bf16.xpose.msra.mxu0 0
      %625 = vmatprep.subr.bf16.mxu0 0
      %626 = vmatpush1.bf16.xpose.msra.mxu0 0
      %627 = vmatprep.mubr.bf16.mxu0 0
      %628 = vmatmul.mubr.bf16.gmra.mrb[0].mxu0 %v590
      %v629 = vpop.f32.mrb[0].mxu0
      %v630 = vadd.f32 %v248, %v629
      %v631 = vpop.f32.mrb[0].mxu0
      %v632 = vpop.f32.mrb[0].mxu0
      %v633 = vpop.f32.mrb[0].mxu0
      %634 = vdwg.mxu0
      %v635 = vsel %vm252, %v630, -inf
      %636 = vmax.xlane.f32.xlu0 %v635
      %v637 = vpop.xlane.xlu0 %636
      %v638 = vsub.f32 %v630, %v637
      %v639 = vmul.f32 %v638, 1.442695
      %v640 = vpow.pop %v639
      %v641 = vsel %vm252, %v640, 0.0
      %642 = vadd.xlane.f32.xlu0 %v641
      %v643 = vpop.xlane.xlu0 %642
      %v644 = vrcp.pop %v643
      %v645 = vmul.f32 %v640, %v644
      %v646 = vpack.c.bf16 %v645, %v645
      %647 = vrot.lane.b32.xlu0 %v426, 104
      %v648 = vpop.permute.xlu0 %647
      %v650 = vsel %vm252, %v646, 0
      %v653 = vsel %vm314, %v648, 0
      %655 = vmatprep.subr.bf16.mxu0 0
      %656 = vmatpush1.bf16.msra.mxu0 %v653
      %657 = vmatprep.subr.bf16.mxu0 0
      %658 = vmatpush1.bf16.msra.mxu0 0
      %659 = vmatprep.subr.bf16.mxu0 0
      %660 = vmatpush1.bf16.msra.mxu0 0
      %661 = vmatprep.subr.bf16.mxu0 0
      %662 = vmatpush1.bf16.msra.mxu0 0
      %663 = vmatprep.subr.bf16.mxu0 0
      %664 = vmatpush1.bf16.msra.mxu0 0
      %665 = vmatprep.subr.bf16.mxu0 0
      %666 = vmatpush1.bf16.msra.mxu0 0
      %667 = vmatprep.subr.bf16.mxu0 0
      %668 = vmatpush1.bf16.msra.mxu0 0
      %669 = vmatprep.subr.bf16.mxu0 0
      %670 = vmatpush1.bf16.msra.mxu0 0
      %671 = vmatprep.subr.bf16.mxu0 0
      %672 = vmatpush1.bf16.msra.mxu0 0
      %673 = vmatprep.subr.bf16.mxu0 0
      %674 = vmatpush1.bf16.msra.mxu0 0
      %675 = vmatprep.subr.bf16.mxu0 0
      %676 = vmatpush1.bf16.msra.mxu0 0
      %677 = vmatprep.subr.bf16.mxu0 0
      %678 = vmatpush1.bf16.msra.mxu0 0
      %679 = vmatprep.subr.bf16.mxu0 0
      %680 = vmatpush1.bf16.msra.mxu0 0
      %681 = vmatprep.subr.bf16.mxu0 0
      %682 = vmatpush1.bf16.msra.mxu0 0
      %683 = vmatprep.subr.bf16.mxu0 0
      %684 = vmatpush1.bf16.msra.mxu0 0
      %685 = vmatprep.subr.bf16.mxu0 0
      %686 = vmatpush1.bf16.msra.mxu0 0
      %687 = vmatprep.mubr.bf16.mxu0 0
      %688 = vmatmul.mubr.bf16.gmra.mrb[0].mxu0 %v650
      %v689 = vpop.f32.mrb[0].mxu0
      %v690 = vadd.f32 0.0, %v689
      %v691 = vpop.f32.mrb[0].mxu0
      %v692 = vpop.f32.mrb[0].mxu0
      %v693 = vpop.f32.mrb[0].mxu0
      %694 = vdwg.mxu0
      %696 = vrot.lane.b32.xlu0 %v470, 8
      %v697 = vpop.permute.xlu0 %696
      %700 = vrot.lane.b32.xlu0 %v580, 16
      %v701 = vpop.permute.xlu0 %700
      %704 = vrot.lane.b32.xlu0 %v690, 24
      %v705 = vpop.permute.xlu0 %704
      %v707 = vsel %vm252, %v353, %v697
      %vm708 = vcmask 130048
      %v709 = vsel %vm708, %v707, %v701
      %vm710 = vcmask 195584
      %v711 = vsel %vm710, %v709, %v705
      %v712 = vpack.c.bf16 %v711, %v711
      %vm713 = vcmask 257024
      %714 = vst.msk [vmem:[%s243] sm:$0xf] %vm713, %v712
      %p715 = scmp.lt.s32.totalorder %s15, 1
      %s716 = scalar_select %p715, %s15, 1
      %s717 = smul.addr %s716, 4
      %s718 = scalar_lea.vmem %s4, %s717
      // Predicated region
      $region37: #{transformer_decoder_forward.26} parent=35 // pred_check
        %p719 = pneg %p137
      $region38: #{transformer_decoder_forward.26} parent=35 // pred_check_branch
        %721 = sbr.rel (%p719) target = $region40
      $region39: #{transformer_decoder_forward.26} parent=35 // pred_region
        _
      $region40: #{transformer_decoder_forward.26} parent=35 // pred_fallthru
        _
    $region36: #{transformer_decoder_forward.26} parent=5 // pred_fallthru
      _
    %p722 = scmp.le.s32.totalorder 2, %s10
    // Predicated region
    $region41: #{transformer_decoder_forward.26} parent=5 // pred_check
      %p723 = pneg %p722
    $region42: #{transformer_decoder_forward.26} parent=5 // pred_check_branch
      %725 = sbr.rel (%p723) target = $region44
    $region43: #{transformer_decoder_forward.26} parent=5 // pred_region
      %s726 = ssub.s32 %s10, 2
      // Predicated region
      $region45: #{transformer_decoder_forward.26} parent=43 // pred_check
        %p727 = pneg %p143
      $region46: #{transformer_decoder_forward.26} parent=43 // pred_check_branch
        %729 = sbr.rel (%p727) target = $region48
      $region47: #{transformer_decoder_forward.26} parent=43 // pred_region
        %p730 = scmp.lt.s32.totalorder %s16, 1
        %s731 = scalar_select %p730, %s16, 1
        %s732 = smul.addr %s731, 4
        %s733 = scalar_lea.vmem %s4, %s732
      $region48: #{transformer_decoder_forward.26} parent=43 // pred_fallthru
        _
    $region44: #{transformer_decoder_forward.26} parent=5 // pred_fallthru
      _
  $region6: #{transformer_decoder_forward.26} parent=0 // loop_footer
    %s14 = sadd.s32 1, %s10
  $region7: #{transformer_decoder_forward.26} parent=0 // loop_footer_branch
    %9 = sbr.rel target = $region3
  $region8: #{transformer_decoder_forward.26} parent=0 // loop_exit
    _

// kernel: transformer_decoder_forward.29
$region0: #{transformer_decoder_forward.29}
  #allocation0 [shape = 'u32[]', space=smem, size = 0x4, offset = 0x4, fixed_abs, tag = 'smem constant byte address 0x4 - core index']
  #allocation1 [shape = 'u32[144,128]{1,0:T(1,128)}', space=vmem, size = 0x12000, scoped, tag = 'internal scratch']
  #allocation2 [shape = 'f32[16,128]{1,0:T(8,128)}', space=vmem, size = 0x2000, scoped, tag = 'scratch operand']
  %s0 = inlined_call_operand.vmem [shape: bf16[16,128], index: 0, kind: input, shape index: {}]
  %s1 = inlined_call_operand.vmem [shape: bf16[128,128], index: 1, kind: input, shape index: {}]
  %s2 = inlined_call_operand.vmem [shape: f32[1,128], index: 2, kind: input, shape index: {}]
  %s3 = inlined_call_operand.vmem [shape: bf16[16,128], index: 3, kind: output, shape index: {}]
  %s4 = sld [smem:[#allocation0]]
  $region30: #{transformer_decoder_forward.29} parent=0
    _
  %s6 = ssub.s32 1, %s4
  %s7 = scalar_select 0, %s6, %s4
  // Predicated region
  $region2: #{transformer_decoder_forward.29} parent=0 // pred_check
    _
  $region3: #{transformer_decoder_forward.29} parent=0 // pred_check_branch
    %9 = sbr.rel (0) target = $region5
  $region4: #{transformer_decoder_forward.29} parent=0 // pred_region
    _
  $region5: #{transformer_decoder_forward.29} parent=0 // pred_fallthru
    _
  // Predicated region
  $region6: #{transformer_decoder_forward.29} parent=0 // pred_check
    _
  $region7: #{transformer_decoder_forward.29} parent=0 // pred_check_branch
    %11 = sbr.rel (0) target = $region9
  $region8: #{transformer_decoder_forward.29} parent=0 // pred_region
    _
  $region9: #{transformer_decoder_forward.29} parent=0 // pred_fallthru
    _
  // Predicated region
  $region10: #{transformer_decoder_forward.29} parent=0 // pred_check
    _
  $region11: #{transformer_decoder_forward.29} parent=0 // pred_check_branch
    %13 = sbr.rel (0) target = $region13
  $region12: #{transformer_decoder_forward.29} parent=0 // pred_region
    _
  $region13: #{transformer_decoder_forward.29} parent=0 // pred_fallthru
    _
  %p15 = scmp.eq.s32.totalorder 0, 0
  // Predicated region
  $region14: #{transformer_decoder_forward.29} parent=0 // pred_check
    %p16 = pneg %p15
  $region15: #{transformer_decoder_forward.29} parent=0 // pred_check_branch
    %18 = sbr.rel (%p16) target = $region17
  $region16: #{transformer_decoder_forward.29} parent=0 // pred_region
    %19 = vst [vmem:[#allocation2] sm:$0xff] 0.0
    %20 = vst [vmem:[#allocation2 + $0x8] sm:$0xff] 0.0
  $region17: #{transformer_decoder_forward.29} parent=0 // pred_fallthru
    _
  %v21 = vld [vmem:[#allocation2] sm:$0xff]
  %v22 = vld [vmem:[#allocation2 + $0x8] sm:$0xff]
  %v23 = vld [vmem:[%s0] sm:$0xf]
  %v24 = vld [vmem:[%s0 + $0x4] sm:$0xf]
  %v25 = vld [vmem:[%s1] sm:$0xf]
  %v26 = vld [vmem:[%s1 + $0x4] sm:$0xf]
  %v27 = vld [vmem:[%s1 + $0x8] sm:$0xf]
  %v28 = vld [vmem:[%s1 + $0xc] sm:$0xf]
  %v29 = vld [vmem:[%s1 + $0x10] sm:$0xf]
  %v30 = vld [vmem:[%s1 + $0x14] sm:$0xf]
  %v31 = vld [vmem:[%s1 + $0x18] sm:$0xf]
  %v32 = vld [vmem:[%s1 + $0x1c] sm:$0xf]
  %v33 = vld [vmem:[%s1 + $0x20] sm:$0xf]
  %v34 = vld [vmem:[%s1 + $0x24] sm:$0xf]
  %v35 = vld [vmem:[%s1 + $0x28] sm:$0xf]
  %v36 = vld [vmem:[%s1 + $0x2c] sm:$0xf]
  %v37 = vld [vmem:[%s1 + $0x30] sm:$0xf]
  %v38 = vld [vmem:[%s1 + $0x34] sm:$0xf]
  %v39 = vld [vmem:[%s1 + $0x38] sm:$0xf]
  %v40 = vld [vmem:[%s1 + $0x3c] sm:$0xf]
  %v43 = vunpack.c.l.b16 %v23
  %v44 = vunpack.c.l.b16 %v24
  %v45 = vpack.c.b16 %v44, %v43
  %v63 = vunpack.c.l.b16 %v25
  %v64 = vunpack.c.l.b16 %v26
  %v65 = vunpack.c.l.b16 %v27
  %v66 = vunpack.c.l.b16 %v28
  %v67 = vunpack.c.l.b16 %v29
  %v68 = vunpack.c.l.b16 %v30
  %v69 = vunpack.c.l.b16 %v31
  %v70 = vunpack.c.l.b16 %v32
  %v71 = vunpack.c.l.b16 %v33
  %v72 = vunpack.c.l.b16 %v34
  %v73 = vunpack.c.l.b16 %v35
  %v74 = vunpack.c.l.b16 %v36
  %v75 = vunpack.c.l.b16 %v37
  %v76 = vunpack.c.l.b16 %v38
  %v77 = vunpack.c.l.b16 %v39
  %v78 = vunpack.c.l.b16 %v40
  %v79 = vpack.c.b16 %v64, %v63
  %v80 = vpack.c.b16 %v66, %v65
  %v81 = vpack.c.b16 %v68, %v67
  %v82 = vpack.c.b16 %v70, %v69
  %v83 = vpack.c.b16 %v72, %v71
  %v84 = vpack.c.b16 %v74, %v73
  %v85 = vpack.c.b16 %v76, %v75
  %v86 = vpack.c.b16 %v78, %v77
  %95 = vmatprep.subr.bf16.mxu0 0
  %96 = vmatpush1.bf16.msra.mxu0 %v79
  %97 = vmatprep.subr.bf16.mxu0 0
  %98 = vmatpush1.bf16.msra.mxu0 %v80
  %99 = vmatprep.subr.bf16.mxu0 0
  %100 = vmatpush1.bf16.msra.mxu0 %v81
  %101 = vmatprep.subr.bf16.mxu0 0
  %102 = vmatpush1.bf16.msra.mxu0 %v82
  %103 = vmatprep.subr.bf16.mxu0 0
  %104 = vmatpush1.bf16.msra.mxu0 %v83
  %105 = vmatprep.subr.bf16.mxu0 0
  %106 = vmatpush1.bf16.msra.mxu0 %v84
  %107 = vmatprep.subr.bf16.mxu0 0
  %108 = vmatpush1.bf16.msra.mxu0 %v85
  %109 = vmatprep.subr.bf16.mxu0 0
  %110 = vmatpush1.bf16.msra.mxu0 %v86
  %111 = vmatprep.subr.bf16.mxu0 0
  %112 = vmatpush1.bf16.msra.mxu0 0
  %113 = vmatprep.subr.bf16.mxu0 0
  %114 = vmatpush1.bf16.msra.mxu0 0
  %115 = vmatprep.subr.bf16.mxu0 0
  %116 = vmatpush1.bf16.msra.mxu0 0
  %117 = vmatprep.subr.bf16.mxu0 0
  %118 = vmatpush1.bf16.msra.mxu0 0
  %119 = vmatprep.subr.bf16.mxu0 0
  %120 = vmatpush1.bf16.msra.mxu0 0
  %121 = vmatprep.subr.bf16.mxu0 0
  %122 = vmatpush1.bf16.msra.mxu0 0
  %123 = vmatprep.subr.bf16.mxu0 0
  %124 = vmatpush1.bf16.msra.mxu0 0
  %125 = vmatprep.subr.bf16.mxu0 0
  %126 = vmatpush1.bf16.msra.mxu0 0
  %127 = vmatprep.mubr.bf16.mxu0 0
  %128 = vmatmul.mubr.bf16.gmra.mrb[0].mxu0 %v45
  %v129 = vpop.f32.mrb[0].mxu0
  %v130 = vadd.f32 0.0, %v129
  %v131 = vpop.f32.mrb[0].mxu0
  %v132 = vpop.f32.mrb[0].mxu0
  %v133 = vadd.f32 0.0, %v132
  %v134 = vpop.f32.mrb[0].mxu0
  %135 = vdwg.mxu0
  %v136 = vadd.f32 %v21, %v130
  %v137 = vadd.f32 %v22, %v133
  %138 = vst [vmem:[#allocation2] sm:$0xff] %v136
  %139 = vst [vmem:[#allocation2 + $0x8] sm:$0xff] %v137
  // Predicated region
  $region18: #{transformer_decoder_forward.29} parent=0 // pred_check
    %p140 = pneg %p15
  $region19: #{transformer_decoder_forward.29} parent=0 // pred_check_branch
    %142 = sbr.rel (%p140) target = $region21
  $region20: #{transformer_decoder_forward.29} parent=0 // pred_region
    %v143 = vld [vmem:[#allocation2] sm:$0xff]
    %v144 = vld [vmem:[#allocation2 + $0x8] sm:$0xff]
    %v145 = vld [vmem:[%s2] sm:$0x1]
    %v147 = vlaneseq
    %v148 = vshrl.u32 %v147, 7
    %v149 = vsub.s32 0, %v148
    %v150 = vrot.slane %v145, %v149
    %v152 = vadd.f32 %v143, %v150
    %v153 = vadd.f32 %v144, %v150
    %v154 = vpack.c.bf16 %v153, %v152
    %v156 = vunpack.c.l.b16 %v154
    %v157 = vunpack.c.h.b16 %v154
    %v158 = vpack.c.b16 %v156, %v156
    %v159 = vpack.c.b16 %v157, %v157
    %162 = vst [vmem:[%s3] sm:$0xf] %v158
    %163 = vst [vmem:[%s3 + $0x4] sm:$0xf] %v159
  $region21: #{transformer_decoder_forward.29} parent=0 // pred_fallthru
    _
  // Predicated region
  $region22: #{transformer_decoder_forward.29} parent=0 // pred_check
    _
  $region23: #{transformer_decoder_forward.29} parent=0 // pred_check_branch
    %165 = sbr.rel (0) target = $region25
  $region24: #{transformer_decoder_forward.29} parent=0 // pred_region
    _
  $region25: #{transformer_decoder_forward.29} parent=0 // pred_fallthru
    _
  // Predicated region
  $region26: #{transformer_decoder_forward.29} parent=0 // pred_check
    _
  $region27: #{transformer_decoder_forward.29} parent=0 // pred_check_branch
    %167 = sbr.rel (0) target = $region29
  $region28: #{transformer_decoder_forward.29} parent=0 // pred_region
    _
  $region29: #{transformer_decoder_forward.29} parent=0 // pred_fallthru
    _

// kernel: transformer_decoder_forward.30
$region0: #{transformer_decoder_forward.30}
  #allocation0 [shape = 'u32[]', space=smem, size = 0x4, offset = 0x4, fixed_abs, tag = 'smem constant byte address 0x4 - core index']
  #allocation1 [shape = 'u32[144,128]{1,0:T(1,128)}', space=vmem, size = 0x12000, scoped, tag = 'internal scratch']
  #allocation2 [shape = 'f32[24,128]{1,0:T(8,128)}', space=vmem, size = 0x3000, scoped, tag = 'scratch operand']
  %s0 = inlined_call_operand.vmem [shape: bf16[24,128], index: 0, kind: input, shape index: {}]
  %s1 = inlined_call_operand.vmem [shape: bf16[128,128], index: 1, kind: input, shape index: {}]
  %s2 = inlined_call_operand.vmem [shape: f32[1,128], index: 2, kind: input, shape index: {}]
  %s3 = inlined_call_operand.vmem [shape: bf16[24,128], index: 3, kind: output, shape index: {}]
  %s4 = sld [smem:[#allocation0]]
  $region30: #{transformer_decoder_forward.30} parent=0
    _
  %s6 = ssub.s32 1, %s4
  %s7 = scalar_select 0, %s6, %s4
  // Predicated region
  $region2: #{transformer_decoder_forward.30} parent=0 // pred_check
    _
  $region3: #{transformer_decoder_forward.30} parent=0 // pred_check_branch
    %9 = sbr.rel (0) target = $region5
  $region4: #{transformer_decoder_forward.30} parent=0 // pred_region
    _
  $region5: #{transformer_decoder_forward.30} parent=0 // pred_fallthru
    _
  // Predicated region
  $region6: #{transformer_decoder_forward.30} parent=0 // pred_check
    _
  $region7: #{transformer_decoder_forward.30} parent=0 // pred_check_branch
    %11 = sbr.rel (0) target = $region9
  $region8: #{transformer_decoder_forward.30} parent=0 // pred_region
    _
  $region9: #{transformer_decoder_forward.30} parent=0 // pred_fallthru
    _
  // Predicated region
  $region10: #{transformer_decoder_forward.30} parent=0 // pred_check
    _
  $region11: #{transformer_decoder_forward.30} parent=0 // pred_check_branch
    %13 = sbr.rel (0) target = $region13
  $region12: #{transformer_decoder_forward.30} parent=0 // pred_region
    _
  $region13: #{transformer_decoder_forward.30} parent=0 // pred_fallthru
    _
  %p15 = scmp.eq.s32.totalorder 0, 0
  // Predicated region
  $region14: #{transformer_decoder_forward.30} parent=0 // pred_check
    %p16 = pneg %p15
  $region15: #{transformer_decoder_forward.30} parent=0 // pred_check_branch
    %18 = sbr.rel (%p16) target = $region17
  $region16: #{transformer_decoder_forward.30} parent=0 // pred_region
    %19 = vst [vmem:[#allocation2] sm:$0xff] 0.0
    %20 = vst [vmem:[#allocation2 + $0x8] sm:$0xff] 0.0
    %21 = vst [vmem:[#allocation2 + $0x10] sm:$0xff] 0.0
  $region17: #{transformer_decoder_forward.30} parent=0 // pred_fallthru
    _
  %v22 = vld [vmem:[#allocation2] sm:$0xff]
  %v23 = vld [vmem:[#allocation2 + $0x8] sm:$0xff]
  %v24 = vld [vmem:[#allocation2 + $0x10] sm:$0xff]
  %v25 = vld [vmem:[%s0] sm:$0xf]
  %v26 = vld [vmem:[%s0 + $0x4] sm:$0xf]
  %v27 = vld [vmem:[%s0 + $0x8] sm:$0xf]
  %v28 = vld [vmem:[%s1] sm:$0xf]
  %v29 = vld [vmem:[%s1 + $0x4] sm:$0xf]
  %v30 = vld [vmem:[%s1 + $0x8] sm:$0xf]
  %v31 = vld [vmem:[%s1 + $0xc] sm:$0xf]
  %v32 = vld [vmem:[%s1 + $0x10] sm:$0xf]
  %v33 = vld [vmem:[%s1 + $0x14] sm:$0xf]
  %v34 = vld [vmem:[%s1 + $0x18] sm:$0xf]
  %v35 = vld [vmem:[%s1 + $0x1c] sm:$0xf]
  %v36 = vld [vmem:[%s1 + $0x20] sm:$0xf]
  %v37 = vld [vmem:[%s1 + $0x24] sm:$0xf]
  %v38 = vld [vmem:[%s1 + $0x28] sm:$0xf]
  %v39 = vld [vmem:[%s1 + $0x2c] sm:$0xf]
  %v40 = vld [vmem:[%s1 + $0x30] sm:$0xf]
  %v41 = vld [vmem:[%s1 + $0x34] sm:$0xf]
  %v42 = vld [vmem:[%s1 + $0x38] sm:$0xf]
  %v43 = vld [vmem:[%s1 + $0x3c] sm:$0xf]
  %v47 = vunpack.c.l.b16 %v25
  %v48 = vunpack.c.l.b16 %v26
  %v49 = vunpack.c.l.b16 %v27
  %v50 = vpack.c.b16 %v48, %v47
  %v51 = vpack.c.b16 %v49, %v49
  %v70 = vunpack.c.l.b16 %v28
  %v71 = vunpack.c.l.b16 %v29
  %v72 = vunpack.c.l.b16 %v30
  %v73 = vunpack.c.l.b16 %v31
  %v74 = vunpack.c.l.b16 %v32
  %v75 = vunpack.c.l.b16 %v33
  %v76 = vunpack.c.l.b16 %v34
  %v77 = vunpack.c.l.b16 %v35
  %v78 = vunpack.c.l.b16 %v36
  %v79 = vunpack.c.l.b16 %v37
  %v80 = vunpack.c.l.b16 %v38
  %v81 = vunpack.c.l.b16 %v39
  %v82 = vunpack.c.l.b16 %v40
  %v83 = vunpack.c.l.b16 %v41
  %v84 = vunpack.c.l.b16 %v42
  %v85 = vunpack.c.l.b16 %v43
  %v86 = vpack.c.b16 %v71, %v70
  %v87 = vpack.c.b16 %v73, %v72
  %v88 = vpack.c.b16 %v75, %v74
  %v89 = vpack.c.b16 %v77, %v76
  %v90 = vpack.c.b16 %v79, %v78
  %v91 = vpack.c.b16 %v81, %v80
  %v92 = vpack.c.b16 %v83, %v82
  %v93 = vpack.c.b16 %v85, %v84
  %102 = vmatprep.subr.bf16.mxu0 0
  %103 = vmatpush1.bf16.msra.mxu0 %v86
  %104 = vmatprep.subr.bf16.mxu0 0
  %105 = vmatpush1.bf16.msra.mxu0 %v87
  %106 = vmatprep.subr.bf16.mxu0 0
  %107 = vmatpush1.bf16.msra.mxu0 %v88
  %108 = vmatprep.subr.bf16.mxu0 0
  %109 = vmatpush1.bf16.msra.mxu0 %v89
  %110 = vmatprep.subr.bf16.mxu0 0
  %111 = vmatpush1.bf16.msra.mxu0 %v90
  %112 = vmatprep.subr.bf16.mxu0 0
  %113 = vmatpush1.bf16.msra.mxu0 %v91
  %114 = vmatprep.subr.bf16.mxu0 0
  %115 = vmatpush1.bf16.msra.mxu0 %v92
  %116 = vmatprep.subr.bf16.mxu0 0
  %117 = vmatpush1.bf16.msra.mxu0 %v93
  %118 = vmatprep.subr.bf16.mxu0 0
  %119 = vmatpush1.bf16.msra.mxu0 0
  %120 = vmatprep.subr.bf16.mxu0 0
  %121 = vmatpush1.bf16.msra.mxu0 0
  %122 = vmatprep.subr.bf16.mxu0 0
  %123 = vmatpush1.bf16.msra.mxu0 0
  %124 = vmatprep.subr.bf16.mxu0 0
  %125 = vmatpush1.bf16.msra.mxu0 0
  %126 = vmatprep.subr.bf16.mxu0 0
  %127 = vmatpush1.bf16.msra.mxu0 0
  %128 = vmatprep.subr.bf16.mxu0 0
  %129 = vmatpush1.bf16.msra.mxu0 0
  %130 = vmatprep.subr.bf16.mxu0 0
  %131 = vmatpush1.bf16.msra.mxu0 0
  %132 = vmatprep.subr.bf16.mxu0 0
  %133 = vmatpush1.bf16.msra.mxu0 0
  %134 = vmatprep.mubr.bf16.mxu0 0
  %135 = vmatmul.mubr.bf16.gmra.mrb[0].mxu0 %v50
  %v136 = vpop.f32.mrb[0].mxu0
  %v137 = vadd.f32 0.0, %v136
  %v138 = vpop.f32.mrb[0].mxu0
  %v139 = vpop.f32.mrb[0].mxu0
  %v140 = vadd.f32 0.0, %v139
  %v141 = vpop.f32.mrb[0].mxu0
  %142 = vmatprep.mubr.bf16.mxu0 0
  %143 = vmatmul.mubr.bf16.gmra.mrb[0].mxu0 %v51
  %v144 = vpop.f32.mrb[0].mxu0
  %v145 = vadd.f32 0.0, %v144
  %v146 = vpop.f32.mrb[0].mxu0
  %v147 = vpop.f32.mrb[0].mxu0
  %v148 = vpop.f32.mrb[0].mxu0
  %149 = vdwg.mxu0
  %v150 = vadd.f32 %v22, %v137
  %v151 = vadd.f32 %v23, %v140
  %v152 = vadd.f32 %v24, %v145
  %153 = vst [vmem:[#allocation2] sm:$0xff] %v150
  %154 = vst [vmem:[#allocation2 + $0x8] sm:$0xff] %v151
  %155 = vst [vmem:[#allocation2 + $0x10] sm:$0xff] %v152
  // Predicated region
  $region18: #{transformer_decoder_forward.30} parent=0 // pred_check
    %p156 = pneg %p15
  $region19: #{transformer_decoder_forward.30} parent=0 // pred_check_branch
    %158 = sbr.rel (%p156) target = $region21
  $region20: #{transformer_decoder_forward.30} parent=0 // pred_region
    %v159 = vld [vmem:[#allocation2] sm:$0xff]
    %v160 = vld [vmem:[#allocation2 + $0x8] sm:$0xff]
    %v161 = vld [vmem:[#allocation2 + $0x10] sm:$0xff]
    %v162 = vld [vmem:[%s2] sm:$0x1]
    %v164 = vlaneseq
    %v165 = vshrl.u32 %v164, 7
    %v166 = vsub.s32 0, %v165
    %v167 = vrot.slane %v162, %v166
    %v169 = vadd.f32 %v159, %v167
    %v170 = vadd.f32 %v160, %v167
    %v171 = vadd.f32 %v161, %v167
    %v172 = vpack.c.bf16 %v170, %v169
    %v173 = vpack.c.bf16 %v171, %v171
    %v176 = vunpack.c.l.b16 %v172
    %v177 = vunpack.c.h.b16 %v172
    %v178 = vunpack.c.l.b16 %v173
    %v179 = vpack.c.b16 %v176, %v176
    %v180 = vpack.c.b16 %v177, %v177
    %v181 = vpack.c.b16 %v178, %v178
    %185 = vst [vmem:[%s3] sm:$0xf] %v179
    %186 = vst [vmem:[%s3 + $0x4] sm:$0xf] %v180
    %187 = vst [vmem:[%s3 + $0x8] sm:$0xf] %v181
  $region21: #{transformer_decoder_forward.30} parent=0 // pred_fallthru
    _
  // Predicated region
  $region22: #{transformer_decoder_forward.30} parent=0 // pred_check
    _
  $region23: #{transformer_decoder_forward.30} parent=0 // pred_check_branch
    %189 = sbr.rel (0) target = $region25
  $region24: #{transformer_decoder_forward.30} parent=0 // pred_region
    _
  $region25: #{transformer_decoder_forward.30} parent=0 // pred_fallthru
    _
  // Predicated region
  $region26: #{transformer_decoder_forward.30} parent=0 // pred_check
    _
  $region27: #{transformer_decoder_forward.30} parent=0 // pred_check_branch
    %191 = sbr.rel (0) target = $region29
  $region28: #{transformer_decoder_forward.30} parent=0 // pred_region
    _
  $region29: #{transformer_decoder_forward.30} parent=0 // pred_fallthru
    _

// kernel: transformer_decoder_forward.34
$region0: #{transformer_decoder_forward.34}
  #allocation0 [shape = 'u32[]', space=smem, size = 0x4, offset = 0x4, fixed_abs, tag = 'smem constant byte address 0x4 - core index']
  #allocation1 [shape = 'u32[144,128]{1,0:T(1,128)}', space=vmem, size = 0x12000, scoped, tag = 'internal scratch']
  #allocation2 [shape = 'f32[16,128]{1,0:T(8,128)}', space=vmem, size = 0x2000, scoped, tag = 'scratch operand']
  %s0 = inlined_call_operand.vmem [shape: bf16[16,128], index: 0, kind: input, shape index: {}]
  %s1 = inlined_call_operand.vmem [shape: bf16[128,128], index: 1, kind: input, shape index: {}]
  %s2 = inlined_call_operand.vmem [shape: f32[1,128], index: 2, kind: input, shape index: {}]
  %s3 = inlined_call_operand.vmem [shape: f32[16,128], index: 3, kind: output, shape index: {}]
  %s4 = sld [smem:[#allocation0]]
  $region30: #{transformer_decoder_forward.34} parent=0
    _
  %s6 = ssub.s32 1, %s4
  %s7 = scalar_select 0, %s6, %s4
  // Predicated region
  $region2: #{transformer_decoder_forward.34} parent=0 // pred_check
    _
  $region3: #{transformer_decoder_forward.34} parent=0 // pred_check_branch
    %9 = sbr.rel (0) target = $region5
  $region4: #{transformer_decoder_forward.34} parent=0 // pred_region
    _
  $region5: #{transformer_decoder_forward.34} parent=0 // pred_fallthru
    _
  // Predicated region
  $region6: #{transformer_decoder_forward.34} parent=0 // pred_check
    _
  $region7: #{transformer_decoder_forward.34} parent=0 // pred_check_branch
    %11 = sbr.rel (0) target = $region9
  $region8: #{transformer_decoder_forward.34} parent=0 // pred_region
    _
  $region9: #{transformer_decoder_forward.34} parent=0 // pred_fallthru
    _
  // Predicated region
  $region10: #{transformer_decoder_forward.34} parent=0 // pred_check
    _
  $region11: #{transformer_decoder_forward.34} parent=0 // pred_check_branch
    %13 = sbr.rel (0) target = $region13
  $region12: #{transformer_decoder_forward.34} parent=0 // pred_region
    _
  $region13: #{transformer_decoder_forward.34} parent=0 // pred_fallthru
    _
  %p15 = scmp.eq.s32.totalorder 0, 0
  // Predicated region
  $region14: #{transformer_decoder_forward.34} parent=0 // pred_check
    %p16 = pneg %p15
  $region15: #{transformer_decoder_forward.34} parent=0 // pred_check_branch
    %18 = sbr.rel (%p16) target = $region17
  $region16: #{transformer_decoder_forward.34} parent=0 // pred_region
    %19 = vst [vmem:[#allocation2] sm:$0xff] 0.0
    %20 = vst [vmem:[#allocation2 + $0x8] sm:$0xff] 0.0
  $region17: #{transformer_decoder_forward.34} parent=0 // pred_fallthru
    _
  %v21 = vld [vmem:[#allocation2] sm:$0xff]
  %v22 = vld [vmem:[#allocation2 + $0x8] sm:$0xff]
  %v23 = vld [vmem:[%s0] sm:$0xf]
  %v24 = vld [vmem:[%s0 + $0x4] sm:$0xf]
  %v25 = vld [vmem:[%s1] sm:$0xf]
  %v26 = vld [vmem:[%s1 + $0x4] sm:$0xf]
  %v27 = vld [vmem:[%s1 + $0x8] sm:$0xf]
  %v28 = vld [vmem:[%s1 + $0xc] sm:$0xf]
  %v29 = vld [vmem:[%s1 + $0x10] sm:$0xf]
  %v30 = vld [vmem:[%s1 + $0x14] sm:$0xf]
  %v31 = vld [vmem:[%s1 + $0x18] sm:$0xf]
  %v32 = vld [vmem:[%s1 + $0x1c] sm:$0xf]
  %v33 = vld [vmem:[%s1 + $0x20] sm:$0xf]
  %v34 = vld [vmem:[%s1 + $0x24] sm:$0xf]
  %v35 = vld [vmem:[%s1 + $0x28] sm:$0xf]
  %v36 = vld [vmem:[%s1 + $0x2c] sm:$0xf]
  %v37 = vld [vmem:[%s1 + $0x30] sm:$0xf]
  %v38 = vld [vmem:[%s1 + $0x34] sm:$0xf]
  %v39 = vld [vmem:[%s1 + $0x38] sm:$0xf]
  %v40 = vld [vmem:[%s1 + $0x3c] sm:$0xf]
  %v43 = vunpack.c.l.b16 %v23
  %v44 = vunpack.c.l.b16 %v24
  %v45 = vpack.c.b16 %v44, %v43
  %v63 = vunpack.c.l.b16 %v25
  %v64 = vunpack.c.l.b16 %v26
  %v65 = vunpack.c.l.b16 %v27
  %v66 = vunpack.c.l.b16 %v28
  %v67 = vunpack.c.l.b16 %v29
  %v68 = vunpack.c.l.b16 %v30
  %v69 = vunpack.c.l.b16 %v31
  %v70 = vunpack.c.l.b16 %v32
  %v71 = vunpack.c.l.b16 %v33
  %v72 = vunpack.c.l.b16 %v34
  %v73 = vunpack.c.l.b16 %v35
  %v74 = vunpack.c.l.b16 %v36
  %v75 = vunpack.c.l.b16 %v37
  %v76 = vunpack.c.l.b16 %v38
  %v77 = vunpack.c.l.b16 %v39
  %v78 = vunpack.c.l.b16 %v40
  %v79 = vpack.c.b16 %v64, %v63
  %v80 = vpack.c.b16 %v66, %v65
  %v81 = vpack.c.b16 %v68, %v67
  %v82 = vpack.c.b16 %v70, %v69
  %v83 = vpack.c.b16 %v72, %v71
  %v84 = vpack.c.b16 %v74, %v73
  %v85 = vpack.c.b16 %v76, %v75
  %v86 = vpack.c.b16 %v78, %v77
  %95 = vmatprep.subr.bf16.mxu0 0
  %96 = vmatpush1.bf16.msra.mxu0 %v79
  %97 = vmatprep.subr.bf16.mxu0 0
  %98 = vmatpush1.bf16.msra.mxu0 %v80
  %99 = vmatprep.subr.bf16.mxu0 0
  %100 = vmatpush1.bf16.msra.mxu0 %v81
  %101 = vmatprep.subr.bf16.mxu0 0
  %102 = vmatpush1.bf16.msra.mxu0 %v82
  %103 = vmatprep.subr.bf16.mxu0 0
  %104 = vmatpush1.bf16.msra.mxu0 %v83
  %105 = vmatprep.subr.bf16.mxu0 0
  %106 = vmatpush1.bf16.msra.mxu0 %v84
  %107 = vmatprep.subr.bf16.mxu0 0
  %108 = vmatpush1.bf16.msra.mxu0 %v85
  %109 = vmatprep.subr.bf16.mxu0 0
  %110 = vmatpush1.bf16.msra.mxu0 %v86
  %111 = vmatprep.subr.bf16.mxu0 0
  %112 = vmatpush1.bf16.msra.mxu0 0
  %113 = vmatprep.subr.bf16.mxu0 0
  %114 = vmatpush1.bf16.msra.mxu0 0
  %115 = vmatprep.subr.bf16.mxu0 0
  %116 = vmatpush1.bf16.msra.mxu0 0
  %117 = vmatprep.subr.bf16.mxu0 0
  %118 = vmatpush1.bf16.msra.mxu0 0
  %119 = vmatprep.subr.bf16.mxu0 0
  %120 = vmatpush1.bf16.msra.mxu0 0
  %121 = vmatprep.subr.bf16.mxu0 0
  %122 = vmatpush1.bf16.msra.mxu0 0
  %123 = vmatprep.subr.bf16.mxu0 0
  %124 = vmatpush1.bf16.msra.mxu0 0
  %125 = vmatprep.subr.bf16.mxu0 0
  %126 = vmatpush1.bf16.msra.mxu0 0
  %127 = vmatprep.mubr.bf16.mxu0 0
  %128 = vmatmul.mubr.bf16.gmra.mrb[0].mxu0 %v45
  %v129 = vpop.f32.mrb[0].mxu0
  %v130 = vadd.f32 0.0, %v129
  %v131 = vpop.f32.mrb[0].mxu0
  %v132 = vpop.f32.mrb[0].mxu0
  %v133 = vadd.f32 0.0, %v132
  %v134 = vpop.f32.mrb[0].mxu0
  %135 = vdwg.mxu0
  %v136 = vadd.f32 %v21, %v130
  %v137 = vadd.f32 %v22, %v133
  %138 = vst [vmem:[#allocation2] sm:$0xff] %v136
  %139 = vst [vmem:[#allocation2 + $0x8] sm:$0xff] %v137
  // Predicated region
  $region18: #{transformer_decoder_forward.34} parent=0 // pred_check
    %p140 = pneg %p15
  $region19: #{transformer_decoder_forward.34} parent=0 // pred_check_branch
    %142 = sbr.rel (%p140) target = $region21
  $region20: #{transformer_decoder_forward.34} parent=0 // pred_region
    %v143 = vld [vmem:[#allocation2] sm:$0xff]
    %v144 = vld [vmem:[#allocation2 + $0x8] sm:$0xff]
    %v145 = vld [vmem:[%s2] sm:$0x1]
    %v147 = vlaneseq
    %v148 = vshrl.u32 %v147, 7
    %v149 = vsub.s32 0, %v148
    %v150 = vrot.slane %v145, %v149
    %v152 = vadd.f32 %v143, %v150
    %v153 = vadd.f32 %v144, %v150
    %v154 = vmax.f32 %v152, 0.0
    %v155 = vmax.f32 %v153, 0.0
    %156 = vst [vmem:[%s3] sm:$0xff] %v154
    %157 = vst [vmem:[%s3 + $0x8] sm:$0xff] %v155
  $region21: #{transformer_decoder_forward.34} parent=0 // pred_fallthru
    _
  // Predicated region
  $region22: #{transformer_decoder_forward.34} parent=0 // pred_check
    _
  $region23: #{transformer_decoder_forward.34} parent=0 // pred_check_branch
    %159 = sbr.rel (0) target = $region25
  $region24: #{transformer_decoder_forward.34} parent=0 // pred_region
    _
  $region25: #{transformer_decoder_forward.34} parent=0 // pred_fallthru
    _
  // Predicated region
  $region26: #{transformer_decoder_forward.34} parent=0 // pred_check
    _
  $region27: #{transformer_decoder_forward.34} parent=0 // pred_check_branch
    %161 = sbr.rel (0) target = $region29
  $region28: #{transformer_decoder_forward.34} parent=0 // pred_region
    _
  $region29: #{transformer_decoder_forward.34} parent=0 // pred_fallthru
    _

// kernel: transformer_decoder_forward.31
$region0: #{transformer_decoder_forward.31}
  #allocation0 [shape = 'u32[]', space=smem, size = 0x4, offset = 0x4, fixed_abs, tag = 'smem constant byte address 0x4 - core index']
  #allocation1 [shape = 'u32[144,128]{1,0:T(1,128)}', space=vmem, size = 0x12000, scoped, tag = 'internal scratch']
  %s0 = inlined_call_operand.vmem [shape: bf16[2,8,32], index: 0, kind: input, shape index: {}]
  %s1 = inlined_call_operand.vmem [shape: bf16[2,12,32], index: 1, kind: input, shape index: {}]
  %s2 = inlined_call_operand.vmem [shape: bf16[2,12,32], index: 2, kind: input, shape index: {}]
  %s3 = inlined_call_operand.vmem [shape: bf16[2,8,32], index: 3, kind: output, shape index: {}]
  %s4 = sld [smem:[#allocation0]]
  $region45: #{transformer_decoder_forward.31} parent=0
    _
  %s6 = ssub.s32 1, %s4
  %s7 = scalar_select 0, %s6, %s4
  loop: start=0, step=1, limit=4
  $region2: #{transformer_decoder_forward.31} parent=0 // loop_pre_header
    _
  $region3: #{transformer_decoder_forward.31} parent=0 // loop_header
    %s9 = sphi 0, %s13
    %p10 = scmp.ge.s32.totalorder %s9, 4
    %s19 = sphi 0, %s21
    %s22 = sphi 0, %s19
    %s23 = sphi 0, %s22
    %s39 = sphi 0, %s23
    %s45 = sphi 0, %s47
    %s48 = sphi 0, %s45
    %s49 = sphi 0, %s48
    %s65 = sphi 0, %s49
    %s71 = sphi 0, %s73
    %s74 = sphi 0, %s71
    %s75 = sphi 0, %s74
    %s91 = sphi 0, %s75
    %s97 = sphi 0, %s99
    %s100 = sphi 0, %s97
    %s101 = sphi 0, %s100
    %s117 = sphi 0, %s101
  $region4: #{transformer_decoder_forward.31} parent=0 // loop_header_branch
    %12 = sbr.rel (%p10) target = $region8
  $region5: #{transformer_decoder_forward.31} parent=0 // loop_body
    %s14 = ssub.s32 %s9, 1
    %s15 = ssub.s32 %s9, 2
    %s16 = sadd.s32 %s9, 1
    %s17 = ssub.s32 %s9, %s16
    %p18 = scmp.eq.s32.totalorder %s17, 0
    %s20 = sadd.s32 %s19, 1
    %s21 = scalar_select %p18, %s19, %s20
    %p24 = pneg %p18
    %p25 = scmp.eq.s32.totalorder %s9, 1
    %p26 = por %p24, %p25
    %p27 = scmp.ne.s32.totalorder %s19, %s22
    %p28 = scmp.eq.s32.totalorder %s9, 0
    %p29 = por %p27, %p28
    %p30 = scmp.ne.s32.totalorder %s19, %s22
    %p31 = scmp.eq.s32.totalorder %s14, 1
    %p32 = por %p30, %p31
    %p33 = scmp.ne.s32.totalorder %s22, %s23
    %p34 = scmp.eq.s32.totalorder %s14, 0
    %p35 = por %p33, %p34
    %p36 = scmp.ne.s32.totalorder %s22, %s23
    %p37 = scmp.eq.s32.totalorder %s15, 1
    %p38 = por %p36, %p37
    %p40 = scmp.ne.s32.totalorder %s23, %s39
    %p41 = scmp.eq.s32.totalorder %s15, 0
    %p42 = por %p40, %p41
    %s43 = ssub.s32 %s9, %s16
    %p44 = scmp.eq.s32.totalorder %s43, 0
    %s46 = sadd.s32 %s45, 1
    %s47 = scalar_select %p44, %s45, %s46
    %p50 = pneg %p44
    %p51 = scmp.eq.s32.totalorder %s9, 1
    %p52 = por %p50, %p51
    %p53 = scmp.ne.s32.totalorder %s45, %s48
    %p54 = scmp.eq.s32.totalorder %s9, 0
    %p55 = por %p53, %p54
    %p56 = scmp.ne.s32.totalorder %s45, %s48
    %p57 = scmp.eq.s32.totalorder %s14, 1
    %p58 = por %p56, %p57
    %p59 = scmp.ne.s32.totalorder %s48, %s49
    %p60 = scmp.eq.s32.totalorder %s14, 0
    %p61 = por %p59, %p60
    %p62 = scmp.ne.s32.totalorder %s48, %s49
    %p63 = scmp.eq.s32.totalorder %s15, 1
    %p64 = por %p62, %p63
    %p66 = scmp.ne.s32.totalorder %s49, %s65
    %p67 = scmp.eq.s32.totalorder %s15, 0
    %p68 = por %p66, %p67
    %s69 = ssub.s32 %s9, %s16
    %p70 = scmp.eq.s32.totalorder %s69, 0
    %s72 = sadd.s32 %s71, 1
    %s73 = scalar_select %p70, %s71, %s72
    %p76 = pneg %p70
    %p77 = scmp.eq.s32.totalorder %s9, 1
    %p78 = por %p76, %p77
    %p79 = scmp.ne.s32.totalorder %s71, %s74
    %p80 = scmp.eq.s32.totalorder %s9, 0
    %p81 = por %p79, %p80
    %p82 = scmp.ne.s32.totalorder %s71, %s74
    %p83 = scmp.eq.s32.totalorder %s14, 1
    %p84 = por %p82, %p83
    %p85 = scmp.ne.s32.totalorder %s74, %s75
    %p86 = scmp.eq.s32.totalorder %s14, 0
    %p87 = por %p85, %p86
    %p88 = scmp.ne.s32.totalorder %s74, %s75
    %p89 = scmp.eq.s32.totalorder %s15, 1
    %p90 = por %p88, %p89
    %p92 = scmp.ne.s32.totalorder %s75, %s91
    %p93 = scmp.eq.s32.totalorder %s15, 0
    %p94 = por %p92, %p93
    %s95 = ssub.s32 %s9, %s16
    %p96 = scmp.eq.s32.totalorder %s95, 0
    %s98 = sadd.s32 %s97, 1
    %s99 = scalar_select %p96, %s97, %s98
    %p102 = pneg %p96
    %p103 = scmp.eq.s32.totalorder %s9, 1
    %p104 = por %p102, %p103
    %p105 = scmp.ne.s32.totalorder %s97, %s100
    %p106 = scmp.eq.s32.totalorder %s9, 0
    %p107 = por %p105, %p106
    %p108 = scmp.ne.s32.totalorder %s97, %s100
    %p109 = scmp.eq.s32.totalorder %s14, 1
    %p110 = por %p108, %p109
    %p111 = scmp.ne.s32.totalorder %s100, %s101
    %p112 = scmp.eq.s32.totalorder %s14, 0
    %p113 = por %p111, %p112
    %p114 = scmp.ne.s32.totalorder %s100, %s101
    %p115 = scmp.eq.s32.totalorder %s15, 1
    %p116 = por %p114, %p115
    %p118 = scmp.ne.s32.totalorder %s101, %s117
    %p119 = scmp.eq.s32.totalorder %s15, 0
    %p120 = por %p118, %p119
    %p121 = scmp.le.s32.totalorder 1, %s9
    %p122 = scmp.lt.s32.totalorder %s9, 3
    %p123 = pnand %p121, %p122
    %p124 = pneg %p123
    // Predicated region
    $region9: #{transformer_decoder_forward.31} parent=5 // pred_check
      _
    $region10: #{transformer_decoder_forward.31} parent=5 // pred_check_branch
      %126 = sbr.rel (%p123) target = $region12
    $region11: #{transformer_decoder_forward.31} parent=5 // pred_region
      %s127 = ssub.s32 %s9, 1
    $region12: #{transformer_decoder_forward.31} parent=5 // pred_fallthru
      _
    %p128 = scmp.lt.s32.totalorder %s9, 2
    // Predicated region
    $region13: #{transformer_decoder_forward.31} parent=5 // pred_check
      %p129 = pneg %p128
    $region14: #{transformer_decoder_forward.31} parent=5 // pred_check_branch
      %131 = sbr.rel (%p129) target = $region16
    $region15: #{transformer_decoder_forward.31} parent=5 // pred_region
      // Predicated region
      $region17: #{transformer_decoder_forward.31} parent=15 // pred_check
        %p132 = pneg %p29
      $region18: #{transformer_decoder_forward.31} parent=15 // pred_check_branch
        %134 = sbr.rel (%p132) target = $region20
      $region19: #{transformer_decoder_forward.31} parent=15 // pred_region
        %p135 = scmp.lt.s32.totalorder %s9, 1
        %s136 = scalar_select %p135, %s9, 1
        %s137 = smul.addr %s136, 4
        %s138 = scalar_lea.vmem %s0, %s137
      $region20: #{transformer_decoder_forward.31} parent=15 // pred_fallthru
        _
      // Predicated region
      $region21: #{transformer_decoder_forward.31} parent=15 // pred_check
        %p139 = pneg %p55
      $region22: #{transformer_decoder_forward.31} parent=15 // pred_check_branch
        %141 = sbr.rel (%p139) target = $region24
      $region23: #{transformer_decoder_forward.31} parent=15 // pred_region
        %p142 = scmp.lt.s32.totalorder %s9, 1
        %s143 = scalar_select %p142, %s9, 1
        %s144 = smul.addr %s143, 2
        %s145 = smul.addr %s144, 4
        %s146 = scalar_lea.vmem %s1, %s145
      $region24: #{transformer_decoder_forward.31} parent=15 // pred_fallthru
        _
      // Predicated region
      $region25: #{transformer_decoder_forward.31} parent=15 // pred_check
        %p147 = pneg %p81
      $region26: #{transformer_decoder_forward.31} parent=15 // pred_check_branch
        %149 = sbr.rel (%p147) target = $region28
      $region27: #{transformer_decoder_forward.31} parent=15 // pred_region
        %p150 = scmp.lt.s32.totalorder %s9, 1
        %s151 = scalar_select %p150, %s9, 1
        %s152 = smul.addr %s151, 2
        %s153 = smul.addr %s152, 4
        %s154 = scalar_lea.vmem %s2, %s153
      $region28: #{transformer_decoder_forward.31} parent=15 // pred_fallthru
        _
    $region16: #{transformer_decoder_forward.31} parent=5 // pred_fallthru
      _
    %p155 = scmp.le.s32.totalorder 1, %s9
    %p156 = scmp.lt.s32.totalorder %s9, 3
    %p157 = pnand %p155, %p156
    %p158 = pneg %p157
    // Predicated region
    $region29: #{transformer_decoder_forward.31} parent=5 // pred_check
      _
    $region30: #{transformer_decoder_forward.31} parent=5 // pred_check_branch
      %160 = sbr.rel (%p157) target = $region32
    $region31: #{transformer_decoder_forward.31} parent=5 // pred_region
      %s161 = ssub.s32 %s9, 1
      %p162 = scmp.lt.s32.totalorder %s14, 1
      %s163 = scalar_select %p162, %s14, 1
      %s164 = smul.addr %s163, 4
      %s165 = scalar_lea.vmem %s0, %s164
      %p166 = pneg %p35
      %p167 = pneg %p32
      %p168 = scmp.lt.s32.totalorder %s14, 1
      %s169 = scalar_select %p168, %s14, 1
      %s170 = smul.addr %s169, 2
      %s171 = smul.addr %s170, 4
      %s172 = scalar_lea.vmem %s1, %s171
      %p173 = pneg %p61
      %p174 = pneg %p58
      %p175 = scmp.lt.s32.totalorder %s14, 1
      %s176 = scalar_select %p175, %s14, 1
      %s177 = smul.addr %s176, 2
      %s178 = smul.addr %s177, 4
      %s179 = scalar_lea.vmem %s2, %s178
      %p180 = pneg %p87
      %p181 = pneg %p84
      %p182 = pneg %p113
      %p183 = pneg %p110
      %p184 = scmp.lt.s32.totalorder %s14, 1
      %s185 = scalar_select %p184, %s14, 1
      %s186 = smul.addr %s185, 4
      %s187 = scalar_lea.vmem %s3, %s186
      %p188 = scmp.lt.s32.totalorder %s14, 1
      %s189 = scalar_select %p188, %s14, 1
      %s190 = smul.addr %s189, 4
      %s191 = scalar_lea.vmem %s0, %s190
      %p192 = scmp.lt.s32.totalorder %s14, 1
      %s193 = scalar_select %p192, %s14, 1
      %s194 = smul.addr %s193, 2
      %s195 = smul.addr %s194, 4
      %s196 = scalar_lea.vmem %s1, %s195
      %p197 = scmp.lt.s32.totalorder %s14, 1
      %s198 = scalar_select %p197, %s14, 1
      %s199 = smul.addr %s198, 2
      %s200 = smul.addr %s199, 4
      %s201 = scalar_lea.vmem %s2, %s200
      %p202 = scmp.lt.s32.totalorder %s14, 1
      %s203 = scalar_select %p202, %s14, 1
      %s204 = smul.addr %s203, 4
      %s205 = scalar_lea.vmem %s3, %s204
      %v207 = vld [vmem:[%s191] sm:$0xf]
      %v208 = vld [vmem:[%s196] sm:$0xf]
      %v209 = vld [vmem:[%s196 + $0x4] sm:$0x3]
      %v210 = vld [vmem:[%s201] sm:$0xf]
      %v211 = vld [vmem:[%s201 + $0x4] sm:$0x3]
      %v212 = vunpack.c.l.bf16 %v207
      %v213 = vmul.f32 %v212, 0.17677669
      %v214 = vpack.c.bf16 %v213, %v213
      %v217 = vunpack.c.l.b16 %v208
      %v218 = vunpack.c.l.b16 %v209
      %v219 = vpack.c.b16 %v218, %v217
      %vm220 = vcmask 64512
      %v222 = vsel %vm220, %v214, 0
      %v225 = vsel %vm220, %v219, 0
      %227 = vmatprep.subr.bf16.mxu0 0
      %228 = vmatpush1.bf16.xpose.msra.mxu0 %v225
      %229 = vmatprep.subr.bf16.mxu0 0
      %230 = vmatpush1.bf16.xpose.msra.mxu0 0
      %231 = vmatprep.subr.bf16.mxu0 0
      %232 = vmatpush1.bf16.xpose.msra.mxu0 0
      %233 = vmatprep.subr.bf16.mxu0 0
      %234 = vmatpush1.bf16.xpose.msra.mxu0 0
      %235 = vmatprep.subr.bf16.mxu0 0
      %236 = vmatpush1.bf16.xpose.msra.mxu0 0
      %237 = vmatprep.subr.bf16.mxu0 0
      %238 = vmatpush1.bf16.xpose.msra.mxu0 0
      %239 = vmatprep.subr.bf16.mxu0 0
      %240 = vmatpush1.bf16.xpose.msra.mxu0 0
      %241 = vmatprep.subr.bf16.mxu0 0
      %242 = vmatpush1.bf16.xpose.msra.mxu0 0
      %243 = vmatprep.subr.bf16.mxu0 0
      %244 = vmatpush1.bf16.xpose.msra.mxu0 0
      %245 = vmatprep.subr.bf16.mxu0 0
      %246 = vmatpush1.bf16.xpose.msra.mxu0 0
      %247 = vmatprep.subr.bf16.mxu0 0
      %248 = vmatpush1.bf16.xpose.msra.mxu0 0
      %249 = vmatprep.subr.bf16.mxu0 0
      %250 = vmatpush1.bf16.xpose.msra.mxu0 0
      %251 = vmatprep.subr.bf16.mxu0 0
      %252 = vmatpush1.bf16.xpose.msra.mxu0 0
      %253 = vmatprep.subr.bf16.mxu0 0
      %254 = vmatpush1.bf16.xpose.msra.mxu0 0
      %255 = vmatprep.subr.bf16.mxu0 0
      %256 = vmatpush1.bf16.xpose.msra.mxu0 0
      %257 = vmatprep.subr.bf16.mxu0 0
      %258 = vmatpush1.bf16.xpose.msra.mxu0 0
      %259 = vmatprep.mubr.bf16.mxu0 0
      %260 = vmatmul.mubr.bf16.gmra.mrb[0].mxu0 %v222
      %v261 = vpop.f32.mrb[0].mxu0
      %v262 = vadd.f32 0.0, %v261
      %v263 = vpop.f32.mrb[0].mxu0
      %v264 = vpop.f32.mrb[0].mxu0
      %v265 = vpop.f32.mrb[0].mxu0
      %266 = vdwg.mxu0
      %vm267 = vcmask 97280
      %v268 = vsel %vm267, %v262, -inf
      %269 = vmax.xlane.f32.xlu0 %v268
      %v270 = vpop.xlane.xlu0 %269
      %v271 = vsub.f32 %v262, %v270
      %v272 = vmul.f32 %v271, 1.442695
      %v273 = vpow.pop %v272
      %v274 = vsel %vm267, %v273, 0.0
      %275 = vadd.xlane.f32.xlu0 %v274
      %v276 = vpop.xlane.xlu0 %275
      %v277 = vrcp.pop %v276
      %v278 = vmul.f32 %v273, %v277
      %v279 = vpack.c.bf16 %v278, %v278
      %v282 = vunpack.c.l.b16 %v210
      %v283 = vunpack.c.l.b16 %v211
      %v284 = vpack.c.b16 %v283, %v282
      %v286 = vsel %vm267, %v279, 0
      %vm288 = vcmask 1045504
      %v290 = vsel %vm288, %v284, 0
      %292 = vmatprep.subr.bf16.mxu0 0
      %293 = vmatpush1.bf16.msra.mxu0 %v290
      %294 = vmatprep.subr.bf16.mxu0 0
      %295 = vmatpush1.bf16.msra.mxu0 0
      %296 = vmatprep.subr.bf16.mxu0 0
      %297 = vmatpush1.bf16.msra.mxu0 0
      %298 = vmatprep.subr.bf16.mxu0 0
      %299 = vmatpush1.bf16.msra.mxu0 0
      %300 = vmatprep.subr.bf16.mxu0 0
      %301 = vmatpush1.bf16.msra.mxu0 0
      %302 = vmatprep.subr.bf16.mxu0 0
      %303 = vmatpush1.bf16.msra.mxu0 0
      %304 = vmatprep.subr.bf16.mxu0 0
      %305 = vmatpush1.bf16.msra.mxu0 0
      %306 = vmatprep.subr.bf16.mxu0 0
      %307 = vmatpush1.bf16.msra.mxu0 0
      %308 = vmatprep.subr.bf16.mxu0 0
      %309 = vmatpush1.bf16.msra.mxu0 0
      %310 = vmatprep.subr.bf16.mxu0 0
      %311 = vmatpush1.bf16.msra.mxu0 0
      %312 = vmatprep.subr.bf16.mxu0 0
      %313 = vmatpush1.bf16.msra.mxu0 0
      %314 = vmatprep.subr.bf16.mxu0 0
      %315 = vmatpush1.bf16.msra.mxu0 0
      %316 = vmatprep.subr.bf16.mxu0 0
      %317 = vmatpush1.bf16.msra.mxu0 0
      %318 = vmatprep.subr.bf16.mxu0 0
      %319 = vmatpush1.bf16.msra.mxu0 0
      %320 = vmatprep.subr.bf16.mxu0 0
      %321 = vmatpush1.bf16.msra.mxu0 0
      %322 = vmatprep.subr.bf16.mxu0 0
      %323 = vmatpush1.bf16.msra.mxu0 0
      %324 = vmatprep.mubr.bf16.mxu0 0
      %325 = vmatmul.mubr.bf16.gmra.mrb[0].mxu0 %v286
      %v326 = vpop.f32.mrb[0].mxu0
      %v327 = vadd.f32 0.0, %v326
      %v328 = vpop.f32.mrb[0].mxu0
      %v329 = vpop.f32.mrb[0].mxu0
      %v330 = vpop.f32.mrb[0].mxu0
      %331 = vdwg.mxu0
      %333 = vrot.lane.b32.xlu0 %v214, 120
      %v334 = vpop.permute.xlu0 %333
      %335 = vrot.lane.b32.xlu0 %v219, 120
      %v336 = vpop.permute.xlu0 %335
      %v338 = vsel %vm220, %v334, 0
      %v341 = vsel %vm220, %v336, 0
      %343 = vmatprep.subr.bf16.mxu0 0
      %344 = vmatpush1.bf16.xpose.msra.mxu0 %v341
      %345 = vmatprep.subr.bf16.mxu0 0
      %346 = vmatpush1.bf16.xpose.msra.mxu0 0
      %347 = vmatprep.subr.bf16.mxu0 0
      %348 = vmatpush1.bf16.xpose.msra.mxu0 0
      %349 = vmatprep.subr.bf16.mxu0 0
      %350 = vmatpush1.bf16.xpose.msra.mxu0 0
      %351 = vmatprep.subr.bf16.mxu0 0
      %352 = vmatpush1.bf16.xpose.msra.mxu0 0
      %353 = vmatprep.subr.bf16.mxu0 0
      %354 = vmatpush1.bf16.xpose.msra.mxu0 0
      %355 = vmatprep.subr.bf16.mxu0 0
      %356 = vmatpush1.bf16.xpose.msra.mxu0 0
      %357 = vmatprep.subr.bf16.mxu0 0
      %358 = vmatpush1.bf16.xpose.msra.mxu0 0
      %359 = vmatprep.subr.bf16.mxu0 0
      %360 = vmatpush1.bf16.xpose.msra.mxu0 0
      %361 = vmatprep.subr.bf16.mxu0 0
      %362 = vmatpush1.bf16.xpose.msra.mxu0 0
      %363 = vmatprep.subr.bf16.mxu0 0
      %364 = vmatpush1.bf16.xpose.msra.mxu0 0
      %365 = vmatprep.subr.bf16.mxu0 0
      %366 = vmatpush1.bf16.xpose.msra.mxu0 0
      %367 = vmatprep.subr.bf16.mxu0 0
      %368 = vmatpush1.bf16.xpose.msra.mxu0 0
      %369 = vmatprep.subr.bf16.mxu0 0
      %370 = vmatpush1.bf16.xpose.msra.mxu0 0
      %371 = vmatprep.subr.bf16.mxu0 0
      %372 = vmatpush1.bf16.xpose.msra.mxu0 0
      %373 = vmatprep.subr.bf16.mxu0 0
      %374 = vmatpush1.bf16.xpose.msra.mxu0 0
      %375 = vmatprep.mubr.bf16.mxu0 0
      %376 = vmatmul.mubr.bf16.gmra.mrb[0].mxu0 %v338
      %v377 = vpop.f32.mrb[0].mxu0
      %v378 = vadd.f32 0.0, %v377
      %v379 = vpop.f32.mrb[0].mxu0
      %v380 = vpop.f32.mrb[0].mxu0
      %v381 = vpop.f32.mrb[0].mxu0
      %382 = vdwg.mxu0
      %v383 = vsel %vm267, %v378, -inf
      %384 = vmax.xlane.f32.xlu0 %v383
      %v385 = vpop.xlane.xlu0 %384
      %v386 = vsub.f32 %v378, %v385
      %v387 = vmul.f32 %v386, 1.442695
      %v388 = vpow.pop %v387
      %v389 = vsel %vm267, %v388, 0.0
      %390 = vadd.xlane.f32.xlu0 %v389
      %v391 = vpop.xlane.xlu0 %390
      %v392 = vrcp.pop %v391
      %v393 = vmul.f32 %v388, %v392
      %v394 = vpack.c.bf16 %v393, %v393
      %395 = vrot.lane.b32.xlu0 %v284, 120
      %v396 = vpop.permute.xlu0 %395
      %v398 = vsel %vm267, %v394, 0
      %v401 = vsel %vm288, %v396, 0
      %403 = vmatprep.subr.bf16.mxu0 0
      %404 = vmatpush1.bf16.msra.mxu0 %v401
      %405 = vmatprep.subr.bf16.mxu0 0
      %406 = vmatpush1.bf16.msra.mxu0 0
      %407 = vmatprep.subr.bf16.mxu0 0
      %408 = vmatpush1.bf16.msra.mxu0 0
      %409 = vmatprep.subr.bf16.mxu0 0
      %410 = vmatpush1.bf16.msra.mxu0 0
      %411 = vmatprep.subr.bf16.mxu0 0
      %412 = vmatpush1.bf16.msra.mxu0 0
      %413 = vmatprep.subr.bf16.mxu0 0
      %414 = vmatpush1.bf16.msra.mxu0 0
      %415 = vmatprep.subr.bf16.mxu0 0
      %416 = vmatpush1.bf16.msra.mxu0 0
      %417 = vmatprep.subr.bf16.mxu0 0
      %418 = vmatpush1.bf16.msra.mxu0 0
      %419 = vmatprep.subr.bf16.mxu0 0
      %420 = vmatpush1.bf16.msra.mxu0 0
      %421 = vmatprep.subr.bf16.mxu0 0
      %422 = vmatpush1.bf16.msra.mxu0 0
      %423 = vmatprep.subr.bf16.mxu0 0
      %424 = vmatpush1.bf16.msra.mxu0 0
      %425 = vmatprep.subr.bf16.mxu0 0
      %426 = vmatpush1.bf16.msra.mxu0 0
      %427 = vmatprep.subr.bf16.mxu0 0
      %428 = vmatpush1.bf16.msra.mxu0 0
      %429 = vmatprep.subr.bf16.mxu0 0
      %430 = vmatpush1.bf16.msra.mxu0 0
      %431 = vmatprep.subr.bf16.mxu0 0
      %432 = vmatpush1.bf16.msra.mxu0 0
      %433 = vmatprep.subr.bf16.mxu0 0
      %434 = vmatpush1.bf16.msra.mxu0 0
      %435 = vmatprep.mubr.bf16.mxu0 0
      %436 = vmatmul.mubr.bf16.gmra.mrb[0].mxu0 %v398
      %v437 = vpop.f32.mrb[0].mxu0
      %v438 = vadd.f32 0.0, %v437
      %v439 = vpop.f32.mrb[0].mxu0
      %v440 = vpop.f32.mrb[0].mxu0
      %v441 = vpop.f32.mrb[0].mxu0
      %442 = vdwg.mxu0
      %443 = vrot.lane.b32.xlu0 %v214, 112
      %v444 = vpop.permute.xlu0 %443
      %445 = vrot.lane.b32.xlu0 %v219, 112
      %v446 = vpop.permute.xlu0 %445
      %v448 = vsel %vm220, %v444, 0
      %v451 = vsel %vm220, %v446, 0
      %453 = vmatprep.subr.bf16.mxu0 0
      %454 = vmatpush1.bf16.xpose.msra.mxu0 %v451
      %455 = vmatprep.subr.bf16.mxu0 0
      %456 = vmatpush1.bf16.xpose.msra.mxu0 0
      %457 = vmatprep.subr.bf16.mxu0 0
      %458 = vmatpush1.bf16.xpose.msra.mxu0 0
      %459 = vmatprep.subr.bf16.mxu0 0
      %460 = vmatpush1.bf16.xpose.msra.mxu0 0
      %461 = vmatprep.subr.bf16.mxu0 0
      %462 = vmatpush1.bf16.xpose.msra.mxu0 0
      %463 = vmatprep.subr.bf16.mxu0 0
      %464 = vmatpush1.bf16.xpose.msra.mxu0 0
      %465 = vmatprep.subr.bf16.mxu0 0
      %466 = vmatpush1.bf16.xpose.msra.mxu0 0
      %467 = vmatprep.subr.bf16.mxu0 0
      %468 = vmatpush1.bf16.xpose.msra.mxu0 0
      %469 = vmatprep.subr.bf16.mxu0 0
      %470 = vmatpush1.bf16.xpose.msra.mxu0 0
      %471 = vmatprep.subr.bf16.mxu0 0
      %472 = vmatpush1.bf16.xpose.msra.mxu0 0
      %473 = vmatprep.subr.bf16.mxu0 0
      %474 = vmatpush1.bf16.xpose.msra.mxu0 0
      %475 = vmatprep.subr.bf16.mxu0 0
      %476 = vmatpush1.bf16.xpose.msra.mxu0 0
      %477 = vmatprep.subr.bf16.mxu0 0
      %478 = vmatpush1.bf16.xpose.msra.mxu0 0
      %479 = vmatprep.subr.bf16.mxu0 0
      %480 = vmatpush1.bf16.xpose.msra.mxu0 0
      %481 = vmatprep.subr.bf16.mxu0 0
      %482 = vmatpush1.bf16.xpose.msra.mxu0 0
      %483 = vmatprep.subr.bf16.mxu0 0
      %484 = vmatpush1.bf16.xpose.msra.mxu0 0
      %485 = vmatprep.mubr.bf16.mxu0 0
      %486 = vmatmul.mubr.bf16.gmra.mrb[0].mxu0 %v448
      %v487 = vpop.f32.mrb[0].mxu0
      %v488 = vadd.f32 0.0, %v487
      %v489 = vpop.f32.mrb[0].mxu0
      %v490 = vpop.f32.mrb[0].mxu0
      %v491 = vpop.f32.mrb[0].mxu0
      %492 = vdwg.mxu0
      %v493 = vsel %vm267, %v488, -inf
      %494 = vmax.xlane.f32.xlu0 %v493
      %v495 = vpop.xlane.xlu0 %494
      %v496 = vsub.f32 %v488, %v495
      %v497 = vmul.f32 %v496, 1.442695
      %v498 = vpow.pop %v497
      %v499 = vsel %vm267, %v498, 0.0
      %500 = vadd.xlane.f32.xlu0 %v499
      %v501 = vpop.xlane.xlu0 %500
      %v502 = vrcp.pop %v501
      %v503 = vmul.f32 %v498, %v502
      %v504 = vpack.c.bf16 %v503, %v503
      %505 = vrot.lane.b32.xlu0 %v284, 112
      %v506 = vpop.permute.xlu0 %505
      %v508 = vsel %vm267, %v504, 0
      %v511 = vsel %vm288, %v506, 0
      %513 = vmatprep.subr.bf16.mxu0 0
      %514 = vmatpush1.bf16.msra.mxu0 %v511
      %515 = vmatprep.subr.bf16.mxu0 0
      %516 = vmatpush1.bf16.msra.mxu0 0
      %517 = vmatprep.subr.bf16.mxu0 0
      %518 = vmatpush1.bf16.msra.mxu0 0
      %519 = vmatprep.subr.bf16.mxu0 0
      %520 = vmatpush1.bf16.msra.mxu0 0
      %521 = vmatprep.subr.bf16.mxu0 0
      %522 = vmatpush1.bf16.msra.mxu0 0
      %523 = vmatprep.subr.bf16.mxu0 0
      %524 = vmatpush1.bf16.msra.mxu0 0
      %525 = vmatprep.subr.bf16.mxu0 0
      %526 = vmatpush1.bf16.msra.mxu0 0
      %527 = vmatprep.subr.bf16.mxu0 0
      %528 = vmatpush1.bf16.msra.mxu0 0
      %529 = vmatprep.subr.bf16.mxu0 0
      %530 = vmatpush1.bf16.msra.mxu0 0
      %531 = vmatprep.subr.bf16.mxu0 0
      %532 = vmatpush1.bf16.msra.mxu0 0
      %533 = vmatprep.subr.bf16.mxu0 0
      %534 = vmatpush1.bf16.msra.mxu0 0
      %535 = vmatprep.subr.bf16.mxu0 0
      %536 = vmatpush1.bf16.msra.mxu0 0
      %537 = vmatprep.subr.bf16.mxu0 0
      %538 = vmatpush1.bf16.msra.mxu0 0
      %539 = vmatprep.subr.bf16.mxu0 0
      %540 = vmatpush1.bf16.msra.mxu0 0
      %541 = vmatprep.subr.bf16.mxu0 0
      %542 = vmatpush1.bf16.msra.mxu0 0
      %543 = vmatprep.subr.bf16.mxu0 0
      %544 = vmatpush1.bf16.msra.mxu0 0
      %545 = vmatprep.mubr.bf16.mxu0 0
      %546 = vmatmul.mubr.bf16.gmra.mrb[0].mxu0 %v508
      %v547 = vpop.f32.mrb[0].mxu0
      %v548 = vadd.f32 0.0, %v547
      %v549 = vpop.f32.mrb[0].mxu0
      %v550 = vpop.f32.mrb[0].mxu0
      %v551 = vpop.f32.mrb[0].mxu0
      %552 = vdwg.mxu0
      %553 = vrot.lane.b32.xlu0 %v214, 104
      %v554 = vpop.permute.xlu0 %553
      %555 = vrot.lane.b32.xlu0 %v219, 104
      %v556 = vpop.permute.xlu0 %555
      %v558 = vsel %vm220, %v554, 0
      %v561 = vsel %vm220, %v556, 0
      %563 = vmatprep.subr.bf16.mxu0 0
      %564 = vmatpush1.bf16.xpose.msra.mxu0 %v561
      %565 = vmatprep.subr.bf16.mxu0 0
      %566 = vmatpush1.bf16.xpose.msra.mxu0 0
      %567 = vmatprep.subr.bf16.mxu0 0
      %568 = vmatpush1.bf16.xpose.msra.mxu0 0
      %569 = vmatprep.subr.bf16.mxu0 0
      %570 = vmatpush1.bf16.xpose.msra.mxu0 0
      %571 = vmatprep.subr.bf16.mxu0 0
      %572 = vmatpush1.bf16.xpose.msra.mxu0 0
      %573 = vmatprep.subr.bf16.mxu0 0
      %574 = vmatpush1.bf16.xpose.msra.mxu0 0
      %575 = vmatprep.subr.bf16.mxu0 0
      %576 = vmatpush1.bf16.xpose.msra.mxu0 0
      %577 = vmatprep.subr.bf16.mxu0 0
      %578 = vmatpush1.bf16.xpose.msra.mxu0 0
      %579 = vmatprep.subr.bf16.mxu0 0
      %580 = vmatpush1.bf16.xpose.msra.mxu0 0
      %581 = vmatprep.subr.bf16.mxu0 0
      %582 = vmatpush1.bf16.xpose.msra.mxu0 0
      %583 = vmatprep.subr.bf16.mxu0 0
      %584 = vmatpush1.bf16.xpose.msra.mxu0 0
      %585 = vmatprep.subr.bf16.mxu0 0
      %586 = vmatpush1.bf16.xpose.msra.mxu0 0
      %587 = vmatprep.subr.bf16.mxu0 0
      %588 = vmatpush1.bf16.xpose.msra.mxu0 0
      %589 = vmatprep.subr.bf16.mxu0 0
      %590 = vmatpush1.bf16.xpose.msra.mxu0 0
      %591 = vmatprep.subr.bf16.mxu0 0
      %592 = vmatpush1.bf16.xpose.msra.mxu0 0
      %593 = vmatprep.subr.bf16.mxu0 0
      %594 = vmatpush1.bf16.xpose.msra.mxu0 0
      %595 = vmatprep.mubr.bf16.mxu0 0
      %596 = vmatmul.mubr.bf16.gmra.mrb[0].mxu0 %v558
      %v597 = vpop.f32.mrb[0].mxu0
      %v598 = vadd.f32 0.0, %v597
      %v599 = vpop.f32.mrb[0].mxu0
      %v600 = vpop.f32.mrb[0].mxu0
      %v601 = vpop.f32.mrb[0].mxu0
      %602 = vdwg.mxu0
      %v603 = vsel %vm267, %v598, -inf
      %604 = vmax.xlane.f32.xlu0 %v603
      %v605 = vpop.xlane.xlu0 %604
      %v606 = vsub.f32 %v598, %v605
      %v607 = vmul.f32 %v606, 1.442695
      %v608 = vpow.pop %v607
      %v609 = vsel %vm267, %v608, 0.0
      %610 = vadd.xlane.f32.xlu0 %v609
      %v611 = vpop.xlane.xlu0 %610
      %v612 = vrcp.pop %v611
      %v613 = vmul.f32 %v608, %v612
      %v614 = vpack.c.bf16 %v613, %v613
      %615 = vrot.lane.b32.xlu0 %v284, 104
      %v616 = vpop.permute.xlu0 %615
      %v618 = vsel %vm267, %v614, 0
      %v621 = vsel %vm288, %v616, 0
      %623 = vmatprep.subr.bf16.mxu0 0
      %624 = vmatpush1.bf16.msra.mxu0 %v621
      %625 = vmatprep.subr.bf16.mxu0 0
      %626 = vmatpush1.bf16.msra.mxu0 0
      %627 = vmatprep.subr.bf16.mxu0 0
      %628 = vmatpush1.bf16.msra.mxu0 0
      %629 = vmatprep.subr.bf16.mxu0 0
      %630 = vmatpush1.bf16.msra.mxu0 0
      %631 = vmatprep.subr.bf16.mxu0 0
      %632 = vmatpush1.bf16.msra.mxu0 0
      %633 = vmatprep.subr.bf16.mxu0 0
      %634 = vmatpush1.bf16.msra.mxu0 0
      %635 = vmatprep.subr.bf16.mxu0 0
      %636 = vmatpush1.bf16.msra.mxu0 0
      %637 = vmatprep.subr.bf16.mxu0 0
      %638 = vmatpush1.bf16.msra.mxu0 0
      %639 = vmatprep.subr.bf16.mxu0 0
      %640 = vmatpush1.bf16.msra.mxu0 0
      %641 = vmatprep.subr.bf16.mxu0 0
      %642 = vmatpush1.bf16.msra.mxu0 0
      %643 = vmatprep.subr.bf16.mxu0 0
      %644 = vmatpush1.bf16.msra.mxu0 0
      %645 = vmatprep.subr.bf16.mxu0 0
      %646 = vmatpush1.bf16.msra.mxu0 0
      %647 = vmatprep.subr.bf16.mxu0 0
      %648 = vmatpush1.bf16.msra.mxu0 0
      %649 = vmatprep.subr.bf16.mxu0 0
      %650 = vmatpush1.bf16.msra.mxu0 0
      %651 = vmatprep.subr.bf16.mxu0 0
      %652 = vmatpush1.bf16.msra.mxu0 0
      %653 = vmatprep.subr.bf16.mxu0 0
      %654 = vmatpush1.bf16.msra.mxu0 0
      %655 = vmatprep.mubr.bf16.mxu0 0
      %656 = vmatmul.mubr.bf16.gmra.mrb[0].mxu0 %v618
      %v657 = vpop.f32.mrb[0].mxu0
      %v658 = vadd.f32 0.0, %v657
      %v659 = vpop.f32.mrb[0].mxu0
      %v660 = vpop.f32.mrb[0].mxu0
      %v661 = vpop.f32.mrb[0].mxu0
      %662 = vdwg.mxu0
      %664 = vrot.lane.b32.xlu0 %v438, 8
      %v665 = vpop.permute.xlu0 %664
      %668 = vrot.lane.b32.xlu0 %v548, 16
      %v669 = vpop.permute.xlu0 %668
      %672 = vrot.lane.b32.xlu0 %v658, 24
      %v673 = vpop.permute.xlu0 %672
      %v675 = vsel %vm220, %v327, %v665
      %vm676 = vcmask 130048
      %v677 = vsel %vm676, %v675, %v669
      %vm678 = vcmask 195584
      %v679 = vsel %vm678, %v677, %v673
      %v680 = vpack.c.bf16 %v679, %v679
      %vm681 = vcmask 257024
      %682 = vst.msk [vmem:[%s205] sm:$0xf] %vm681, %v680
      %p683 = scmp.lt.s32.totalorder %s14, 1
      %s684 = scalar_select %p683, %s14, 1
      %s685 = smul.addr %s684, 4
      %s686 = scalar_lea.vmem %s3, %s685
      // Predicated region
      $region33: #{transformer_decoder_forward.31} parent=31 // pred_check
        %p687 = pneg %p110
      $region34: #{transformer_decoder_forward.31} parent=31 // pred_check_branch
        %689 = sbr.rel (%p687) target = $region36
      $region35: #{transformer_decoder_forward.31} parent=31 // pred_region
        _
      $region36: #{transformer_decoder_forward.31} parent=31 // pred_fallthru
        _
    $region32: #{transformer_decoder_forward.31} parent=5 // pred_fallthru
      _
    %p690 = scmp.le.s32.totalorder 2, %s9
    // Predicated region
    $region37: #{transformer_decoder_forward.31} parent=5 // pred_check
      %p691 = pneg %p690
    $region38: #{transformer_decoder_forward.31} parent=5 // pred_check_branch
      %693 = sbr.rel (%p691) target = $region40
    $region39: #{transformer_decoder_forward.31} parent=5 // pred_region
      %s694 = ssub.s32 %s9, 2
      // Predicated region
      $region41: #{transformer_decoder_forward.31} parent=39 // pred_check
        %p695 = pneg %p116
      $region42: #{transformer_decoder_forward.31} parent=39 // pred_check_branch
        %697 = sbr.rel (%p695) target = $region44
      $region43: #{transformer_decoder_forward.31} parent=39 // pred_region
        %p698 = scmp.lt.s32.totalorder %s15, 1
        %s699 = scalar_select %p698, %s15, 1
        %s700 = smul.addr %s699, 4
        %s701 = scalar_lea.vmem %s3, %s700
      $region44: #{transformer_decoder_forward.31} parent=39 // pred_fallthru
        _
    $region40: #{transformer_decoder_forward.31} parent=5 // pred_fallthru
      _
  $region6: #{transformer_decoder_forward.31} parent=0 // loop_footer
    %s13 = sadd.s32 1, %s9
  $region7: #{transformer_decoder_forward.31} parent=0 // loop_footer_branch
    %8 = sbr.rel target = $region3
  $region8: #{transformer_decoder_forward.31} parent=0 // loop_exit
    _

// kernel: transformer_decoder_forward.49
$region0: #{transformer_decoder_forward.49}
  #allocation0 [shape = 'u32[]', space=smem, size = 0x4, offset = 0x4, fixed_abs, tag = 'smem constant byte address 0x4 - core index']
  #allocation1 [shape = 'u32[144,128]{1,0:T(1,128)}', space=vmem, size = 0x12000, scoped, tag = 'internal scratch']
  #allocation2 [shape = 'f32[16,128]{1,0:T(8,128)}', space=vmem, size = 0x2000, scoped, tag = 'scratch operand']
  %s0 = inlined_call_operand.vmem [shape: bf16[16,128], index: 0, kind: input, shape index: {}]
  %s1 = inlined_call_operand.vmem [shape: bf16[128,128], index: 1, kind: input, shape index: {}]
  %s2 = inlined_call_operand.vmem [shape: f32[1,128], index: 2, kind: input, shape index: {}]
  %s3 = inlined_call_operand.vmem [shape: f32[16,128], index: 3, kind: output, shape index: {}]
  %s4 = sld [smem:[#allocation0]]
  $region30: #{transformer_decoder_forward.49} parent=0
    _
  %s6 = ssub.s32 1, %s4
  %s7 = scalar_select 0, %s6, %s4
  // Predicated region
  $region2: #{transformer_decoder_forward.49} parent=0 // pred_check
    _
  $region3: #{transformer_decoder_forward.49} parent=0 // pred_check_branch
    %9 = sbr.rel (0) target = $region5
  $region4: #{transformer_decoder_forward.49} parent=0 // pred_region
    _
  $region5: #{transformer_decoder_forward.49} parent=0 // pred_fallthru
    _
  // Predicated region
  $region6: #{transformer_decoder_forward.49} parent=0 // pred_check
    _
  $region7: #{transformer_decoder_forward.49} parent=0 // pred_check_branch
    %11 = sbr.rel (0) target = $region9
  $region8: #{transformer_decoder_forward.49} parent=0 // pred_region
    _
  $region9: #{transformer_decoder_forward.49} parent=0 // pred_fallthru
    _
  // Predicated region
  $region10: #{transformer_decoder_forward.49} parent=0 // pred_check
    _
  $region11: #{transformer_decoder_forward.49} parent=0 // pred_check_branch
    %13 = sbr.rel (0) target = $region13
  $region12: #{transformer_decoder_forward.49} parent=0 // pred_region
    _
  $region13: #{transformer_decoder_forward.49} parent=0 // pred_fallthru
    _
  %p15 = scmp.eq.s32.totalorder 0, 0
  // Predicated region
  $region14: #{transformer_decoder_forward.49} parent=0 // pred_check
    %p16 = pneg %p15
  $region15: #{transformer_decoder_forward.49} parent=0 // pred_check_branch
    %18 = sbr.rel (%p16) target = $region17
  $region16: #{transformer_decoder_forward.49} parent=0 // pred_region
    %19 = vst [vmem:[#allocation2] sm:$0xff] 0.0
    %20 = vst [vmem:[#allocation2 + $0x8] sm:$0xff] 0.0
  $region17: #{transformer_decoder_forward.49} parent=0 // pred_fallthru
    _
  %v21 = vld [vmem:[#allocation2] sm:$0xff]
  %v22 = vld [vmem:[#allocation2 + $0x8] sm:$0xff]
  %v23 = vld [vmem:[%s0] sm:$0xf]
  %v24 = vld [vmem:[%s0 + $0x4] sm:$0xf]
  %v25 = vld [vmem:[%s1] sm:$0xf]
  %v26 = vld [vmem:[%s1 + $0x4] sm:$0xf]
  %v27 = vld [vmem:[%s1 + $0x8] sm:$0xf]
  %v28 = vld [vmem:[%s1 + $0xc] sm:$0xf]
  %v29 = vld [vmem:[%s1 + $0x10] sm:$0xf]
  %v30 = vld [vmem:[%s1 + $0x14] sm:$0xf]
  %v31 = vld [vmem:[%s1 + $0x18] sm:$0xf]
  %v32 = vld [vmem:[%s1 + $0x1c] sm:$0xf]
  %v33 = vld [vmem:[%s1 + $0x20] sm:$0xf]
  %v34 = vld [vmem:[%s1 + $0x24] sm:$0xf]
  %v35 = vld [vmem:[%s1 + $0x28] sm:$0xf]
  %v36 = vld [vmem:[%s1 + $0x2c] sm:$0xf]
  %v37 = vld [vmem:[%s1 + $0x30] sm:$0xf]
  %v38 = vld [vmem:[%s1 + $0x34] sm:$0xf]
  %v39 = vld [vmem:[%s1 + $0x38] sm:$0xf]
  %v40 = vld [vmem:[%s1 + $0x3c] sm:$0xf]
  %v43 = vunpack.c.l.b16 %v23
  %v44 = vunpack.c.l.b16 %v24
  %v45 = vpack.c.b16 %v44, %v43
  %v63 = vunpack.c.l.b16 %v25
  %v64 = vunpack.c.l.b16 %v26
  %v65 = vunpack.c.l.b16 %v27
  %v66 = vunpack.c.l.b16 %v28
  %v67 = vunpack.c.l.b16 %v29
  %v68 = vunpack.c.l.b16 %v30
  %v69 = vunpack.c.l.b16 %v31
  %v70 = vunpack.c.l.b16 %v32
  %v71 = vunpack.c.l.b16 %v33
  %v72 = vunpack.c.l.b16 %v34
  %v73 = vunpack.c.l.b16 %v35
  %v74 = vunpack.c.l.b16 %v36
  %v75 = vunpack.c.l.b16 %v37
  %v76 = vunpack.c.l.b16 %v38
  %v77 = vunpack.c.l.b16 %v39
  %v78 = vunpack.c.l.b16 %v40
  %v79 = vpack.c.b16 %v64, %v63
  %v80 = vpack.c.b16 %v66, %v65
  %v81 = vpack.c.b16 %v68, %v67
  %v82 = vpack.c.b16 %v70, %v69
  %v83 = vpack.c.b16 %v72, %v71
  %v84 = vpack.c.b16 %v74, %v73
  %v85 = vpack.c.b16 %v76, %v75
  %v86 = vpack.c.b16 %v78, %v77
  %95 = vmatprep.subr.bf16.mxu0 0
  %96 = vmatpush1.bf16.msra.mxu0 %v79
  %97 = vmatprep.subr.bf16.mxu0 0
  %98 = vmatpush1.bf16.msra.mxu0 %v80
  %99 = vmatprep.subr.bf16.mxu0 0
  %100 = vmatpush1.bf16.msra.mxu0 %v81
  %101 = vmatprep.subr.bf16.mxu0 0
  %102 = vmatpush1.bf16.msra.mxu0 %v82
  %103 = vmatprep.subr.bf16.mxu0 0
  %104 = vmatpush1.bf16.msra.mxu0 %v83
  %105 = vmatprep.subr.bf16.mxu0 0
  %106 = vmatpush1.bf16.msra.mxu0 %v84
  %107 = vmatprep.subr.bf16.mxu0 0
  %108 = vmatpush1.bf16.msra.mxu0 %v85
  %109 = vmatprep.subr.bf16.mxu0 0
  %110 = vmatpush1.bf16.msra.mxu0 %v86
  %111 = vmatprep.subr.bf16.mxu0 0
  %112 = vmatpush1.bf16.msra.mxu0 0
  %113 = vmatprep.subr.bf16.mxu0 0
  %114 = vmatpush1.bf16.msra.mxu0 0
  %115 = vmatprep.subr.bf16.mxu0 0
  %116 = vmatpush1.bf16.msra.mxu0 0
  %117 = vmatprep.subr.bf16.mxu0 0
  %118 = vmatpush1.bf16.msra.mxu0 0
  %119 = vmatprep.subr.bf16.mxu0 0
  %120 = vmatpush1.bf16.msra.mxu0 0
  %121 = vmatprep.subr.bf16.mxu0 0
  %122 = vmatpush1.bf16.msra.mxu0 0
  %123 = vmatprep.subr.bf16.mxu0 0
  %124 = vmatpush1.bf16.msra.mxu0 0
  %125 = vmatprep.subr.bf16.mxu0 0
  %126 = vmatpush1.bf16.msra.mxu0 0
  %127 = vmatprep.mubr.bf16.mxu0 0
  %128 = vmatmul.mubr.bf16.gmra.mrb[0].mxu0 %v45
  %v129 = vpop.f32.mrb[0].mxu0
  %v130 = vadd.f32 0.0, %v129
  %v131 = vpop.f32.mrb[0].mxu0
  %v132 = vpop.f32.mrb[0].mxu0
  %v133 = vadd.f32 0.0, %v132
  %v134 = vpop.f32.mrb[0].mxu0
  %135 = vdwg.mxu0
  %v136 = vadd.f32 %v21, %v130
  %v137 = vadd.f32 %v22, %v133
  %138 = vst [vmem:[#allocation2] sm:$0xff] %v136
  %139 = vst [vmem:[#allocation2 + $0x8] sm:$0xff] %v137
  // Predicated region
  $region18: #{transformer_decoder_forward.49} parent=0 // pred_check
    %p140 = pneg %p15
  $region19: #{transformer_decoder_forward.49} parent=0 // pred_check_branch
    %142 = sbr.rel (%p140) target = $region21
  $region20: #{transformer_decoder_forward.49} parent=0 // pred_region
    %v143 = vld [vmem:[#allocation2] sm:$0xff]
    %v144 = vld [vmem:[#allocation2 + $0x8] sm:$0xff]
    %v145 = vld [vmem:[%s2] sm:$0x1]
    %v147 = vlaneseq
    %v148 = vshrl.u32 %v147, 7
    %v149 = vsub.s32 0, %v148
    %v150 = vrot.slane %v145, %v149
    %v152 = vadd.f32 %v143, %v150
    %v153 = vadd.f32 %v144, %v150
    %154 = vst [vmem:[%s3] sm:$0xff] %v152
    %155 = vst [vmem:[%s3 + $0x8] sm:$0xff] %v153
  $region21: #{transformer_decoder_forward.49} parent=0 // pred_fallthru
    _
  // Predicated region
  $region22: #{transformer_decoder_forward.49} parent=0 // pred_check
    _
  $region23: #{transformer_decoder_forward.49} parent=0 // pred_check_branch
    %157 = sbr.rel (0) target = $region25
  $region24: #{transformer_decoder_forward.49} parent=0 // pred_region
    _
  $region25: #{transformer_decoder_forward.49} parent=0 // pred_fallthru
    _
  // Predicated region
  $region26: #{transformer_decoder_forward.49} parent=0 // pred_check
    _
  $region27: #{transformer_decoder_forward.49} parent=0 // pred_check_branch
    %159 = sbr.rel (0) target = $region29
  $region28: #{transformer_decoder_forward.49} parent=0 // pred_region
    _
  $region29: #{transformer_decoder_forward.49} parent=0 // pred_fallthru
    _

</llo_original>
